<compile_context>
chip_gen: v7x
topology: tpu7x:2x2x1
jax: 0.10.0
libtpu: 0.0.40
codegen_flags: <defaults>
</compile_context>

<pallas_src>
import math

import jax
import jax.numpy as jnp
import numpy as np
from jax.experimental import pallas as pl
from jax.experimental.pallas import tpu as pltpu

# ------------------------- model configuration (small) -------------------------
VOCAB = 32
D_MODEL = 32
N_HEADS = 4
D_HEAD = D_MODEL // N_HEADS
D_FF = 64
N_LAYERS = 2
SEQ_LEN = 8
BATCH = 2
EPS_LN = 1e-5  # torch.nn.LayerNorm default eps

# TODO(synk): top_k_attn / top_k_ff sparsification branches (topk + scatter mask)
# are not implemented; the module defaults (None) are reproduced exactly.


# ------------------------------ shared helpers ----------------------------------
def _layernorm(v, w, b):
    mu = jnp.mean(v, axis=-1, keepdims=True)
    var = jnp.mean((v - mu) ** 2, axis=-1, keepdims=True)  # biased var, like torch
    return (v - mu) * jax.lax.rsqrt(var + EPS_LN) * w + b


def _softmax_last_kernel(s):
    # in-kernel softmax: approx reciprocal runs on the (otherwise idle) EUP slot
    m = jnp.max(s, axis=-1, keepdims=True)
    e = jnp.exp(s - m)
    return e * pl.reciprocal(jnp.sum(e, axis=-1, keepdims=True), approx=True)


# ------------------------------ fused Pallas kernel -----------------------------
def fused_forward_kernel(
    tok_ref, embed_ref, pos_ref,
    wqkv_ref, bqkv_ref, wo_ref, bo_ref, ln1_ref,
    w1_ref, b1_ref, w2t_ref, ln2_ref,
    wlog_ref, blog_ref,
    o_ref,
):
    B, L, D, H, Dh = BATCH, SEQ_LEN, D_MODEL, N_HEADS, D_HEAD
    BL = B * L

    # ----- embedding gather as an exact one-hot matmul + positional add -----
    tok = tok_ref[...]                                               # (BL, 1) int32
    vocab_iota = jax.lax.broadcasted_iota(jnp.int32, (BL, VOCAB), 1)
    onehot = (tok == vocab_iota).astype(jnp.float32)                 # (BL, VOCAB)
    x = jnp.dot(onehot, embed_ref[...], preferred_element_type=jnp.float32)
    pos = pos_ref[...]                                               # (L, D)
    x = x + jnp.concatenate([pos] * B, axis=0)                       # (BL, D)

    scale = 1.0 / math.sqrt(Dh)
    for l in range(N_LAYERS):                                        # static layer loop
        # ----- attention: fused QKV projection, weights resident in VMEM -----
        qkv = (jnp.dot(x, wqkv_ref[l], preferred_element_type=jnp.float32)
               + bqkv_ref[l])                                        # (BL, 3D)
        q = qkv[:, 0:D]
        k = qkv[:, D:2 * D]
        v = qkv[:, 2 * D:3 * D]
        wo = wo_ref[l]                                               # (D, D)

        attn = jnp.zeros((BL, D), jnp.float32)
        for h in range(H):                      # static unroll over heads
            lo, hi = h * Dh, (h + 1) * Dh
            ctx_parts = []
            for b in range(B):                  # attention never crosses batch rows
                r0, r1 = b * L, (b + 1) * L
                qh = q[r0:r1, lo:hi]
                kh = k[r0:r1, lo:hi]
                vh = v[r0:r1, lo:hi]
                # qh @ kh.T without materializing the transpose
                s = jax.lax.dot_general(
                    qh, kh, (((1,), (1,)), ((), ())),
                    preferred_element_type=jnp.float32) * scale      # (L, L)
                p = _softmax_last_kernel(s)     # softmax over key axis (torch dim=2)
                ctx_parts.append(jnp.dot(p, vh, preferred_element_type=jnp.float32))
            ctx = jnp.concatenate(ctx_parts, axis=0)                 # (BL, Dh) sublane cat
            # accumulate straight through the output projection (no lane concat)
            attn = attn + jnp.dot(ctx, wo[lo:hi, :],
                                  preferred_element_type=jnp.float32)
        attn = attn + bo_ref[l]

        ln1 = ln1_ref[l]                                             # (2, D): [gamma; beta]
        y = _layernorm(x + attn, ln1[0:1, :], ln1[1:2, :])

        # ----- "EM" feed-forward -----
        # NOTE: the PyTorch reference einsum 'bils,blds->bids' has 4 subscripts for a
        # 3-D softmax tensor (it would raise at runtime); the intended semantics is a
        # per-position mixture of the columns of W2 (no bias):
        #   mixture = softmax(x @ W1 + b1) @ W2.weight.T
        sff = (jnp.dot(y, w1_ref[l], preferred_element_type=jnp.float32)
               + b1_ref[l])                                          # (BL, D_FF)
        wff = _softmax_last_kernel(sff)
        mix = jnp.dot(wff, w2t_ref[l], preferred_element_type=jnp.float32)  # (BL, D)

        ln2 = ln2_ref[l]
        x = _layernorm(y + mix, ln2[0:1, :], ln2[1:2, :])

    # ----- final logits from the last position of each batch element -----
    x_last = jnp.concatenate(
        [x[b * L + L - 1:b * L + L, :] for b in range(B)], axis=0)   # (B, D)
    o_ref[...] = (jnp.dot(x_last, wlog_ref[...], preferred_element_type=jnp.float32)
                  + blog_ref[...])


# ------------------------------ wrappers ----------------------------------------
def pack_params(params):
    """Stack per-layer weights into a few VMEM-friendly slabs (done once)."""
    lps = params["layers"]
    return {
        "embed": params["embed"],                                       # (V, D)
        "pos": params["pos"][0],                                        # (L, D)
        "wqkv": jnp.stack([jnp.concatenate([lp["wq"], lp["wk"], lp["wv"]], axis=1)
                           for lp in lps]),                             # (NL, D, 3D)
        "bqkv": jnp.stack([jnp.concatenate([lp["bq"], lp["bk"], lp["bv"]], axis=1)
                           for lp in lps]),                             # (NL, 1, 3D)
        "wo": jnp.stack([lp["wo"] for lp in lps]),                      # (NL, D, D)
        "bo": jnp.stack([lp["bo"] for lp in lps]),                      # (NL, 1, D)
        "ln1": jnp.stack([jnp.concatenate([lp["ln1w"], lp["ln1b"]], axis=0)
                          for lp in lps]),                              # (NL, 2, D)
        "w1": jnp.stack([lp["w1"] for lp in lps]),                      # (NL, D, D_FF)
        "b1": jnp.stack([lp["b1"] for lp in lps]),                      # (NL, 1, D_FF)
        "w2t": jnp.stack([lp["w2t"] for lp in lps]),                    # (NL, D_FF, D)
        "ln2": jnp.stack([jnp.concatenate([lp["ln2w"], lp["ln2b"]], axis=0)
                          for lp in lps]),                              # (NL, 2, D)
        "wlog": params["wlog"],                                         # (D, V)
        "blog": params["blog"],                                         # (1, V)
    }


def em_transformer_forward(tokens, packed):
    B, L = tokens.shape
    tok_col = tokens.reshape(B * L, 1).astype(jnp.int32)
    vmem = pl.BlockSpec(memory_space=pltpu.MemorySpace.VMEM)
    return pl.pallas_call(
        fused_forward_kernel,
        out_shape=jax.ShapeDtypeStruct((B, VOCAB), jnp.float32),
        in_specs=[vmem] * 14,
        out_specs=vmem,
    )(
        tok_col, packed["embed"], packed["pos"],
        packed["wqkv"], packed["bqkv"], packed["wo"], packed["bo"], packed["ln1"],
        packed["w1"], packed["b1"], packed["w2t"], packed["ln2"],
        packed["wlog"], packed["blog"],
    )


# ------------------------------ parameters --------------------------------------
def init_params(key):
    ks = iter(jax.random.split(key, 8 + N_LAYERS * 12))

    def lin(kw, kb, fan_in, fan_out):
        bound = 1.0 / math.sqrt(fan_in)
        w = jax.random.uniform(kw, (fan_in, fan_out), jnp.float32, -bound, bound)
        b = jax.random.uniform(kb, (1, fan_out), jnp.float32, -bound, bound)
        return w, b

    params = {
        "embed": jax.random.normal(next(ks), (VOCAB, D_MODEL), jnp.float32),
        "pos": jax.random.normal(next(ks), (1, SEQ_LEN, D_MODEL), jnp.float32),
        "layers": [],
    }
    for _ in range(N_LAYERS):
        lp = {}
        lp["wq"], lp["bq"] = lin(next(ks), next(ks), D_MODEL, D_MODEL)
        lp["wk"], lp["bk"] = lin(next(ks), next(ks), D_MODEL, D_MODEL)
        lp["wv"], lp["bv"] = lin(next(ks), next(ks), D_MODEL, D_MODEL)
        lp["wo"], lp["bo"] = lin(next(ks), next(ks), D_MODEL, D_MODEL)
        lp["ln1w"] = jnp.ones((1, D_MODEL), jnp.float32)
        lp["ln1b"] = jnp.zeros((1, D_MODEL), jnp.float32)
        lp["w1"], lp["b1"] = lin(next(ks), next(ks), D_MODEL, D_FF)
        w2t, _unused_b2 = lin(next(ks), next(ks), D_FF, D_MODEL)  # = W2.weight.T
        lp["w2t"] = w2t
        lp["ln2w"] = jnp.ones((1, D_MODEL), jnp.float32)
        lp["ln2b"] = jnp.zeros((1, D_MODEL), jnp.float32)
        params["layers"].append(lp)
    params["wlog"], params["blog"] = lin(next(ks), next(ks), D_MODEL, VOCAB)
    return params


# ------------------------------ pure-JAX reference ------------------------------
def reference_forward(tokens, params):
    B, L = tokens.shape
    x = params["embed"][tokens] + params["pos"][:, :L]
    for lp in params["layers"]:
        q = (x @ lp["wq"] + lp["bq"]).reshape(B, L, N_HEADS, D_HEAD)
        k = (x @ lp["wk"] + lp["bk"]).reshape(B, L, N_HEADS, D_HEAD)
        v = (x @ lp["wv"] + lp["bv"]).reshape(B, L, N_HEADS, D_HEAD)
        scores = jnp.einsum("bihd,bjhd->bijh", q, k) / math.sqrt(D_HEAD)
        w = jax.nn.softmax(scores, axis=2)
        attn = jnp.einsum("bijh,bjhd->bihd", w, v).reshape(B, L, D_MODEL)
        attn = attn @ lp["wo"] + lp["bo"]
        y = _layernorm(x + attn, lp["ln1w"], lp["ln1b"])
        wff = jax.nn.softmax(y @ lp["w1"] + lp["b1"], axis=-1)
        mix = wff @ lp["w2t"]
        x = _layernorm(y + mix, lp["ln2w"], lp["ln2b"])
    return x[:, -1, :] @ params["wlog"] + params["blog"]


# ------------------------------ main --------------------------------------------
if __name__ == "__main__":
    key = jax.random.PRNGKey(0)
    pkey, tkey = jax.random.split(key)
    params = init_params(pkey)
    packed = pack_params(params)
    tokens = jax.random.randint(tkey, (BATCH, SEQ_LEN), 0, VOCAB, dtype=jnp.int32)

    logits = em_transformer_forward(tokens, packed)
    jax.block_until_ready(logits)
    assert logits.shape == (BATCH, VOCAB)

    ref = reference_forward(tokens, params)
    # slightly relaxed tolerance: softmax denominators use the EUP approximate reciprocal
    np.testing.assert_allclose(np.asarray(logits), np.asarray(ref), rtol=2e-3, atol=2e-3)
    print("KERNEL_OK")
</pallas_src>

<mosaic_0001>
module attributes {stable_mosaic.version = 11 : i64} {
  func.func @fused_forward_kernel(%arg0: memref<16x1xi32, #tpu.memory_space<vmem>>, %arg1: memref<32x32xf32, #tpu.memory_space<vmem>>, %arg2: memref<8x32xf32, #tpu.memory_space<vmem>>, %arg3: memref<2x32x96xf32, #tpu.memory_space<vmem>>, %arg4: memref<2x1x96xf32, #tpu.memory_space<vmem>>, %arg5: memref<2x32x32xf32, #tpu.memory_space<vmem>>, %arg6: memref<2x1x32xf32, #tpu.memory_space<vmem>>, %arg7: memref<2x2x32xf32, #tpu.memory_space<vmem>>, %arg8: memref<2x32x64xf32, #tpu.memory_space<vmem>>, %arg9: memref<2x1x64xf32, #tpu.memory_space<vmem>>, %arg10: memref<2x64x32xf32, #tpu.memory_space<vmem>>, %arg11: memref<2x2x32xf32, #tpu.memory_space<vmem>>, %arg12: memref<32x32xf32, #tpu.memory_space<vmem>>, %arg13: memref<1x32xf32, #tpu.memory_space<vmem>>, %arg14: memref<2x32xf32, #tpu.memory_space<vmem>>) attributes {dimension_semantics = [], scalar_prefetch = 0 : i64, scratch_operands = 0 : i64, tpu.core_type = #tpu.core_type<tc>} {
    %c0 = arith.constant 0 : index
    %c0_0 = arith.constant 0 : index
    %0 = vector.load %arg0[%c0, %c0_0] : memref<16x1xi32, #tpu.memory_space<vmem>>, vector<16x1xi32>
    %1 = tpu.iota {dimensions = array<i32: 1>} : vector<16x32xi32>
    %2 = vector.broadcast %0 : vector<16x1xi32> to vector<16x32xi32>
    %3 = arith.cmpi eq, %2, %1 : vector<16x32xi32>
    %4 = arith.extui %3 : vector<16x32xi1> to vector<16x32xi32>
    %5 = arith.sitofp %4 : vector<16x32xi32> to vector<16x32xf32>
    %c0_1 = arith.constant 0 : index
    %c0_2 = arith.constant 0 : index
    %6 = vector.load %arg1[%c0_1, %c0_2] : memref<32x32xf32, #tpu.memory_space<vmem>>, vector<32x32xf32>
    %cst = arith.constant dense<0.000000e+00> : vector<16x32xf32>
    %7 = tpu.matmul %5, %6, %cst {dimension_numbers = #tpu.dot_dimension_numbers<[1], [0], [0], [1], [0, 0, 1, 1], [], []>} : vector<16x32xf32>, vector<32x32xf32>, vector<16x32xf32> -> vector<16x32xf32>
    %c0_3 = arith.constant 0 : index
    %c0_4 = arith.constant 0 : index
    %8 = vector.load %arg2[%c0_3, %c0_4] : memref<8x32xf32, #tpu.memory_space<vmem>>, vector<8x32xf32>
    %9 = tpu.concatenate %8, %8 in 0 : vector<8x32xf32>, vector<8x32xf32> -> vector<16x32xf32>
    %10 = arith.addf %7, %9 : vector<16x32xf32>
    %c0_5 = arith.constant 0 : index
    %c0_6 = arith.constant 0 : index
    %c0_7 = arith.constant 0 : index
    %11 = vector.load %arg3[%c0_5, %c0_6, %c0_7] : memref<2x32x96xf32, #tpu.memory_space<vmem>>, vector<1x32x96xf32>
    %12 = vector.shape_cast %11 : vector<1x32x96xf32> to vector<32x96xf32>
    %cst_8 = arith.constant dense<0.000000e+00> : vector<16x96xf32>
    %13 = tpu.matmul %10, %12, %cst_8 {dimension_numbers = #tpu.dot_dimension_numbers<[1], [0], [0], [1], [0, 0, 1, 1], [], []>} : vector<16x32xf32>, vector<32x96xf32>, vector<16x96xf32> -> vector<16x96xf32>
    %c0_9 = arith.constant 0 : index
    %c0_10 = arith.constant 0 : index
    %c0_11 = arith.constant 0 : index
    %14 = vector.load %arg4[%c0_9, %c0_10, %c0_11] : memref<2x1x96xf32, #tpu.memory_space<vmem>>, vector<1x1x96xf32>
    %15 = vector.shape_cast %14 : vector<1x1x96xf32> to vector<1x96xf32>
    %16 = vector.broadcast %15 : vector<1x96xf32> to vector<16x96xf32>
    %17 = arith.addf %13, %16 : vector<16x96xf32>
    %18 = vector.extract_strided_slice %17 {offsets = [0, 0], sizes = [16, 32], strides = [1, 1]} : vector<16x96xf32> to vector<16x32xf32>
    %19 = vector.extract_strided_slice %17 {offsets = [0, 32], sizes = [16, 32], strides = [1, 1]} : vector<16x96xf32> to vector<16x32xf32>
    %20 = vector.extract_strided_slice %17 {offsets = [0, 64], sizes = [16, 32], strides = [1, 1]} : vector<16x96xf32> to vector<16x32xf32>
    %c0_12 = arith.constant 0 : index
    %c0_13 = arith.constant 0 : index
    %c0_14 = arith.constant 0 : index
    %21 = vector.load %arg5[%c0_12, %c0_13, %c0_14] : memref<2x32x32xf32, #tpu.memory_space<vmem>>, vector<1x32x32xf32>
    %22 = vector.shape_cast %21 : vector<1x32x32xf32> to vector<32x32xf32>
    %cst_15 = arith.constant 0.000000e+00 : f32
    %23 = vector.broadcast %cst_15 : f32 to vector<16x32xf32>
    %24 = vector.extract_strided_slice %18 {offsets = [0, 0], sizes = [8, 8], strides = [1, 1]} : vector<16x32xf32> to vector<8x8xf32>
    %25 = vector.extract_strided_slice %19 {offsets = [0, 0], sizes = [8, 8], strides = [1, 1]} : vector<16x32xf32> to vector<8x8xf32>
    %26 = vector.extract_strided_slice %20 {offsets = [0, 0], sizes = [8, 8], strides = [1, 1]} : vector<16x32xf32> to vector<8x8xf32>
    %cst_16 = arith.constant dense<0.000000e+00> : vector<8x8xf32>
    %27 = tpu.matmul %24, %25, %cst_16 {dimension_numbers = #tpu.dot_dimension_numbers<[1], [1], [0], [0], [0, 0, 1, 0], [], []>} : vector<8x8xf32>, vector<8x8xf32>, vector<8x8xf32> -> vector<8x8xf32>
    %cst_17 = arith.constant 0.353553385 : f32
    %28 = vector.broadcast %cst_17 : f32 to vector<8x8xf32>
    %29 = arith.mulf %27, %28 : vector<8x8xf32>
    %cst_18 = arith.constant dense<0xFF800000> : vector<8xf32>
    %30 = vector.multi_reduction <maximumf>, %29, %cst_18 [1] : vector<8x8xf32> to vector<8xf32>
    %31 = vector.shape_cast %30 : vector<8xf32> to vector<8x1xf32>
    %32 = vector.broadcast %31 : vector<8x1xf32> to vector<8x8xf32>
    %33 = arith.subf %29, %32 : vector<8x8xf32>
    %34 = math.exp %33 : vector<8x8xf32>
    %cst_19 = arith.constant dense<0.000000e+00> : vector<8xf32>
    %35 = vector.multi_reduction <add>, %34, %cst_19 [1] : vector<8x8xf32> to vector<8xf32>
    %36 = vector.shape_cast %35 : vector<8xf32> to vector<8x1xf32>
    %37 = tpu.reciprocal %36 {approx = true} : vector<8x1xf32> -> vector<8x1xf32>
    %38 = vector.broadcast %37 : vector<8x1xf32> to vector<8x8xf32>
    %39 = arith.mulf %34, %38 : vector<8x8xf32>
    %cst_20 = arith.constant dense<0.000000e+00> : vector<8x8xf32>
    %40 = tpu.matmul %39, %26, %cst_20 {dimension_numbers = #tpu.dot_dimension_numbers<[1], [0], [0], [1], [0, 0, 1, 1], [], []>} : vector<8x8xf32>, vector<8x8xf32>, vector<8x8xf32> -> vector<8x8xf32>
    %41 = vector.extract_strided_slice %18 {offsets = [8, 0], sizes = [8, 8], strides = [1, 1]} : vector<16x32xf32> to vector<8x8xf32>
    %42 = vector.extract_strided_slice %19 {offsets = [8, 0], sizes = [8, 8], strides = [1, 1]} : vector<16x32xf32> to vector<8x8xf32>
    %43 = vector.extract_strided_slice %20 {offsets = [8, 0], sizes = [8, 8], strides = [1, 1]} : vector<16x32xf32> to vector<8x8xf32>
    %cst_21 = arith.constant dense<0.000000e+00> : vector<8x8xf32>
    %44 = tpu.matmul %41, %42, %cst_21 {dimension_numbers = #tpu.dot_dimension_numbers<[1], [1], [0], [0], [0, 0, 1, 0], [], []>} : vector<8x8xf32>, vector<8x8xf32>, vector<8x8xf32> -> vector<8x8xf32>
    %cst_22 = arith.constant 0.353553385 : f32
    %45 = vector.broadcast %cst_22 : f32 to vector<8x8xf32>
    %46 = arith.mulf %44, %45 : vector<8x8xf32>
    %cst_23 = arith.constant dense<0xFF800000> : vector<8xf32>
    %47 = vector.multi_reduction <maximumf>, %46, %cst_23 [1] : vector<8x8xf32> to vector<8xf32>
    %48 = vector.shape_cast %47 : vector<8xf32> to vector<8x1xf32>
    %49 = vector.broadcast %48 : vector<8x1xf32> to vector<8x8xf32>
    %50 = arith.subf %46, %49 : vector<8x8xf32>
    %51 = math.exp %50 : vector<8x8xf32>
    %cst_24 = arith.constant dense<0.000000e+00> : vector<8xf32>
    %52 = vector.multi_reduction <add>, %51, %cst_24 [1] : vector<8x8xf32> to vector<8xf32>
    %53 = vector.shape_cast %52 : vector<8xf32> to vector<8x1xf32>
    %54 = tpu.reciprocal %53 {approx = true} : vector<8x1xf32> -> vector<8x1xf32>
    %55 = vector.broadcast %54 : vector<8x1xf32> to vector<8x8xf32>
    %56 = arith.mulf %51, %55 : vector<8x8xf32>
    %cst_25 = arith.constant dense<0.000000e+00> : vector<8x8xf32>
    %57 = tpu.matmul %56, %43, %cst_25 {dimension_numbers = #tpu.dot_dimension_numbers<[1], [0], [0], [1], [0, 0, 1, 1], [], []>} : vector<8x8xf32>, vector<8x8xf32>, vector<8x8xf32> -> vector<8x8xf32>
    %58 = tpu.concatenate %40, %57 in 0 : vector<8x8xf32>, vector<8x8xf32> -> vector<16x8xf32>
    %59 = vector.extract_strided_slice %22 {offsets = [0, 0], sizes = [8, 32], strides = [1, 1]} : vector<32x32xf32> to vector<8x32xf32>
    %cst_26 = arith.constant dense<0.000000e+00> : vector<16x32xf32>
    %60 = tpu.matmul %58, %59, %cst_26 {dimension_numbers = #tpu.dot_dimension_numbers<[1], [0], [0], [1], [0, 0, 1, 1], [], []>} : vector<16x8xf32>, vector<8x32xf32>, vector<16x32xf32> -> vector<16x32xf32>
    %61 = arith.addf %23, %60 : vector<16x32xf32>
    %62 = vector.extract_strided_slice %18 {offsets = [0, 8], sizes = [8, 8], strides = [1, 1]} : vector<16x32xf32> to vector<8x8xf32>
    %63 = vector.extract_strided_slice %19 {offsets = [0, 8], sizes = [8, 8], strides = [1, 1]} : vector<16x32xf32> to vector<8x8xf32>
    %64 = vector.extract_strided_slice %20 {offsets = [0, 8], sizes = [8, 8], strides = [1, 1]} : vector<16x32xf32> to vector<8x8xf32>
    %cst_27 = arith.constant dense<0.000000e+00> : vector<8x8xf32>
    %65 = tpu.matmul %62, %63, %cst_27 {dimension_numbers = #tpu.dot_dimension_numbers<[1], [1], [0], [0], [0, 0, 1, 0], [], []>} : vector<8x8xf32>, vector<8x8xf32>, vector<8x8xf32> -> vector<8x8xf32>
    %cst_28 = arith.constant 0.353553385 : f32
    %66 = vector.broadcast %cst_28 : f32 to vector<8x8xf32>
    %67 = arith.mulf %65, %66 : vector<8x8xf32>
    %cst_29 = arith.constant dense<0xFF800000> : vector<8xf32>
    %68 = vector.multi_reduction <maximumf>, %67, %cst_29 [1] : vector<8x8xf32> to vector<8xf32>
    %69 = vector.shape_cast %68 : vector<8xf32> to vector<8x1xf32>
    %70 = vector.broadcast %69 : vector<8x1xf32> to vector<8x8xf32>
    %71 = arith.subf %67, %70 : vector<8x8xf32>
    %72 = math.exp %71 : vector<8x8xf32>
    %cst_30 = arith.constant dense<0.000000e+00> : vector<8xf32>
    %73 = vector.multi_reduction <add>, %72, %cst_30 [1] : vector<8x8xf32> to vector<8xf32>
    %74 = vector.shape_cast %73 : vector<8xf32> to vector<8x1xf32>
    %75 = tpu.reciprocal %74 {approx = true} : vector<8x1xf32> -> vector<8x1xf32>
    %76 = vector.broadcast %75 : vector<8x1xf32> to vector<8x8xf32>
    %77 = arith.mulf %72, %76 : vector<8x8xf32>
    %cst_31 = arith.constant dense<0.000000e+00> : vector<8x8xf32>
    %78 = tpu.matmul %77, %64, %cst_31 {dimension_numbers = #tpu.dot_dimension_numbers<[1], [0], [0], [1], [0, 0, 1, 1], [], []>} : vector<8x8xf32>, vector<8x8xf32>, vector<8x8xf32> -> vector<8x8xf32>
    %79 = vector.extract_strided_slice %18 {offsets = [8, 8], sizes = [8, 8], strides = [1, 1]} : vector<16x32xf32> to vector<8x8xf32>
    %80 = vector.extract_strided_slice %19 {offsets = [8, 8], sizes = [8, 8], strides = [1, 1]} : vector<16x32xf32> to vector<8x8xf32>
    %81 = vector.extract_strided_slice %20 {offsets = [8, 8], sizes = [8, 8], strides = [1, 1]} : vector<16x32xf32> to vector<8x8xf32>
    %cst_32 = arith.constant dense<0.000000e+00> : vector<8x8xf32>
    %82 = tpu.matmul %79, %80, %cst_32 {dimension_numbers = #tpu.dot_dimension_numbers<[1], [1], [0], [0], [0, 0, 1, 0], [], []>} : vector<8x8xf32>, vector<8x8xf32>, vector<8x8xf32> -> vector<8x8xf32>
    %cst_33 = arith.constant 0.353553385 : f32
    %83 = vector.broadcast %cst_33 : f32 to vector<8x8xf32>
    %84 = arith.mulf %82, %83 : vector<8x8xf32>
    %cst_34 = arith.constant dense<0xFF800000> : vector<8xf32>
    %85 = vector.multi_reduction <maximumf>, %84, %cst_34 [1] : vector<8x8xf32> to vector<8xf32>
    %86 = vector.shape_cast %85 : vector<8xf32> to vector<8x1xf32>
    %87 = vector.broadcast %86 : vector<8x1xf32> to vector<8x8xf32>
    %88 = arith.subf %84, %87 : vector<8x8xf32>
    %89 = math.exp %88 : vector<8x8xf32>
    %cst_35 = arith.constant dense<0.000000e+00> : vector<8xf32>
    %90 = vector.multi_reduction <add>, %89, %cst_35 [1] : vector<8x8xf32> to vector<8xf32>
    %91 = vector.shape_cast %90 : vector<8xf32> to vector<8x1xf32>
    %92 = tpu.reciprocal %91 {approx = true} : vector<8x1xf32> -> vector<8x1xf32>
    %93 = vector.broadcast %92 : vector<8x1xf32> to vector<8x8xf32>
    %94 = arith.mulf %89, %93 : vector<8x8xf32>
    %cst_36 = arith.constant dense<0.000000e+00> : vector<8x8xf32>
    %95 = tpu.matmul %94, %81, %cst_36 {dimension_numbers = #tpu.dot_dimension_numbers<[1], [0], [0], [1], [0, 0, 1, 1], [], []>} : vector<8x8xf32>, vector<8x8xf32>, vector<8x8xf32> -> vector<8x8xf32>
    %96 = tpu.concatenate %78, %95 in 0 : vector<8x8xf32>, vector<8x8xf32> -> vector<16x8xf32>
    %97 = vector.extract_strided_slice %22 {offsets = [8, 0], sizes = [8, 32], strides = [1, 1]} : vector<32x32xf32> to vector<8x32xf32>
    %cst_37 = arith.constant dense<0.000000e+00> : vector<16x32xf32>
    %98 = tpu.matmul %96, %97, %cst_37 {dimension_numbers = #tpu.dot_dimension_numbers<[1], [0], [0], [1], [0, 0, 1, 1], [], []>} : vector<16x8xf32>, vector<8x32xf32>, vector<16x32xf32> -> vector<16x32xf32>
    %99 = arith.addf %61, %98 : vector<16x32xf32>
    %100 = vector.extract_strided_slice %18 {offsets = [0, 16], sizes = [8, 8], strides = [1, 1]} : vector<16x32xf32> to vector<8x8xf32>
    %101 = vector.extract_strided_slice %19 {offsets = [0, 16], sizes = [8, 8], strides = [1, 1]} : vector<16x32xf32> to vector<8x8xf32>
    %102 = vector.extract_strided_slice %20 {offsets = [0, 16], sizes = [8, 8], strides = [1, 1]} : vector<16x32xf32> to vector<8x8xf32>
    %cst_38 = arith.constant dense<0.000000e+00> : vector<8x8xf32>
    %103 = tpu.matmul %100, %101, %cst_38 {dimension_numbers = #tpu.dot_dimension_numbers<[1], [1], [0], [0], [0, 0, 1, 0], [], []>} : vector<8x8xf32>, vector<8x8xf32>, vector<8x8xf32> -> vector<8x8xf32>
    %cst_39 = arith.constant 0.353553385 : f32
    %104 = vector.broadcast %cst_39 : f32 to vector<8x8xf32>
    %105 = arith.mulf %103, %104 : vector<8x8xf32>
    %cst_40 = arith.constant dense<0xFF800000> : vector<8xf32>
    %106 = vector.multi_reduction <maximumf>, %105, %cst_40 [1] : vector<8x8xf32> to vector<8xf32>
    %107 = vector.shape_cast %106 : vector<8xf32> to vector<8x1xf32>
    %108 = vector.broadcast %107 : vector<8x1xf32> to vector<8x8xf32>
    %109 = arith.subf %105, %108 : vector<8x8xf32>
    %110 = math.exp %109 : vector<8x8xf32>
    %cst_41 = arith.constant dense<0.000000e+00> : vector<8xf32>
    %111 = vector.multi_reduction <add>, %110, %cst_41 [1] : vector<8x8xf32> to vector<8xf32>
    %112 = vector.shape_cast %111 : vector<8xf32> to vector<8x1xf32>
    %113 = tpu.reciprocal %112 {approx = true} : vector<8x1xf32> -> vector<8x1xf32>
    %114 = vector.broadcast %113 : vector<8x1xf32> to vector<8x8xf32>
    %115 = arith.mulf %110, %114 : vector<8x8xf32>
    %cst_42 = arith.constant dense<0.000000e+00> : vector<8x8xf32>
    %116 = tpu.matmul %115, %102, %cst_42 {dimension_numbers = #tpu.dot_dimension_numbers<[1], [0], [0], [1], [0, 0, 1, 1], [], []>} : vector<8x8xf32>, vector<8x8xf32>, vector<8x8xf32> -> vector<8x8xf32>
    %117 = vector.extract_strided_slice %18 {offsets = [8, 16], sizes = [8, 8], strides = [1, 1]} : vector<16x32xf32> to vector<8x8xf32>
    %118 = vector.extract_strided_slice %19 {offsets = [8, 16], sizes = [8, 8], strides = [1, 1]} : vector<16x32xf32> to vector<8x8xf32>
    %119 = vector.extract_strided_slice %20 {offsets = [8, 16], sizes = [8, 8], strides = [1, 1]} : vector<16x32xf32> to vector<8x8xf32>
    %cst_43 = arith.constant dense<0.000000e+00> : vector<8x8xf32>
    %120 = tpu.matmul %117, %118, %cst_43 {dimension_numbers = #tpu.dot_dimension_numbers<[1], [1], [0], [0], [0, 0, 1, 0], [], []>} : vector<8x8xf32>, vector<8x8xf32>, vector<8x8xf32> -> vector<8x8xf32>
    %cst_44 = arith.constant 0.353553385 : f32
    %121 = vector.broadcast %cst_44 : f32 to vector<8x8xf32>
    %122 = arith.mulf %120, %121 : vector<8x8xf32>
    %cst_45 = arith.constant dense<0xFF800000> : vector<8xf32>
    %123 = vector.multi_reduction <maximumf>, %122, %cst_45 [1] : vector<8x8xf32> to vector<8xf32>
    %124 = vector.shape_cast %123 : vector<8xf32> to vector<8x1xf32>
    %125 = vector.broadcast %124 : vector<8x1xf32> to vector<8x8xf32>
    %126 = arith.subf %122, %125 : vector<8x8xf32>
    %127 = math.exp %126 : vector<8x8xf32>
    %cst_46 = arith.constant dense<0.000000e+00> : vector<8xf32>
    %128 = vector.multi_reduction <add>, %127, %cst_46 [1] : vector<8x8xf32> to vector<8xf32>
    %129 = vector.shape_cast %128 : vector<8xf32> to vector<8x1xf32>
    %130 = tpu.reciprocal %129 {approx = true} : vector<8x1xf32> -> vector<8x1xf32>
    %131 = vector.broadcast %130 : vector<8x1xf32> to vector<8x8xf32>
    %132 = arith.mulf %127, %131 : vector<8x8xf32>
    %cst_47 = arith.constant dense<0.000000e+00> : vector<8x8xf32>
    %133 = tpu.matmul %132, %119, %cst_47 {dimension_numbers = #tpu.dot_dimension_numbers<[1], [0], [0], [1], [0, 0, 1, 1], [], []>} : vector<8x8xf32>, vector<8x8xf32>, vector<8x8xf32> -> vector<8x8xf32>
    %134 = tpu.concatenate %116, %133 in 0 : vector<8x8xf32>, vector<8x8xf32> -> vector<16x8xf32>
    %135 = vector.extract_strided_slice %22 {offsets = [16, 0], sizes = [8, 32], strides = [1, 1]} : vector<32x32xf32> to vector<8x32xf32>
    %cst_48 = arith.constant dense<0.000000e+00> : vector<16x32xf32>
    %136 = tpu.matmul %134, %135, %cst_48 {dimension_numbers = #tpu.dot_dimension_numbers<[1], [0], [0], [1], [0, 0, 1, 1], [], []>} : vector<16x8xf32>, vector<8x32xf32>, vector<16x32xf32> -> vector<16x32xf32>
    %137 = arith.addf %99, %136 : vector<16x32xf32>
    %138 = vector.extract_strided_slice %18 {offsets = [0, 24], sizes = [8, 8], strides = [1, 1]} : vector<16x32xf32> to vector<8x8xf32>
    %139 = vector.extract_strided_slice %19 {offsets = [0, 24], sizes = [8, 8], strides = [1, 1]} : vector<16x32xf32> to vector<8x8xf32>
    %140 = vector.extract_strided_slice %20 {offsets = [0, 24], sizes = [8, 8], strides = [1, 1]} : vector<16x32xf32> to vector<8x8xf32>
    %cst_49 = arith.constant dense<0.000000e+00> : vector<8x8xf32>
    %141 = tpu.matmul %138, %139, %cst_49 {dimension_numbers = #tpu.dot_dimension_numbers<[1], [1], [0], [0], [0, 0, 1, 0], [], []>} : vector<8x8xf32>, vector<8x8xf32>, vector<8x8xf32> -> vector<8x8xf32>
    %cst_50 = arith.constant 0.353553385 : f32
    %142 = vector.broadcast %cst_50 : f32 to vector<8x8xf32>
    %143 = arith.mulf %141, %142 : vector<8x8xf32>
    %cst_51 = arith.constant dense<0xFF800000> : vector<8xf32>
    %144 = vector.multi_reduction <maximumf>, %143, %cst_51 [1] : vector<8x8xf32> to vector<8xf32>
    %145 = vector.shape_cast %144 : vector<8xf32> to vector<8x1xf32>
    %146 = vector.broadcast %145 : vector<8x1xf32> to vector<8x8xf32>
    %147 = arith.subf %143, %146 : vector<8x8xf32>
    %148 = math.exp %147 : vector<8x8xf32>
    %cst_52 = arith.constant dense<0.000000e+00> : vector<8xf32>
    %149 = vector.multi_reduction <add>, %148, %cst_52 [1] : vector<8x8xf32> to vector<8xf32>
    %150 = vector.shape_cast %149 : vector<8xf32> to vector<8x1xf32>
    %151 = tpu.reciprocal %150 {approx = true} : vector<8x1xf32> -> vector<8x1xf32>
    %152 = vector.broadcast %151 : vector<8x1xf32> to vector<8x8xf32>
    %153 = arith.mulf %148, %152 : vector<8x8xf32>
    %cst_53 = arith.constant dense<0.000000e+00> : vector<8x8xf32>
    %154 = tpu.matmul %153, %140, %cst_53 {dimension_numbers = #tpu.dot_dimension_numbers<[1], [0], [0], [1], [0, 0, 1, 1], [], []>} : vector<8x8xf32>, vector<8x8xf32>, vector<8x8xf32> -> vector<8x8xf32>
    %155 = vector.extract_strided_slice %18 {offsets = [8, 24], sizes = [8, 8], strides = [1, 1]} : vector<16x32xf32> to vector<8x8xf32>
    %156 = vector.extract_strided_slice %19 {offsets = [8, 24], sizes = [8, 8], strides = [1, 1]} : vector<16x32xf32> to vector<8x8xf32>
    %157 = vector.extract_strided_slice %20 {offsets = [8, 24], sizes = [8, 8], strides = [1, 1]} : vector<16x32xf32> to vector<8x8xf32>
    %cst_54 = arith.constant dense<0.000000e+00> : vector<8x8xf32>
    %158 = tpu.matmul %155, %156, %cst_54 {dimension_numbers = #tpu.dot_dimension_numbers<[1], [1], [0], [0], [0, 0, 1, 0], [], []>} : vector<8x8xf32>, vector<8x8xf32>, vector<8x8xf32> -> vector<8x8xf32>
    %cst_55 = arith.constant 0.353553385 : f32
    %159 = vector.broadcast %cst_55 : f32 to vector<8x8xf32>
    %160 = arith.mulf %158, %159 : vector<8x8xf32>
    %cst_56 = arith.constant dense<0xFF800000> : vector<8xf32>
    %161 = vector.multi_reduction <maximumf>, %160, %cst_56 [1] : vector<8x8xf32> to vector<8xf32>
    %162 = vector.shape_cast %161 : vector<8xf32> to vector<8x1xf32>
    %163 = vector.broadcast %162 : vector<8x1xf32> to vector<8x8xf32>
    %164 = arith.subf %160, %163 : vector<8x8xf32>
    %165 = math.exp %164 : vector<8x8xf32>
    %cst_57 = arith.constant dense<0.000000e+00> : vector<8xf32>
    %166 = vector.multi_reduction <add>, %165, %cst_57 [1] : vector<8x8xf32> to vector<8xf32>
    %167 = vector.shape_cast %166 : vector<8xf32> to vector<8x1xf32>
    %168 = tpu.reciprocal %167 {approx = true} : vector<8x1xf32> -> vector<8x1xf32>
    %169 = vector.broadcast %168 : vector<8x1xf32> to vector<8x8xf32>
    %170 = arith.mulf %165, %169 : vector<8x8xf32>
    %cst_58 = arith.constant dense<0.000000e+00> : vector<8x8xf32>
    %171 = tpu.matmul %170, %157, %cst_58 {dimension_numbers = #tpu.dot_dimension_numbers<[1], [0], [0], [1], [0, 0, 1, 1], [], []>} : vector<8x8xf32>, vector<8x8xf32>, vector<8x8xf32> -> vector<8x8xf32>
    %172 = tpu.concatenate %154, %171 in 0 : vector<8x8xf32>, vector<8x8xf32> -> vector<16x8xf32>
    %173 = vector.extract_strided_slice %22 {offsets = [24, 0], sizes = [8, 32], strides = [1, 1]} : vector<32x32xf32> to vector<8x32xf32>
    %cst_59 = arith.constant dense<0.000000e+00> : vector<16x32xf32>
    %174 = tpu.matmul %172, %173, %cst_59 {dimension_numbers = #tpu.dot_dimension_numbers<[1], [0], [0], [1], [0, 0, 1, 1], [], []>} : vector<16x8xf32>, vector<8x32xf32>, vector<16x32xf32> -> vector<16x32xf32>
    %175 = arith.addf %137, %174 : vector<16x32xf32>
    %c0_60 = arith.constant 0 : index
    %c0_61 = arith.constant 0 : index
    %c0_62 = arith.constant 0 : index
    %176 = vector.load %arg6[%c0_60, %c0_61, %c0_62] : memref<2x1x32xf32, #tpu.memory_space<vmem>>, vector<1x1x32xf32>
    %177 = vector.shape_cast %176 : vector<1x1x32xf32> to vector<1x32xf32>
    %178 = vector.broadcast %177 : vector<1x32xf32> to vector<16x32xf32>
    %179 = arith.addf %175, %178 : vector<16x32xf32>
    %c0_63 = arith.constant 0 : index
    %c0_64 = arith.constant 0 : index
    %c0_65 = arith.constant 0 : index
    %180 = vector.load %arg7[%c0_63, %c0_64, %c0_65] : memref<2x2x32xf32, #tpu.memory_space<vmem>>, vector<1x2x32xf32>
    %181 = vector.shape_cast %180 : vector<1x2x32xf32> to vector<2x32xf32>
    %182 = arith.addf %10, %179 : vector<16x32xf32>
    %183 = vector.extract_strided_slice %181 {offsets = [0, 0], sizes = [1, 32], strides = [1, 1]} : vector<2x32xf32> to vector<1x32xf32>
    %184 = vector.extract_strided_slice %181 {offsets = [1, 0], sizes = [1, 32], strides = [1, 1]} : vector<2x32xf32> to vector<1x32xf32>
    %cst_66 = arith.constant dense<0.000000e+00> : vector<16xf32>
    %185 = vector.multi_reduction <add>, %182, %cst_66 [1] : vector<16x32xf32> to vector<16xf32>
    %186 = vector.shape_cast %185 : vector<16xf32> to vector<16x1xf32>
    %cst_67 = arith.constant 3.200000e+01 : f32
    %187 = vector.broadcast %cst_67 : f32 to vector<16x1xf32>
    %188 = arith.divf %186, %187 : vector<16x1xf32>
    %189 = vector.broadcast %188 : vector<16x1xf32> to vector<16x32xf32>
    %190 = arith.subf %182, %189 : vector<16x32xf32>
    %191 = arith.mulf %190, %190 : vector<16x32xf32>
    %cst_68 = arith.constant dense<0.000000e+00> : vector<16xf32>
    %192 = vector.multi_reduction <add>, %191, %cst_68 [1] : vector<16x32xf32> to vector<16xf32>
    %193 = vector.shape_cast %192 : vector<16xf32> to vector<16x1xf32>
    %cst_69 = arith.constant 3.200000e+01 : f32
    %194 = vector.broadcast %cst_69 : f32 to vector<16x1xf32>
    %195 = arith.divf %193, %194 : vector<16x1xf32>
    %196 = vector.broadcast %188 : vector<16x1xf32> to vector<16x32xf32>
    %197 = arith.subf %182, %196 : vector<16x32xf32>
    %cst_70 = arith.constant 9.99999974E-6 : f32
    %198 = vector.broadcast %cst_70 : f32 to vector<16x1xf32>
    %199 = arith.addf %195, %198 : vector<16x1xf32>
    %200 = math.rsqrt %199 : vector<16x1xf32>
    %201 = vector.broadcast %200 : vector<16x1xf32> to vector<16x32xf32>
    %202 = arith.mulf %197, %201 : vector<16x32xf32>
    %203 = vector.broadcast %183 : vector<1x32xf32> to vector<16x32xf32>
    %204 = arith.mulf %202, %203 : vector<16x32xf32>
    %205 = vector.broadcast %184 : vector<1x32xf32> to vector<16x32xf32>
    %206 = arith.addf %204, %205 : vector<16x32xf32>
    %c0_71 = arith.constant 0 : index
    %c0_72 = arith.constant 0 : index
    %c0_73 = arith.constant 0 : index
    %207 = vector.load %arg8[%c0_71, %c0_72, %c0_73] : memref<2x32x64xf32, #tpu.memory_space<vmem>>, vector<1x32x64xf32>
    %208 = vector.shape_cast %207 : vector<1x32x64xf32> to vector<32x64xf32>
    %cst_74 = arith.constant dense<0.000000e+00> : vector<16x64xf32>
    %209 = tpu.matmul %206, %208, %cst_74 {dimension_numbers = #tpu.dot_dimension_numbers<[1], [0], [0], [1], [0, 0, 1, 1], [], []>} : vector<16x32xf32>, vector<32x64xf32>, vector<16x64xf32> -> vector<16x64xf32>
    %c0_75 = arith.constant 0 : index
    %c0_76 = arith.constant 0 : index
    %c0_77 = arith.constant 0 : index
    %210 = vector.load %arg9[%c0_75, %c0_76, %c0_77] : memref<2x1x64xf32, #tpu.memory_space<vmem>>, vector<1x1x64xf32>
    %211 = vector.shape_cast %210 : vector<1x1x64xf32> to vector<1x64xf32>
    %212 = vector.broadcast %211 : vector<1x64xf32> to vector<16x64xf32>
    %213 = arith.addf %209, %212 : vector<16x64xf32>
    %cst_78 = arith.constant dense<0xFF800000> : vector<16xf32>
    %214 = vector.multi_reduction <maximumf>, %213, %cst_78 [1] : vector<16x64xf32> to vector<16xf32>
    %215 = vector.shape_cast %214 : vector<16xf32> to vector<16x1xf32>
    %216 = vector.broadcast %215 : vector<16x1xf32> to vector<16x64xf32>
    %217 = arith.subf %213, %216 : vector<16x64xf32>
    %218 = math.exp %217 : vector<16x64xf32>
    %cst_79 = arith.constant dense<0.000000e+00> : vector<16xf32>
    %219 = vector.multi_reduction <add>, %218, %cst_79 [1] : vector<16x64xf32> to vector<16xf32>
    %220 = vector.shape_cast %219 : vector<16xf32> to vector<16x1xf32>
    %221 = tpu.reciprocal %220 {approx = true} : vector<16x1xf32> -> vector<16x1xf32>
    %222 = vector.broadcast %221 : vector<16x1xf32> to vector<16x64xf32>
    %223 = arith.mulf %218, %222 : vector<16x64xf32>
    %c0_80 = arith.constant 0 : index
    %c0_81 = arith.constant 0 : index
    %c0_82 = arith.constant 0 : index
    %224 = vector.load %arg10[%c0_80, %c0_81, %c0_82] : memref<2x64x32xf32, #tpu.memory_space<vmem>>, vector<1x64x32xf32>
    %225 = vector.shape_cast %224 : vector<1x64x32xf32> to vector<64x32xf32>
    %cst_83 = arith.constant dense<0.000000e+00> : vector<16x32xf32>
    %226 = tpu.matmul %223, %225, %cst_83 {dimension_numbers = #tpu.dot_dimension_numbers<[1], [0], [0], [1], [0, 0, 1, 1], [], []>} : vector<16x64xf32>, vector<64x32xf32>, vector<16x32xf32> -> vector<16x32xf32>
    %c0_84 = arith.constant 0 : index
    %c0_85 = arith.constant 0 : index
    %c0_86 = arith.constant 0 : index
    %227 = vector.load %arg11[%c0_84, %c0_85, %c0_86] : memref<2x2x32xf32, #tpu.memory_space<vmem>>, vector<1x2x32xf32>
    %228 = vector.shape_cast %227 : vector<1x2x32xf32> to vector<2x32xf32>
    %229 = arith.addf %206, %226 : vector<16x32xf32>
    %230 = vector.extract_strided_slice %228 {offsets = [0, 0], sizes = [1, 32], strides = [1, 1]} : vector<2x32xf32> to vector<1x32xf32>
    %231 = vector.extract_strided_slice %228 {offsets = [1, 0], sizes = [1, 32], strides = [1, 1]} : vector<2x32xf32> to vector<1x32xf32>
    %cst_87 = arith.constant dense<0.000000e+00> : vector<16xf32>
    %232 = vector.multi_reduction <add>, %229, %cst_87 [1] : vector<16x32xf32> to vector<16xf32>
    %233 = vector.shape_cast %232 : vector<16xf32> to vector<16x1xf32>
    %cst_88 = arith.constant 3.200000e+01 : f32
    %234 = vector.broadcast %cst_88 : f32 to vector<16x1xf32>
    %235 = arith.divf %233, %234 : vector<16x1xf32>
    %236 = vector.broadcast %235 : vector<16x1xf32> to vector<16x32xf32>
    %237 = arith.subf %229, %236 : vector<16x32xf32>
    %238 = arith.mulf %237, %237 : vector<16x32xf32>
    %cst_89 = arith.constant dense<0.000000e+00> : vector<16xf32>
    %239 = vector.multi_reduction <add>, %238, %cst_89 [1] : vector<16x32xf32> to vector<16xf32>
    %240 = vector.shape_cast %239 : vector<16xf32> to vector<16x1xf32>
    %cst_90 = arith.constant 3.200000e+01 : f32
    %241 = vector.broadcast %cst_90 : f32 to vector<16x1xf32>
    %242 = arith.divf %240, %241 : vector<16x1xf32>
    %243 = vector.broadcast %235 : vector<16x1xf32> to vector<16x32xf32>
    %244 = arith.subf %229, %243 : vector<16x32xf32>
    %cst_91 = arith.constant 9.99999974E-6 : f32
    %245 = vector.broadcast %cst_91 : f32 to vector<16x1xf32>
    %246 = arith.addf %242, %245 : vector<16x1xf32>
    %247 = math.rsqrt %246 : vector<16x1xf32>
    %248 = vector.broadcast %247 : vector<16x1xf32> to vector<16x32xf32>
    %249 = arith.mulf %244, %248 : vector<16x32xf32>
    %250 = vector.broadcast %230 : vector<1x32xf32> to vector<16x32xf32>
    %251 = arith.mulf %249, %250 : vector<16x32xf32>
    %252 = vector.broadcast %231 : vector<1x32xf32> to vector<16x32xf32>
    %253 = arith.addf %251, %252 : vector<16x32xf32>
    %c1 = arith.constant 1 : index
    %c0_92 = arith.constant 0 : index
    %c0_93 = arith.constant 0 : index
    %254 = vector.load %arg3[%c1, %c0_92, %c0_93] : memref<2x32x96xf32, #tpu.memory_space<vmem>>, vector<1x32x96xf32>
    %255 = vector.shape_cast %254 : vector<1x32x96xf32> to vector<32x96xf32>
    %cst_94 = arith.constant dense<0.000000e+00> : vector<16x96xf32>
    %256 = tpu.matmul %253, %255, %cst_94 {dimension_numbers = #tpu.dot_dimension_numbers<[1], [0], [0], [1], [0, 0, 1, 1], [], []>} : vector<16x32xf32>, vector<32x96xf32>, vector<16x96xf32> -> vector<16x96xf32>
    %c1_95 = arith.constant 1 : index
    %c0_96 = arith.constant 0 : index
    %c0_97 = arith.constant 0 : index
    %257 = vector.load %arg4[%c1_95, %c0_96, %c0_97] : memref<2x1x96xf32, #tpu.memory_space<vmem>>, vector<1x1x96xf32>
    %258 = vector.shape_cast %257 : vector<1x1x96xf32> to vector<1x96xf32>
    %259 = vector.broadcast %258 : vector<1x96xf32> to vector<16x96xf32>
    %260 = arith.addf %256, %259 : vector<16x96xf32>
    %261 = vector.extract_strided_slice %260 {offsets = [0, 0], sizes = [16, 32], strides = [1, 1]} : vector<16x96xf32> to vector<16x32xf32>
    %262 = vector.extract_strided_slice %260 {offsets = [0, 32], sizes = [16, 32], strides = [1, 1]} : vector<16x96xf32> to vector<16x32xf32>
    %263 = vector.extract_strided_slice %260 {offsets = [0, 64], sizes = [16, 32], strides = [1, 1]} : vector<16x96xf32> to vector<16x32xf32>
    %c1_98 = arith.constant 1 : index
    %c0_99 = arith.constant 0 : index
    %c0_100 = arith.constant 0 : index
    %264 = vector.load %arg5[%c1_98, %c0_99, %c0_100] : memref<2x32x32xf32, #tpu.memory_space<vmem>>, vector<1x32x32xf32>
    %265 = vector.shape_cast %264 : vector<1x32x32xf32> to vector<32x32xf32>
    %cst_101 = arith.constant 0.000000e+00 : f32
    %266 = vector.broadcast %cst_101 : f32 to vector<16x32xf32>
    %267 = vector.extract_strided_slice %261 {offsets = [0, 0], sizes = [8, 8], strides = [1, 1]} : vector<16x32xf32> to vector<8x8xf32>
    %268 = vector.extract_strided_slice %262 {offsets = [0, 0], sizes = [8, 8], strides = [1, 1]} : vector<16x32xf32> to vector<8x8xf32>
    %269 = vector.extract_strided_slice %263 {offsets = [0, 0], sizes = [8, 8], strides = [1, 1]} : vector<16x32xf32> to vector<8x8xf32>
    %cst_102 = arith.constant dense<0.000000e+00> : vector<8x8xf32>
    %270 = tpu.matmul %267, %268, %cst_102 {dimension_numbers = #tpu.dot_dimension_numbers<[1], [1], [0], [0], [0, 0, 1, 0], [], []>} : vector<8x8xf32>, vector<8x8xf32>, vector<8x8xf32> -> vector<8x8xf32>
    %cst_103 = arith.constant 0.353553385 : f32
    %271 = vector.broadcast %cst_103 : f32 to vector<8x8xf32>
    %272 = arith.mulf %270, %271 : vector<8x8xf32>
    %cst_104 = arith.constant dense<0xFF800000> : vector<8xf32>
    %273 = vector.multi_reduction <maximumf>, %272, %cst_104 [1] : vector<8x8xf32> to vector<8xf32>
    %274 = vector.shape_cast %273 : vector<8xf32> to vector<8x1xf32>
    %275 = vector.broadcast %274 : vector<8x1xf32> to vector<8x8xf32>
    %276 = arith.subf %272, %275 : vector<8x8xf32>
    %277 = math.exp %276 : vector<8x8xf32>
    %cst_105 = arith.constant dense<0.000000e+00> : vector<8xf32>
    %278 = vector.multi_reduction <add>, %277, %cst_105 [1] : vector<8x8xf32> to vector<8xf32>
    %279 = vector.shape_cast %278 : vector<8xf32> to vector<8x1xf32>
    %280 = tpu.reciprocal %279 {approx = true} : vector<8x1xf32> -> vector<8x1xf32>
    %281 = vector.broadcast %280 : vector<8x1xf32> to vector<8x8xf32>
    %282 = arith.mulf %277, %281 : vector<8x8xf32>
    %cst_106 = arith.constant dense<0.000000e+00> : vector<8x8xf32>
    %283 = tpu.matmul %282, %269, %cst_106 {dimension_numbers = #tpu.dot_dimension_numbers<[1], [0], [0], [1], [0, 0, 1, 1], [], []>} : vector<8x8xf32>, vector<8x8xf32>, vector<8x8xf32> -> vector<8x8xf32>
    %284 = vector.extract_strided_slice %261 {offsets = [8, 0], sizes = [8, 8], strides = [1, 1]} : vector<16x32xf32> to vector<8x8xf32>
    %285 = vector.extract_strided_slice %262 {offsets = [8, 0], sizes = [8, 8], strides = [1, 1]} : vector<16x32xf32> to vector<8x8xf32>
    %286 = vector.extract_strided_slice %263 {offsets = [8, 0], sizes = [8, 8], strides = [1, 1]} : vector<16x32xf32> to vector<8x8xf32>
    %cst_107 = arith.constant dense<0.000000e+00> : vector<8x8xf32>
    %287 = tpu.matmul %284, %285, %cst_107 {dimension_numbers = #tpu.dot_dimension_numbers<[1], [1], [0], [0], [0, 0, 1, 0], [], []>} : vector<8x8xf32>, vector<8x8xf32>, vector<8x8xf32> -> vector<8x8xf32>
    %cst_108 = arith.constant 0.353553385 : f32
    %288 = vector.broadcast %cst_108 : f32 to vector<8x8xf32>
    %289 = arith.mulf %287, %288 : vector<8x8xf32>
    %cst_109 = arith.constant dense<0xFF800000> : vector<8xf32>
    %290 = vector.multi_reduction <maximumf>, %289, %cst_109 [1] : vector<8x8xf32> to vector<8xf32>
    %291 = vector.shape_cast %290 : vector<8xf32> to vector<8x1xf32>
    %292 = vector.broadcast %291 : vector<8x1xf32> to vector<8x8xf32>
    %293 = arith.subf %289, %292 : vector<8x8xf32>
    %294 = math.exp %293 : vector<8x8xf32>
    %cst_110 = arith.constant dense<0.000000e+00> : vector<8xf32>
    %295 = vector.multi_reduction <add>, %294, %cst_110 [1] : vector<8x8xf32> to vector<8xf32>
    %296 = vector.shape_cast %295 : vector<8xf32> to vector<8x1xf32>
    %297 = tpu.reciprocal %296 {approx = true} : vector<8x1xf32> -> vector<8x1xf32>
    %298 = vector.broadcast %297 : vector<8x1xf32> to vector<8x8xf32>
    %299 = arith.mulf %294, %298 : vector<8x8xf32>
    %cst_111 = arith.constant dense<0.000000e+00> : vector<8x8xf32>
    %300 = tpu.matmul %299, %286, %cst_111 {dimension_numbers = #tpu.dot_dimension_numbers<[1], [0], [0], [1], [0, 0, 1, 1], [], []>} : vector<8x8xf32>, vector<8x8xf32>, vector<8x8xf32> -> vector<8x8xf32>
    %301 = tpu.concatenate %283, %300 in 0 : vector<8x8xf32>, vector<8x8xf32> -> vector<16x8xf32>
    %302 = vector.extract_strided_slice %265 {offsets = [0, 0], sizes = [8, 32], strides = [1, 1]} : vector<32x32xf32> to vector<8x32xf32>
    %cst_112 = arith.constant dense<0.000000e+00> : vector<16x32xf32>
    %303 = tpu.matmul %301, %302, %cst_112 {dimension_numbers = #tpu.dot_dimension_numbers<[1], [0], [0], [1], [0, 0, 1, 1], [], []>} : vector<16x8xf32>, vector<8x32xf32>, vector<16x32xf32> -> vector<16x32xf32>
    %304 = arith.addf %266, %303 : vector<16x32xf32>
    %305 = vector.extract_strided_slice %261 {offsets = [0, 8], sizes = [8, 8], strides = [1, 1]} : vector<16x32xf32> to vector<8x8xf32>
    %306 = vector.extract_strided_slice %262 {offsets = [0, 8], sizes = [8, 8], strides = [1, 1]} : vector<16x32xf32> to vector<8x8xf32>
    %307 = vector.extract_strided_slice %263 {offsets = [0, 8], sizes = [8, 8], strides = [1, 1]} : vector<16x32xf32> to vector<8x8xf32>
    %cst_113 = arith.constant dense<0.000000e+00> : vector<8x8xf32>
    %308 = tpu.matmul %305, %306, %cst_113 {dimension_numbers = #tpu.dot_dimension_numbers<[1], [1], [0], [0], [0, 0, 1, 0], [], []>} : vector<8x8xf32>, vector<8x8xf32>, vector<8x8xf32> -> vector<8x8xf32>
    %cst_114 = arith.constant 0.353553385 : f32
    %309 = vector.broadcast %cst_114 : f32 to vector<8x8xf32>
    %310 = arith.mulf %308, %309 : vector<8x8xf32>
    %cst_115 = arith.constant dense<0xFF800000> : vector<8xf32>
    %311 = vector.multi_reduction <maximumf>, %310, %cst_115 [1] : vector<8x8xf32> to vector<8xf32>
    %312 = vector.shape_cast %311 : vector<8xf32> to vector<8x1xf32>
    %313 = vector.broadcast %312 : vector<8x1xf32> to vector<8x8xf32>
    %314 = arith.subf %310, %313 : vector<8x8xf32>
    %315 = math.exp %314 : vector<8x8xf32>
    %cst_116 = arith.constant dense<0.000000e+00> : vector<8xf32>
    %316 = vector.multi_reduction <add>, %315, %cst_116 [1] : vector<8x8xf32> to vector<8xf32>
    %317 = vector.shape_cast %316 : vector<8xf32> to vector<8x1xf32>
    %318 = tpu.reciprocal %317 {approx = true} : vector<8x1xf32> -> vector<8x1xf32>
    %319 = vector.broadcast %318 : vector<8x1xf32> to vector<8x8xf32>
    %320 = arith.mulf %315, %319 : vector<8x8xf32>
    %cst_117 = arith.constant dense<0.000000e+00> : vector<8x8xf32>
    %321 = tpu.matmul %320, %307, %cst_117 {dimension_numbers = #tpu.dot_dimension_numbers<[1], [0], [0], [1], [0, 0, 1, 1], [], []>} : vector<8x8xf32>, vector<8x8xf32>, vector<8x8xf32> -> vector<8x8xf32>
    %322 = vector.extract_strided_slice %261 {offsets = [8, 8], sizes = [8, 8], strides = [1, 1]} : vector<16x32xf32> to vector<8x8xf32>
    %323 = vector.extract_strided_slice %262 {offsets = [8, 8], sizes = [8, 8], strides = [1, 1]} : vector<16x32xf32> to vector<8x8xf32>
    %324 = vector.extract_strided_slice %263 {offsets = [8, 8], sizes = [8, 8], strides = [1, 1]} : vector<16x32xf32> to vector<8x8xf32>
    %cst_118 = arith.constant dense<0.000000e+00> : vector<8x8xf32>
    %325 = tpu.matmul %322, %323, %cst_118 {dimension_numbers = #tpu.dot_dimension_numbers<[1], [1], [0], [0], [0, 0, 1, 0], [], []>} : vector<8x8xf32>, vector<8x8xf32>, vector<8x8xf32> -> vector<8x8xf32>
    %cst_119 = arith.constant 0.353553385 : f32
    %326 = vector.broadcast %cst_119 : f32 to vector<8x8xf32>
    %327 = arith.mulf %325, %326 : vector<8x8xf32>
    %cst_120 = arith.constant dense<0xFF800000> : vector<8xf32>
    %328 = vector.multi_reduction <maximumf>, %327, %cst_120 [1] : vector<8x8xf32> to vector<8xf32>
    %329 = vector.shape_cast %328 : vector<8xf32> to vector<8x1xf32>
    %330 = vector.broadcast %329 : vector<8x1xf32> to vector<8x8xf32>
    %331 = arith.subf %327, %330 : vector<8x8xf32>
    %332 = math.exp %331 : vector<8x8xf32>
    %cst_121 = arith.constant dense<0.000000e+00> : vector<8xf32>
    %333 = vector.multi_reduction <add>, %332, %cst_121 [1] : vector<8x8xf32> to vector<8xf32>
    %334 = vector.shape_cast %333 : vector<8xf32> to vector<8x1xf32>
    %335 = tpu.reciprocal %334 {approx = true} : vector<8x1xf32> -> vector<8x1xf32>
    %336 = vector.broadcast %335 : vector<8x1xf32> to vector<8x8xf32>
    %337 = arith.mulf %332, %336 : vector<8x8xf32>
    %cst_122 = arith.constant dense<0.000000e+00> : vector<8x8xf32>
    %338 = tpu.matmul %337, %324, %cst_122 {dimension_numbers = #tpu.dot_dimension_numbers<[1], [0], [0], [1], [0, 0, 1, 1], [], []>} : vector<8x8xf32>, vector<8x8xf32>, vector<8x8xf32> -> vector<8x8xf32>
    %339 = tpu.concatenate %321, %338 in 0 : vector<8x8xf32>, vector<8x8xf32> -> vector<16x8xf32>
    %340 = vector.extract_strided_slice %265 {offsets = [8, 0], sizes = [8, 32], strides = [1, 1]} : vector<32x32xf32> to vector<8x32xf32>
    %cst_123 = arith.constant dense<0.000000e+00> : vector<16x32xf32>
    %341 = tpu.matmul %339, %340, %cst_123 {dimension_numbers = #tpu.dot_dimension_numbers<[1], [0], [0], [1], [0, 0, 1, 1], [], []>} : vector<16x8xf32>, vector<8x32xf32>, vector<16x32xf32> -> vector<16x32xf32>
    %342 = arith.addf %304, %341 : vector<16x32xf32>
    %343 = vector.extract_strided_slice %261 {offsets = [0, 16], sizes = [8, 8], strides = [1, 1]} : vector<16x32xf32> to vector<8x8xf32>
    %344 = vector.extract_strided_slice %262 {offsets = [0, 16], sizes = [8, 8], strides = [1, 1]} : vector<16x32xf32> to vector<8x8xf32>
    %345 = vector.extract_strided_slice %263 {offsets = [0, 16], sizes = [8, 8], strides = [1, 1]} : vector<16x32xf32> to vector<8x8xf32>
    %cst_124 = arith.constant dense<0.000000e+00> : vector<8x8xf32>
    %346 = tpu.matmul %343, %344, %cst_124 {dimension_numbers = #tpu.dot_dimension_numbers<[1], [1], [0], [0], [0, 0, 1, 0], [], []>} : vector<8x8xf32>, vector<8x8xf32>, vector<8x8xf32> -> vector<8x8xf32>
    %cst_125 = arith.constant 0.353553385 : f32
    %347 = vector.broadcast %cst_125 : f32 to vector<8x8xf32>
    %348 = arith.mulf %346, %347 : vector<8x8xf32>
    %cst_126 = arith.constant dense<0xFF800000> : vector<8xf32>
    %349 = vector.multi_reduction <maximumf>, %348, %cst_126 [1] : vector<8x8xf32> to vector<8xf32>
    %350 = vector.shape_cast %349 : vector<8xf32> to vector<8x1xf32>
    %351 = vector.broadcast %350 : vector<8x1xf32> to vector<8x8xf32>
    %352 = arith.subf %348, %351 : vector<8x8xf32>
    %353 = math.exp %352 : vector<8x8xf32>
    %cst_127 = arith.constant dense<0.000000e+00> : vector<8xf32>
    %354 = vector.multi_reduction <add>, %353, %cst_127 [1] : vector<8x8xf32> to vector<8xf32>
    %355 = vector.shape_cast %354 : vector<8xf32> to vector<8x1xf32>
    %356 = tpu.reciprocal %355 {approx = true} : vector<8x1xf32> -> vector<8x1xf32>
    %357 = vector.broadcast %356 : vector<8x1xf32> to vector<8x8xf32>
    %358 = arith.mulf %353, %357 : vector<8x8xf32>
    %cst_128 = arith.constant dense<0.000000e+00> : vector<8x8xf32>
    %359 = tpu.matmul %358, %345, %cst_128 {dimension_numbers = #tpu.dot_dimension_numbers<[1], [0], [0], [1], [0, 0, 1, 1], [], []>} : vector<8x8xf32>, vector<8x8xf32>, vector<8x8xf32> -> vector<8x8xf32>
    %360 = vector.extract_strided_slice %261 {offsets = [8, 16], sizes = [8, 8], strides = [1, 1]} : vector<16x32xf32> to vector<8x8xf32>
    %361 = vector.extract_strided_slice %262 {offsets = [8, 16], sizes = [8, 8], strides = [1, 1]} : vector<16x32xf32> to vector<8x8xf32>
    %362 = vector.extract_strided_slice %263 {offsets = [8, 16], sizes = [8, 8], strides = [1, 1]} : vector<16x32xf32> to vector<8x8xf32>
    %cst_129 = arith.constant dense<0.000000e+00> : vector<8x8xf32>
    %363 = tpu.matmul %360, %361, %cst_129 {dimension_numbers = #tpu.dot_dimension_numbers<[1], [1], [0], [0], [0, 0, 1, 0], [], []>} : vector<8x8xf32>, vector<8x8xf32>, vector<8x8xf32> -> vector<8x8xf32>
    %cst_130 = arith.constant 0.353553385 : f32
    %364 = vector.broadcast %cst_130 : f32 to vector<8x8xf32>
    %365 = arith.mulf %363, %364 : vector<8x8xf32>
    %cst_131 = arith.constant dense<0xFF800000> : vector<8xf32>
    %366 = vector.multi_reduction <maximumf>, %365, %cst_131 [1] : vector<8x8xf32> to vector<8xf32>
    %367 = vector.shape_cast %366 : vector<8xf32> to vector<8x1xf32>
    %368 = vector.broadcast %367 : vector<8x1xf32> to vector<8x8xf32>
    %369 = arith.subf %365, %368 : vector<8x8xf32>
    %370 = math.exp %369 : vector<8x8xf32>
    %cst_132 = arith.constant dense<0.000000e+00> : vector<8xf32>
    %371 = vector.multi_reduction <add>, %370, %cst_132 [1] : vector<8x8xf32> to vector<8xf32>
    %372 = vector.shape_cast %371 : vector<8xf32> to vector<8x1xf32>
    %373 = tpu.reciprocal %372 {approx = true} : vector<8x1xf32> -> vector<8x1xf32>
    %374 = vector.broadcast %373 : vector<8x1xf32> to vector<8x8xf32>
    %375 = arith.mulf %370, %374 : vector<8x8xf32>
    %cst_133 = arith.constant dense<0.000000e+00> : vector<8x8xf32>
    %376 = tpu.matmul %375, %362, %cst_133 {dimension_numbers = #tpu.dot_dimension_numbers<[1], [0], [0], [1], [0, 0, 1, 1], [], []>} : vector<8x8xf32>, vector<8x8xf32>, vector<8x8xf32> -> vector<8x8xf32>
    %377 = tpu.concatenate %359, %376 in 0 : vector<8x8xf32>, vector<8x8xf32> -> vector<16x8xf32>
    %378 = vector.extract_strided_slice %265 {offsets = [16, 0], sizes = [8, 32], strides = [1, 1]} : vector<32x32xf32> to vector<8x32xf32>
    %cst_134 = arith.constant dense<0.000000e+00> : vector<16x32xf32>
    %379 = tpu.matmul %377, %378, %cst_134 {dimension_numbers = #tpu.dot_dimension_numbers<[1], [0], [0], [1], [0, 0, 1, 1], [], []>} : vector<16x8xf32>, vector<8x32xf32>, vector<16x32xf32> -> vector<16x32xf32>
    %380 = arith.addf %342, %379 : vector<16x32xf32>
    %381 = vector.extract_strided_slice %261 {offsets = [0, 24], sizes = [8, 8], strides = [1, 1]} : vector<16x32xf32> to vector<8x8xf32>
    %382 = vector.extract_strided_slice %262 {offsets = [0, 24], sizes = [8, 8], strides = [1, 1]} : vector<16x32xf32> to vector<8x8xf32>
    %383 = vector.extract_strided_slice %263 {offsets = [0, 24], sizes = [8, 8], strides = [1, 1]} : vector<16x32xf32> to vector<8x8xf32>
    %cst_135 = arith.constant dense<0.000000e+00> : vector<8x8xf32>
    %384 = tpu.matmul %381, %382, %cst_135 {dimension_numbers = #tpu.dot_dimension_numbers<[1], [1], [0], [0], [0, 0, 1, 0], [], []>} : vector<8x8xf32>, vector<8x8xf32>, vector<8x8xf32> -> vector<8x8xf32>
    %cst_136 = arith.constant 0.353553385 : f32
    %385 = vector.broadcast %cst_136 : f32 to vector<8x8xf32>
    %386 = arith.mulf %384, %385 : vector<8x8xf32>
    %cst_137 = arith.constant dense<0xFF800000> : vector<8xf32>
    %387 = vector.multi_reduction <maximumf>, %386, %cst_137 [1] : vector<8x8xf32> to vector<8xf32>
    %388 = vector.shape_cast %387 : vector<8xf32> to vector<8x1xf32>
    %389 = vector.broadcast %388 : vector<8x1xf32> to vector<8x8xf32>
    %390 = arith.subf %386, %389 : vector<8x8xf32>
    %391 = math.exp %390 : vector<8x8xf32>
    %cst_138 = arith.constant dense<0.000000e+00> : vector<8xf32>
    %392 = vector.multi_reduction <add>, %391, %cst_138 [1] : vector<8x8xf32> to vector<8xf32>
    %393 = vector.shape_cast %392 : vector<8xf32> to vector<8x1xf32>
    %394 = tpu.reciprocal %393 {approx = true} : vector<8x1xf32> -> vector<8x1xf32>
    %395 = vector.broadcast %394 : vector<8x1xf32> to vector<8x8xf32>
    %396 = arith.mulf %391, %395 : vector<8x8xf32>
    %cst_139 = arith.constant dense<0.000000e+00> : vector<8x8xf32>
    %397 = tpu.matmul %396, %383, %cst_139 {dimension_numbers = #tpu.dot_dimension_numbers<[1], [0], [0], [1], [0, 0, 1, 1], [], []>} : vector<8x8xf32>, vector<8x8xf32>, vector<8x8xf32> -> vector<8x8xf32>
    %398 = vector.extract_strided_slice %261 {offsets = [8, 24], sizes = [8, 8], strides = [1, 1]} : vector<16x32xf32> to vector<8x8xf32>
    %399 = vector.extract_strided_slice %262 {offsets = [8, 24], sizes = [8, 8], strides = [1, 1]} : vector<16x32xf32> to vector<8x8xf32>
    %400 = vector.extract_strided_slice %263 {offsets = [8, 24], sizes = [8, 8], strides = [1, 1]} : vector<16x32xf32> to vector<8x8xf32>
    %cst_140 = arith.constant dense<0.000000e+00> : vector<8x8xf32>
    %401 = tpu.matmul %398, %399, %cst_140 {dimension_numbers = #tpu.dot_dimension_numbers<[1], [1], [0], [0], [0, 0, 1, 0], [], []>} : vector<8x8xf32>, vector<8x8xf32>, vector<8x8xf32> -> vector<8x8xf32>
    %cst_141 = arith.constant 0.353553385 : f32
    %402 = vector.broadcast %cst_141 : f32 to vector<8x8xf32>
    %403 = arith.mulf %401, %402 : vector<8x8xf32>
    %cst_142 = arith.constant dense<0xFF800000> : vector<8xf32>
    %404 = vector.multi_reduction <maximumf>, %403, %cst_142 [1] : vector<8x8xf32> to vector<8xf32>
    %405 = vector.shape_cast %404 : vector<8xf32> to vector<8x1xf32>
    %406 = vector.broadcast %405 : vector<8x1xf32> to vector<8x8xf32>
    %407 = arith.subf %403, %406 : vector<8x8xf32>
    %408 = math.exp %407 : vector<8x8xf32>
    %cst_143 = arith.constant dense<0.000000e+00> : vector<8xf32>
    %409 = vector.multi_reduction <add>, %408, %cst_143 [1] : vector<8x8xf32> to vector<8xf32>
    %410 = vector.shape_cast %409 : vector<8xf32> to vector<8x1xf32>
    %411 = tpu.reciprocal %410 {approx = true} : vector<8x1xf32> -> vector<8x1xf32>
    %412 = vector.broadcast %411 : vector<8x1xf32> to vector<8x8xf32>
    %413 = arith.mulf %408, %412 : vector<8x8xf32>
    %cst_144 = arith.constant dense<0.000000e+00> : vector<8x8xf32>
    %414 = tpu.matmul %413, %400, %cst_144 {dimension_numbers = #tpu.dot_dimension_numbers<[1], [0], [0], [1], [0, 0, 1, 1], [], []>} : vector<8x8xf32>, vector<8x8xf32>, vector<8x8xf32> -> vector<8x8xf32>
    %415 = tpu.concatenate %397, %414 in 0 : vector<8x8xf32>, vector<8x8xf32> -> vector<16x8xf32>
    %416 = vector.extract_strided_slice %265 {offsets = [24, 0], sizes = [8, 32], strides = [1, 1]} : vector<32x32xf32> to vector<8x32xf32>
    %cst_145 = arith.constant dense<0.000000e+00> : vector<16x32xf32>
    %417 = tpu.matmul %415, %416, %cst_145 {dimension_numbers = #tpu.dot_dimension_numbers<[1], [0], [0], [1], [0, 0, 1, 1], [], []>} : vector<16x8xf32>, vector<8x32xf32>, vector<16x32xf32> -> vector<16x32xf32>
    %418 = arith.addf %380, %417 : vector<16x32xf32>
    %c1_146 = arith.constant 1 : index
    %c0_147 = arith.constant 0 : index
    %c0_148 = arith.constant 0 : index
    %419 = vector.load %arg6[%c1_146, %c0_147, %c0_148] : memref<2x1x32xf32, #tpu.memory_space<vmem>>, vector<1x1x32xf32>
    %420 = vector.shape_cast %419 : vector<1x1x32xf32> to vector<1x32xf32>
    %421 = vector.broadcast %420 : vector<1x32xf32> to vector<16x32xf32>
    %422 = arith.addf %418, %421 : vector<16x32xf32>
    %c1_149 = arith.constant 1 : index
    %c0_150 = arith.constant 0 : index
    %c0_151 = arith.constant 0 : index
    %423 = vector.load %arg7[%c1_149, %c0_150, %c0_151] : memref<2x2x32xf32, #tpu.memory_space<vmem>>, vector<1x2x32xf32>
    %424 = vector.shape_cast %423 : vector<1x2x32xf32> to vector<2x32xf32>
    %425 = arith.addf %253, %422 : vector<16x32xf32>
    %426 = vector.extract_strided_slice %424 {offsets = [0, 0], sizes = [1, 32], strides = [1, 1]} : vector<2x32xf32> to vector<1x32xf32>
    %427 = vector.extract_strided_slice %424 {offsets = [1, 0], sizes = [1, 32], strides = [1, 1]} : vector<2x32xf32> to vector<1x32xf32>
    %cst_152 = arith.constant dense<0.000000e+00> : vector<16xf32>
    %428 = vector.multi_reduction <add>, %425, %cst_152 [1] : vector<16x32xf32> to vector<16xf32>
    %429 = vector.shape_cast %428 : vector<16xf32> to vector<16x1xf32>
    %cst_153 = arith.constant 3.200000e+01 : f32
    %430 = vector.broadcast %cst_153 : f32 to vector<16x1xf32>
    %431 = arith.divf %429, %430 : vector<16x1xf32>
    %432 = vector.broadcast %431 : vector<16x1xf32> to vector<16x32xf32>
    %433 = arith.subf %425, %432 : vector<16x32xf32>
    %434 = arith.mulf %433, %433 : vector<16x32xf32>
    %cst_154 = arith.constant dense<0.000000e+00> : vector<16xf32>
    %435 = vector.multi_reduction <add>, %434, %cst_154 [1] : vector<16x32xf32> to vector<16xf32>
    %436 = vector.shape_cast %435 : vector<16xf32> to vector<16x1xf32>
    %cst_155 = arith.constant 3.200000e+01 : f32
    %437 = vector.broadcast %cst_155 : f32 to vector<16x1xf32>
    %438 = arith.divf %436, %437 : vector<16x1xf32>
    %439 = vector.broadcast %431 : vector<16x1xf32> to vector<16x32xf32>
    %440 = arith.subf %425, %439 : vector<16x32xf32>
    %cst_156 = arith.constant 9.99999974E-6 : f32
    %441 = vector.broadcast %cst_156 : f32 to vector<16x1xf32>
    %442 = arith.addf %438, %441 : vector<16x1xf32>
    %443 = math.rsqrt %442 : vector<16x1xf32>
    %444 = vector.broadcast %443 : vector<16x1xf32> to vector<16x32xf32>
    %445 = arith.mulf %440, %444 : vector<16x32xf32>
    %446 = vector.broadcast %426 : vector<1x32xf32> to vector<16x32xf32>
    %447 = arith.mulf %445, %446 : vector<16x32xf32>
    %448 = vector.broadcast %427 : vector<1x32xf32> to vector<16x32xf32>
    %449 = arith.addf %447, %448 : vector<16x32xf32>
    %c1_157 = arith.constant 1 : index
    %c0_158 = arith.constant 0 : index
    %c0_159 = arith.constant 0 : index
    %450 = vector.load %arg8[%c1_157, %c0_158, %c0_159] : memref<2x32x64xf32, #tpu.memory_space<vmem>>, vector<1x32x64xf32>
    %451 = vector.shape_cast %450 : vector<1x32x64xf32> to vector<32x64xf32>
    %cst_160 = arith.constant dense<0.000000e+00> : vector<16x64xf32>
    %452 = tpu.matmul %449, %451, %cst_160 {dimension_numbers = #tpu.dot_dimension_numbers<[1], [0], [0], [1], [0, 0, 1, 1], [], []>} : vector<16x32xf32>, vector<32x64xf32>, vector<16x64xf32> -> vector<16x64xf32>
    %c1_161 = arith.constant 1 : index
    %c0_162 = arith.constant 0 : index
    %c0_163 = arith.constant 0 : index
    %453 = vector.load %arg9[%c1_161, %c0_162, %c0_163] : memref<2x1x64xf32, #tpu.memory_space<vmem>>, vector<1x1x64xf32>
    %454 = vector.shape_cast %453 : vector<1x1x64xf32> to vector<1x64xf32>
    %455 = vector.broadcast %454 : vector<1x64xf32> to vector<16x64xf32>
    %456 = arith.addf %452, %455 : vector<16x64xf32>
    %cst_164 = arith.constant dense<0xFF800000> : vector<16xf32>
    %457 = vector.multi_reduction <maximumf>, %456, %cst_164 [1] : vector<16x64xf32> to vector<16xf32>
    %458 = vector.shape_cast %457 : vector<16xf32> to vector<16x1xf32>
    %459 = vector.broadcast %458 : vector<16x1xf32> to vector<16x64xf32>
    %460 = arith.subf %456, %459 : vector<16x64xf32>
    %461 = math.exp %460 : vector<16x64xf32>
    %cst_165 = arith.constant dense<0.000000e+00> : vector<16xf32>
    %462 = vector.multi_reduction <add>, %461, %cst_165 [1] : vector<16x64xf32> to vector<16xf32>
    %463 = vector.shape_cast %462 : vector<16xf32> to vector<16x1xf32>
    %464 = tpu.reciprocal %463 {approx = true} : vector<16x1xf32> -> vector<16x1xf32>
    %465 = vector.broadcast %464 : vector<16x1xf32> to vector<16x64xf32>
    %466 = arith.mulf %461, %465 : vector<16x64xf32>
    %c1_166 = arith.constant 1 : index
    %c0_167 = arith.constant 0 : index
    %c0_168 = arith.constant 0 : index
    %467 = vector.load %arg10[%c1_166, %c0_167, %c0_168] : memref<2x64x32xf32, #tpu.memory_space<vmem>>, vector<1x64x32xf32>
    %468 = vector.shape_cast %467 : vector<1x64x32xf32> to vector<64x32xf32>
    %cst_169 = arith.constant dense<0.000000e+00> : vector<16x32xf32>
    %469 = tpu.matmul %466, %468, %cst_169 {dimension_numbers = #tpu.dot_dimension_numbers<[1], [0], [0], [1], [0, 0, 1, 1], [], []>} : vector<16x64xf32>, vector<64x32xf32>, vector<16x32xf32> -> vector<16x32xf32>
    %c1_170 = arith.constant 1 : index
    %c0_171 = arith.constant 0 : index
    %c0_172 = arith.constant 0 : index
    %470 = vector.load %arg11[%c1_170, %c0_171, %c0_172] : memref<2x2x32xf32, #tpu.memory_space<vmem>>, vector<1x2x32xf32>
    %471 = vector.shape_cast %470 : vector<1x2x32xf32> to vector<2x32xf32>
    %472 = arith.addf %449, %469 : vector<16x32xf32>
    %473 = vector.extract_strided_slice %471 {offsets = [0, 0], sizes = [1, 32], strides = [1, 1]} : vector<2x32xf32> to vector<1x32xf32>
    %474 = vector.extract_strided_slice %471 {offsets = [1, 0], sizes = [1, 32], strides = [1, 1]} : vector<2x32xf32> to vector<1x32xf32>
    %cst_173 = arith.constant dense<0.000000e+00> : vector<16xf32>
    %475 = vector.multi_reduction <add>, %472, %cst_173 [1] : vector<16x32xf32> to vector<16xf32>
    %476 = vector.shape_cast %475 : vector<16xf32> to vector<16x1xf32>
    %cst_174 = arith.constant 3.200000e+01 : f32
    %477 = vector.broadcast %cst_174 : f32 to vector<16x1xf32>
    %478 = arith.divf %476, %477 : vector<16x1xf32>
    %479 = vector.broadcast %478 : vector<16x1xf32> to vector<16x32xf32>
    %480 = arith.subf %472, %479 : vector<16x32xf32>
    %481 = arith.mulf %480, %480 : vector<16x32xf32>
    %cst_175 = arith.constant dense<0.000000e+00> : vector<16xf32>
    %482 = vector.multi_reduction <add>, %481, %cst_175 [1] : vector<16x32xf32> to vector<16xf32>
    %483 = vector.shape_cast %482 : vector<16xf32> to vector<16x1xf32>
    %cst_176 = arith.constant 3.200000e+01 : f32
    %484 = vector.broadcast %cst_176 : f32 to vector<16x1xf32>
    %485 = arith.divf %483, %484 : vector<16x1xf32>
    %486 = vector.broadcast %478 : vector<16x1xf32> to vector<16x32xf32>
    %487 = arith.subf %472, %486 : vector<16x32xf32>
    %cst_177 = arith.constant 9.99999974E-6 : f32
    %488 = vector.broadcast %cst_177 : f32 to vector<16x1xf32>
    %489 = arith.addf %485, %488 : vector<16x1xf32>
    %490 = math.rsqrt %489 : vector<16x1xf32>
    %491 = vector.broadcast %490 : vector<16x1xf32> to vector<16x32xf32>
    %492 = arith.mulf %487, %491 : vector<16x32xf32>
    %493 = vector.broadcast %473 : vector<1x32xf32> to vector<16x32xf32>
    %494 = arith.mulf %492, %493 : vector<16x32xf32>
    %495 = vector.broadcast %474 : vector<1x32xf32> to vector<16x32xf32>
    %496 = arith.addf %494, %495 : vector<16x32xf32>
    %497 = vector.extract_strided_slice %496 {offsets = [7, 0], sizes = [1, 32], strides = [1, 1]} : vector<16x32xf32> to vector<1x32xf32>
    %498 = vector.extract_strided_slice %496 {offsets = [15, 0], sizes = [1, 32], strides = [1, 1]} : vector<16x32xf32> to vector<1x32xf32>
    %499 = tpu.concatenate %497, %498 in 0 : vector<1x32xf32>, vector<1x32xf32> -> vector<2x32xf32>
    %c0_178 = arith.constant 0 : index
    %c0_179 = arith.constant 0 : index
    %500 = vector.load %arg12[%c0_178, %c0_179] : memref<32x32xf32, #tpu.memory_space<vmem>>, vector<32x32xf32>
    %cst_180 = arith.constant dense<0.000000e+00> : vector<2x32xf32>
    %501 = tpu.matmul %499, %500, %cst_180 {dimension_numbers = #tpu.dot_dimension_numbers<[1], [0], [0], [1], [0, 0, 1, 1], [], []>} : vector<2x32xf32>, vector<32x32xf32>, vector<2x32xf32> -> vector<2x32xf32>
    %c0_181 = arith.constant 0 : index
    %c0_182 = arith.constant 0 : index
    %502 = vector.load %arg13[%c0_181, %c0_182] : memref<1x32xf32, #tpu.memory_space<vmem>>, vector<1x32xf32>
    %503 = vector.broadcast %502 : vector<1x32xf32> to vector<2x32xf32>
    %504 = arith.addf %501, %503 : vector<2x32xf32>
    %c0_183 = arith.constant 0 : index
    %c0_184 = arith.constant 0 : index
    %505 = vector.load %arg14[%c0_183, %c0_184] : memref<2x32xf32, #tpu.memory_space<vmem>>, vector<2x32xf32>
    tpu.vector_store %arg14[%c0_183, %c0_184], %504 {strides = array<i32>} : memref<2x32xf32, #tpu.memory_space<vmem>>, vector<2x32xf32>,
    return
  }
}

</mosaic_0001>

<llo_original>
// kernel: tpu_custom_call.1
$region0: #{tpu_custom_call.1}
  #allocation0 [shape = 'u32[]', space=smem, size = 0x4, offset = 0x4, fixed_abs, tag = 'smem constant byte address 0x4 - core index']
  #allocation1 [shape = 'u32[144,128]{1,0:T(1,128)}', space=vmem, size = 0x12000, scoped, tag = 'internal scratch']
  %s0 = inlined_call_operand.vmem [shape: s32[16,1], index: 0, kind: input, shape index: {}]
  %s1 = inlined_call_operand.hbm [shape: f32[32,32], index: 1, kind: input, shape index: {}]
  %s2 = inlined_call_operand.hbm [shape: f32[8,32], index: 2, kind: input, shape index: {}]
  %s3 = inlined_call_operand.vmem [shape: f32[2,32,96], index: 3, kind: input, shape index: {}]
  %s4 = inlined_call_operand.hbm [shape: f32[2,1,96], index: 4, kind: input, shape index: {}]
  %s5 = inlined_call_operand.vmem [shape: f32[2,32,32], index: 5, kind: input, shape index: {}]
  %s6 = inlined_call_operand.vmem [shape: f32[2,1,32], index: 6, kind: input, shape index: {}]
  %s7 = inlined_call_operand.vmem [shape: f32[2,2,32], index: 7, kind: input, shape index: {}]
  %s8 = inlined_call_operand.vmem [shape: f32[2,32,64], index: 8, kind: input, shape index: {}]
  %s9 = inlined_call_operand.vmem [shape: f32[2,1,64], index: 9, kind: input, shape index: {}]
  %s10 = inlined_call_operand.vmem [shape: f32[2,64,32], index: 10, kind: input, shape index: {}]
  %s11 = inlined_call_operand.vmem [shape: f32[2,2,32], index: 11, kind: input, shape index: {}]
  %s12 = inlined_call_operand.vmem [shape: f32[32,32], index: 12, kind: input, shape index: {}]
  %s13 = inlined_call_operand.vmem [shape: f32[1,32], index: 13, kind: input, shape index: {}]
  %s14 = inlined_call_operand.hbm [shape: f32[2,32], index: 14, kind: output, shape index: {}]
  %s15 = sld [smem:[#allocation0]]
  $region78: #{tpu_custom_call.1} parent=0
    _
  %s17 = ssub.s32 1, %s15
  %s18 = scalar_select 0, %s17, %s15
  $region1: #{tpu_custom_call.1} parent=0
    #allocation2 [shape = 'u8[16384]{0}', space=vmem, size = 0x4000, scoped, tag = 'input window, operand 1, single buffered']
    #allocation3 [shape = 's32[1]{0}', space=sflag, size = 0x4, scoped, tag = 'scoped memory for tpu_custom_call.1']
    #allocation4 [shape = 's32[1]{0}', space=sflag, size = 0x4, scoped, tag = 'scoped memory for tpu_custom_call.1']
    #allocation5 [shape = 'u8[4096]{0}', space=vmem, size = 0x1000, scoped, tag = 'input window, operand 2, single buffered']
    #allocation6 [shape = 's32[1]{0}', space=sflag, size = 0x4, scoped, tag = 'scoped memory for tpu_custom_call.1']
    #allocation7 [shape = 'u8[1024]{0}', space=vmem, size = 0x400, scoped, tag = 'input window, operand 4, single buffered']
    #allocation8 [shape = 'u8[1024]{0}', space=vmem, size = 0x400, scoped, tag = 'output window, operand 0, single buffered']
    %19 = vsyncpa [#allocation3], 0
    %20 = vsyncpa [#allocation6], 0
    %21 = vsyncpa [#allocation4], 0
    // Predicated region
    $region2: #{tpu_custom_call.1} parent=1 // pred_check
      _
    $region3: #{tpu_custom_call.1} parent=1 // pred_check_branch
      %23 = sbr.rel (0) target = $region5
    $region4: #{tpu_custom_call.1} parent=1 // pred_region
      _
    $region5: #{tpu_custom_call.1} parent=1 // pred_fallthru
      _
    // Predicated region
    $region6: #{tpu_custom_call.1} parent=1 // pred_check
      _
    $region7: #{tpu_custom_call.1} parent=1 // pred_check_branch
      %25 = sbr.rel (0) target = $region9
    $region8: #{tpu_custom_call.1} parent=1 // pred_region
      %s27 = ssub.s32 512, 512
      %28 = vsyncadd [#allocation3], %s27
      %s29 = sshll.u32 [#allocation2], 4
      %s30 = int_to_ptr.vmem [resolvable:$true] %s29
      %35 = dma.hbm_to_vmem [thread:$0]  %s1, 512, %s30, [#allocation3], 128, 128, 8
    $region9: #{tpu_custom_call.1} parent=1 // pred_fallthru
      _
    // Predicated region
    $region10: #{tpu_custom_call.1} parent=1 // pred_check
      _
    $region11: #{tpu_custom_call.1} parent=1 // pred_check_branch
      %37 = sbr.rel (0) target = $region13
    $region12: #{tpu_custom_call.1} parent=1 // pred_region
      %s39 = ssub.s32 128, 128
      %40 = vsyncadd [#allocation6], %s39
      %s42 = sshll.u32 [#allocation5], 4
      %s43 = int_to_ptr.vmem [resolvable:$true] %s42
      %45 = dma.hbm_to_vmem [thread:$0]  %s2, 128, %s43, [#allocation6]
    $region13: #{tpu_custom_call.1} parent=1 // pred_fallthru
      _
    // Predicated region
    $region14: #{tpu_custom_call.1} parent=1 // pred_check
      _
    $region15: #{tpu_custom_call.1} parent=1 // pred_check_branch
      %47 = sbr.rel (0) target = $region17
    $region16: #{tpu_custom_call.1} parent=1 // pred_region
      _
    $region17: #{tpu_custom_call.1} parent=1 // pred_fallthru
      _
    // Predicated region
    $region18: #{tpu_custom_call.1} parent=1 // pred_check
      _
    $region19: #{tpu_custom_call.1} parent=1 // pred_check_branch
      %49 = sbr.rel (0) target = $region21
    $region20: #{tpu_custom_call.1} parent=1 // pred_region
      %s51 = ssub.s32 32, 32
      %52 = vsyncadd [#allocation6], %s51
      %s53 = sshll.u32 [#allocation7], 4
      %s54 = int_to_ptr.vmem [resolvable:$true] %s53
      %59 = dma.hbm_to_vmem [thread:$0]  %s4, 32, %s54, [#allocation6], 16, 16, 1
    $region21: #{tpu_custom_call.1} parent=1 // pred_fallthru
      _
    // Predicated region
    $region22: #{tpu_custom_call.1} parent=1 // pred_check
      _
    $region23: #{tpu_custom_call.1} parent=1 // pred_check_branch
      %61 = sbr.rel (0) target = $region25
    $region24: #{tpu_custom_call.1} parent=1 // pred_region
      _
    $region25: #{tpu_custom_call.1} parent=1 // pred_fallthru
      _
    // Predicated region
    $region26: #{tpu_custom_call.1} parent=1 // pred_check
      _
    $region27: #{tpu_custom_call.1} parent=1 // pred_check_branch
      %63 = sbr.rel (0) target = $region29
    $region28: #{tpu_custom_call.1} parent=1 // pred_region
      _
    $region29: #{tpu_custom_call.1} parent=1 // pred_fallthru
      _
    // Predicated region
    $region30: #{tpu_custom_call.1} parent=1 // pred_check
      _
    $region31: #{tpu_custom_call.1} parent=1 // pred_check_branch
      %65 = sbr.rel (0) target = $region33
    $region32: #{tpu_custom_call.1} parent=1 // pred_region
      _
    $region33: #{tpu_custom_call.1} parent=1 // pred_fallthru
      _
    // Predicated region
    $region34: #{tpu_custom_call.1} parent=1 // pred_check
      _
    $region35: #{tpu_custom_call.1} parent=1 // pred_check_branch
      %67 = sbr.rel (0) target = $region37
    $region36: #{tpu_custom_call.1} parent=1 // pred_region
      _
    $region37: #{tpu_custom_call.1} parent=1 // pred_fallthru
      _
    // Predicated region
    $region38: #{tpu_custom_call.1} parent=1 // pred_check
      _
    $region39: #{tpu_custom_call.1} parent=1 // pred_check_branch
      %69 = sbr.rel (0) target = $region41
    $region40: #{tpu_custom_call.1} parent=1 // pred_region
      _
    $region41: #{tpu_custom_call.1} parent=1 // pred_fallthru
      _
    // Predicated region
    $region42: #{tpu_custom_call.1} parent=1 // pred_check
      _
    $region43: #{tpu_custom_call.1} parent=1 // pred_check_branch
      %71 = sbr.rel (0) target = $region45
    $region44: #{tpu_custom_call.1} parent=1 // pred_region
      _
    $region45: #{tpu_custom_call.1} parent=1 // pred_fallthru
      _
    // Predicated region
    $region46: #{tpu_custom_call.1} parent=1 // pred_check
      _
    $region47: #{tpu_custom_call.1} parent=1 // pred_check_branch
      %73 = sbr.rel (0) target = $region49
    $region48: #{tpu_custom_call.1} parent=1 // pred_region
      _
    $region49: #{tpu_custom_call.1} parent=1 // pred_fallthru
      _
    // Predicated region
    $region50: #{tpu_custom_call.1} parent=1 // pred_check
      _
    $region51: #{tpu_custom_call.1} parent=1 // pred_check_branch
      %75 = sbr.rel (0) target = $region53
    $region52: #{tpu_custom_call.1} parent=1 // pred_region
      _
    $region53: #{tpu_custom_call.1} parent=1 // pred_fallthru
      _
    // Predicated region
    $region54: #{tpu_custom_call.1} parent=1 // pred_check
      _
    $region55: #{tpu_custom_call.1} parent=1 // pred_check_branch
      %77 = sbr.rel (0) target = $region57
    $region56: #{tpu_custom_call.1} parent=1 // pred_region
      _
    $region57: #{tpu_custom_call.1} parent=1 // pred_fallthru
      _
    // Predicated region
    $region58: #{tpu_custom_call.1} parent=1 // pred_check
      _
    $region59: #{tpu_custom_call.1} parent=1 // pred_check_branch
      %79 = sbr.rel (0) target = $region61
    $region60: #{tpu_custom_call.1} parent=1 // pred_region
      %80 = dma.done [#allocation3], 512
    $region61: #{tpu_custom_call.1} parent=1 // pred_fallthru
      _
    // Predicated region
    $region62: #{tpu_custom_call.1} parent=1 // pred_check
      _
    $region63: #{tpu_custom_call.1} parent=1 // pred_check_branch
      %82 = sbr.rel (0) target = $region65
    $region64: #{tpu_custom_call.1} parent=1 // pred_region
      %83 = dma.done [#allocation6], 128
    $region65: #{tpu_custom_call.1} parent=1 // pred_fallthru
      _
    // Predicated region
    $region66: #{tpu_custom_call.1} parent=1 // pred_check
      _
    $region67: #{tpu_custom_call.1} parent=1 // pred_check_branch
      %85 = sbr.rel (0) target = $region69
    $region68: #{tpu_custom_call.1} parent=1 // pred_region
      %86 = dma.done [#allocation6], 32
    $region69: #{tpu_custom_call.1} parent=1 // pred_fallthru
      _
    %v87 = vld [vmem:[%s0] sm:$0xff]
    %v88 = vld [vmem:[%s0 + $0x8] sm:$0xff]
    %v89 = vlaneseq
    %v90 = vand.u32 %v89, 127
    %91 = vset.pattern.permute.xlu0 0
    %92 = vperm.xlu0 %91, %v87
    %v93 = vpop.permute.xlu0 %92
    %94 = vset.pattern.permute.xlu0 0
    %95 = vperm.xlu0 %94, %v88
    %v96 = vpop.permute.xlu0 %95
    %vm97 = vcmp.eq.s32.totalorder %v93, %v90
    %vm98 = vcmp.eq.s32.totalorder %v96, %v90
    %v99 = vsel %vm97, 1, 0
    %v100 = vsel %vm98, 1, 0
    %v101 = vcvt.s32.f32 %v99
    %v102 = vcvt.s32.f32 %v100
    %v103 = vld [vmem:[#allocation2] sm:$0xff]
    %v104 = vld [vmem:[#allocation2 + $0x8] sm:$0xff]
    %v105 = vld [vmem:[#allocation2 + $0x10] sm:$0xff]
    %v106 = vld [vmem:[#allocation2 + $0x18] sm:$0xff]
    %v107 = vld [vmem:[#allocation5] sm:$0xff]
    %vm108 = vcmask 261120
    %v110 = vsel %vm108, %v101, 0
    %v113 = vsel %vm108, %v102, 0
    %115 = vmatprep.subr.mxu0 0.0
    %116 = vmatpush1.msra.mxu0 %v103
    %117 = vmatprep.subr.mxu0 0.0
    %118 = vmatpush1.msra.mxu0 %v104
    %119 = vmatprep.subr.mxu0 0.0
    %120 = vmatpush1.msra.mxu0 %v105
    %121 = vmatprep.subr.mxu0 0.0
    %122 = vmatpush1.msra.mxu0 %v106
    %123 = vmatprep.subr.mxu0 0.0
    %124 = vmatpush1.msra.mxu0 0.0
    %125 = vmatprep.subr.mxu0 0.0
    %126 = vmatpush1.msra.mxu0 0.0
    %127 = vmatprep.subr.mxu0 0.0
    %128 = vmatpush1.msra.mxu0 0.0
    %129 = vmatprep.subr.mxu0 0.0
    %130 = vmatpush1.msra.mxu0 0.0
    %131 = vmatprep.subr.mxu0 0.0
    %132 = vmatpush1.msra.mxu0 0.0
    %133 = vmatprep.subr.mxu0 0.0
    %134 = vmatpush1.msra.mxu0 0.0
    %135 = vmatprep.subr.mxu0 0.0
    %136 = vmatpush1.msra.mxu0 0.0
    %137 = vmatprep.subr.mxu0 0.0
    %138 = vmatpush1.msra.mxu0 0.0
    %139 = vmatprep.subr.mxu0 0.0
    %140 = vmatpush1.msra.mxu0 0.0
    %141 = vmatprep.subr.mxu0 0.0
    %142 = vmatpush1.msra.mxu0 0.0
    %143 = vmatprep.subr.mxu0 0.0
    %144 = vmatpush1.msra.mxu0 0.0
    %145 = vmatprep.subr.mxu0 0.0
    %146 = vmatpush1.msra.mxu0 0.0
    %147 = vmatprep.subr.mxu0 0.0
    %148 = vmatpush1.msra.mxu0 0.0
    %149 = vmatprep.subr.mxu0 0.0
    %150 = vmatpush1.msra.mxu0 0.0
    %151 = vmatprep.subr.mxu0 0.0
    %152 = vmatpush1.msra.mxu0 0.0
    %153 = vmatprep.subr.mxu0 0.0
    %154 = vmatpush1.msra.mxu0 0.0
    %155 = vmatprep.subr.mxu0 0.0
    %156 = vmatpush1.msra.mxu0 0.0
    %157 = vmatprep.subr.mxu0 0.0
    %158 = vmatpush1.msra.mxu0 0.0
    %159 = vmatprep.subr.mxu0 0.0
    %160 = vmatpush1.msra.mxu0 0.0
    %161 = vmatprep.subr.mxu0 0.0
    %162 = vmatpush1.msra.mxu0 0.0
    %163 = vmatprep.subr.mxu0 0.0
    %164 = vmatpush1.msra.mxu0 0.0
    %165 = vmatprep.subr.mxu0 0.0
    %166 = vmatpush1.msra.mxu0 0.0
    %167 = vmatprep.subr.mxu0 0.0
    %168 = vmatpush1.msra.mxu0 0.0
    %169 = vmatprep.subr.mxu0 0.0
    %170 = vmatpush1.msra.mxu0 0.0
    %171 = vmatprep.subr.mxu0 0.0
    %172 = vmatpush1.msra.mxu0 0.0
    %173 = vmatprep.subr.mxu0 0.0
    %174 = vmatpush1.msra.mxu0 0.0
    %175 = vmatprep.subr.mxu0 0.0
    %176 = vmatpush1.msra.mxu0 0.0
    %177 = vmatprep.subr.mxu0 0.0
    %178 = vmatpush1.msra.mxu0 0.0
    %179 = vmatprep.mubr.f32.mxu0 0.0
    %180 = vmatmul.mubr.f32.gmra.mrb[0].mxu0 %v110
    %v181 = vpop.f32.mrb[0].mxu0
    %v182 = vadd.f32 %v107, %v181
    %v183 = vpop.f32.mrb[0].mxu0
    %184 = vmatprep.mubr.f32.mxu0 0.0
    %185 = vmatmul.mubr.f32.gmra.mrb[0].mxu0 %v113
    %v186 = vpop.f32.mrb[0].mxu0
    %v187 = vadd.f32 %v107, %v186
    %v188 = vpop.f32.mrb[0].mxu0
    %189 = vdwg.mxu0
    %v190 = vld [vmem:[%s3] sm:$0xff]
    %v191 = vld [vmem:[%s3 + $0x8] sm:$0xff]
    %v192 = vld [vmem:[%s3 + $0x10] sm:$0xff]
    %v193 = vld [vmem:[%s3 + $0x18] sm:$0xff]
    %v194 = vld [vmem:[#allocation7] sm:$0x1]
    %v196 = vlaneseq
    %v197 = vshrl.u32 %v196, 7
    %v198 = vsub.s32 0, %v197
    %v199 = vrot.slane %v194, %v198
    %v202 = vsel %vm108, %v182, 0
    %v205 = vsel %vm108, %v187, 0
    %207 = vmatprep.subr.mxu0 0.0
    %208 = vmatpush1.msra.mxu0 %v190
    %209 = vmatprep.subr.mxu0 0.0
    %210 = vmatpush1.msra.mxu0 %v191
    %211 = vmatprep.subr.mxu0 0.0
    %212 = vmatpush1.msra.mxu0 %v192
    %213 = vmatprep.subr.mxu0 0.0
    %214 = vmatpush1.msra.mxu0 %v193
    %215 = vmatprep.subr.mxu0 0.0
    %216 = vmatpush1.msra.mxu0 0.0
    %217 = vmatprep.subr.mxu0 0.0
    %218 = vmatpush1.msra.mxu0 0.0
    %219 = vmatprep.subr.mxu0 0.0
    %220 = vmatpush1.msra.mxu0 0.0
    %221 = vmatprep.subr.mxu0 0.0
    %222 = vmatpush1.msra.mxu0 0.0
    %223 = vmatprep.subr.mxu0 0.0
    %224 = vmatpush1.msra.mxu0 0.0
    %225 = vmatprep.subr.mxu0 0.0
    %226 = vmatpush1.msra.mxu0 0.0
    %227 = vmatprep.subr.mxu0 0.0
    %228 = vmatpush1.msra.mxu0 0.0
    %229 = vmatprep.subr.mxu0 0.0
    %230 = vmatpush1.msra.mxu0 0.0
    %231 = vmatprep.subr.mxu0 0.0
    %232 = vmatpush1.msra.mxu0 0.0
    %233 = vmatprep.subr.mxu0 0.0
    %234 = vmatpush1.msra.mxu0 0.0
    %235 = vmatprep.subr.mxu0 0.0
    %236 = vmatpush1.msra.mxu0 0.0
    %237 = vmatprep.subr.mxu0 0.0
    %238 = vmatpush1.msra.mxu0 0.0
    %239 = vmatprep.subr.mxu0 0.0
    %240 = vmatpush1.msra.mxu0 0.0
    %241 = vmatprep.subr.mxu0 0.0
    %242 = vmatpush1.msra.mxu0 0.0
    %243 = vmatprep.subr.mxu0 0.0
    %244 = vmatpush1.msra.mxu0 0.0
    %245 = vmatprep.subr.mxu0 0.0
    %246 = vmatpush1.msra.mxu0 0.0
    %247 = vmatprep.subr.mxu0 0.0
    %248 = vmatpush1.msra.mxu0 0.0
    %249 = vmatprep.subr.mxu0 0.0
    %250 = vmatpush1.msra.mxu0 0.0
    %251 = vmatprep.subr.mxu0 0.0
    %252 = vmatpush1.msra.mxu0 0.0
    %253 = vmatprep.subr.mxu0 0.0
    %254 = vmatpush1.msra.mxu0 0.0
    %255 = vmatprep.subr.mxu0 0.0
    %256 = vmatpush1.msra.mxu0 0.0
    %257 = vmatprep.subr.mxu0 0.0
    %258 = vmatpush1.msra.mxu0 0.0
    %259 = vmatprep.subr.mxu0 0.0
    %260 = vmatpush1.msra.mxu0 0.0
    %261 = vmatprep.subr.mxu0 0.0
    %262 = vmatpush1.msra.mxu0 0.0
    %263 = vmatprep.subr.mxu0 0.0
    %264 = vmatpush1.msra.mxu0 0.0
    %265 = vmatprep.subr.mxu0 0.0
    %266 = vmatpush1.msra.mxu0 0.0
    %267 = vmatprep.subr.mxu0 0.0
    %268 = vmatpush1.msra.mxu0 0.0
    %269 = vmatprep.subr.mxu0 0.0
    %270 = vmatpush1.msra.mxu0 0.0
    %271 = vmatprep.mubr.f32.mxu0 0.0
    %272 = vmatmul.mubr.f32.gmra.mrb[0].mxu0 %v202
    %v273 = vpop.f32.mrb[0].mxu0
    %v274 = vadd.f32 %v199, %v273
    %v275 = vpop.f32.mrb[0].mxu0
    %276 = vmatprep.mubr.f32.mxu0 0.0
    %277 = vmatmul.mubr.f32.gmra.mrb[0].mxu0 %v205
    %v278 = vpop.f32.mrb[0].mxu0
    %v279 = vadd.f32 %v199, %v278
    %v280 = vpop.f32.mrb[0].mxu0
    %281 = vdwg.mxu0
    %v282 = vld [vmem:[%s5] sm:$0xff]
    %v283 = vld [vmem:[%s5 + $0x8] sm:$0xff]
    %v284 = vld [vmem:[%s5 + $0x10] sm:$0xff]
    %v285 = vld [vmem:[%s5 + $0x18] sm:$0xff]
    %287 = vrot.lane.b32.xlu0 %v274, 96
    %v288 = vpop.permute.xlu0 %287
    %vm289 = vcmask 64512
    %v290 = vsel %vm289, %v274, 0
    %v292 = vsel %vm289, %v288, 0
    %294 = vmatprep.subr.mxu0 0.0
    %295 = vmatpush1.xpose.msra.mxu0 %v292
    %296 = vmatprep.subr.mxu0 0.0
    %297 = vmatpush1.xpose.msra.mxu0 0.0
    %298 = vmatprep.subr.mxu0 0.0
    %299 = vmatpush1.xpose.msra.mxu0 0.0
    %300 = vmatprep.subr.mxu0 0.0
    %301 = vmatpush1.xpose.msra.mxu0 0.0
    %302 = vmatprep.subr.mxu0 0.0
    %303 = vmatpush1.xpose.msra.mxu0 0.0
    %304 = vmatprep.subr.mxu0 0.0
    %305 = vmatpush1.xpose.msra.mxu0 0.0
    %306 = vmatprep.subr.mxu0 0.0
    %307 = vmatpush1.xpose.msra.mxu0 0.0
    %308 = vmatprep.subr.mxu0 0.0
    %309 = vmatpush1.xpose.msra.mxu0 0.0
    %310 = vmatprep.subr.mxu0 0.0
    %311 = vmatpush1.xpose.msra.mxu0 0.0
    %312 = vmatprep.subr.mxu0 0.0
    %313 = vmatpush1.xpose.msra.mxu0 0.0
    %314 = vmatprep.subr.mxu0 0.0
    %315 = vmatpush1.xpose.msra.mxu0 0.0
    %316 = vmatprep.subr.mxu0 0.0
    %317 = vmatpush1.xpose.msra.mxu0 0.0
    %318 = vmatprep.subr.mxu0 0.0
    %319 = vmatpush1.xpose.msra.mxu0 0.0
    %320 = vmatprep.subr.mxu0 0.0
    %321 = vmatpush1.xpose.msra.mxu0 0.0
    %322 = vmatprep.subr.mxu0 0.0
    %323 = vmatpush1.xpose.msra.mxu0 0.0
    %324 = vmatprep.subr.mxu0 0.0
    %325 = vmatpush1.xpose.msra.mxu0 0.0
    %326 = vmatprep.subr.mxu0 0.0
    %327 = vmatpush1.xpose.msra.mxu0 0.0
    %328 = vmatprep.subr.mxu0 0.0
    %329 = vmatpush1.xpose.msra.mxu0 0.0
    %330 = vmatprep.subr.mxu0 0.0
    %331 = vmatpush1.xpose.msra.mxu0 0.0
    %332 = vmatprep.subr.mxu0 0.0
    %333 = vmatpush1.xpose.msra.mxu0 0.0
    %334 = vmatprep.subr.mxu0 0.0
    %335 = vmatpush1.xpose.msra.mxu0 0.0
    %336 = vmatprep.subr.mxu0 0.0
    %337 = vmatpush1.xpose.msra.mxu0 0.0
    %338 = vmatprep.subr.mxu0 0.0
    %339 = vmatpush1.xpose.msra.mxu0 0.0
    %340 = vmatprep.subr.mxu0 0.0
    %341 = vmatpush1.xpose.msra.mxu0 0.0
    %342 = vmatprep.subr.mxu0 0.0
    %343 = vmatpush1.xpose.msra.mxu0 0.0
    %344 = vmatprep.subr.mxu0 0.0
    %345 = vmatpush1.xpose.msra.mxu0 0.0
    %346 = vmatprep.subr.mxu0 0.0
    %347 = vmatpush1.xpose.msra.mxu0 0.0
    %348 = vmatprep.subr.mxu0 0.0
    %349 = vmatpush1.xpose.msra.mxu0 0.0
    %350 = vmatprep.subr.mxu0 0.0
    %351 = vmatpush1.xpose.msra.mxu0 0.0
    %352 = vmatprep.subr.mxu0 0.0
    %353 = vmatpush1.xpose.msra.mxu0 0.0
    %354 = vmatprep.subr.mxu0 0.0
    %355 = vmatpush1.xpose.msra.mxu0 0.0
    %356 = vmatprep.subr.mxu0 0.0
    %357 = vmatpush1.xpose.msra.mxu0 0.0
    %358 = vmatprep.mubr.f32.mxu0 0.0
    %359 = vmatmul.mubr.f32.gmra.mrb[0].mxu0 %v290
    %v360 = vpop.f32.mrb[0].mxu0
    %v361 = vadd.f32 0.0, %v360
    %v362 = vpop.f32.mrb[0].mxu0
    %363 = vdwg.mxu0
    %v364 = vmul.f32 %v361, 0.35355338
    %v365 = vsel %vm289, %v364, -inf
    %366 = vmax.xlane.f32.xlu0 %v365
    %v367 = vpop.xlane.xlu0 %366
    %v368 = vsub.f32 %v364, %v367
    %v369 = vmul.f32 %v368, 1.442695
    %v370 = vpow.pop %v369
    %v371 = vsel %vm289, %v370, 0.0
    %372 = vadd.xlane.f32.xlu0 %v371
    %v373 = vpop.xlane.xlu0 %372
    %v374 = vrcp.pop %v373
    %v375 = vmul.f32 %v370, %v374
    %376 = vrot.lane.b32.xlu0 %v274, 64
    %v377 = vpop.permute.xlu0 %376
    %v380 = vsel %vm289, %v375, 0
    %382 = vmatprep.subr.mxu0 0.0
    %383 = vmatpush1.msra.mxu0 %v377
    %384 = vmatprep.subr.mxu0 0.0
    %385 = vmatpush1.msra.mxu0 0.0
    %386 = vmatprep.subr.mxu0 0.0
    %387 = vmatpush1.msra.mxu0 0.0
    %388 = vmatprep.subr.mxu0 0.0
    %389 = vmatpush1.msra.mxu0 0.0
    %390 = vmatprep.subr.mxu0 0.0
    %391 = vmatpush1.msra.mxu0 0.0
    %392 = vmatprep.subr.mxu0 0.0
    %393 = vmatpush1.msra.mxu0 0.0
    %394 = vmatprep.subr.mxu0 0.0
    %395 = vmatpush1.msra.mxu0 0.0
    %396 = vmatprep.subr.mxu0 0.0
    %397 = vmatpush1.msra.mxu0 0.0
    %398 = vmatprep.subr.mxu0 0.0
    %399 = vmatpush1.msra.mxu0 0.0
    %400 = vmatprep.subr.mxu0 0.0
    %401 = vmatpush1.msra.mxu0 0.0
    %402 = vmatprep.subr.mxu0 0.0
    %403 = vmatpush1.msra.mxu0 0.0
    %404 = vmatprep.subr.mxu0 0.0
    %405 = vmatpush1.msra.mxu0 0.0
    %406 = vmatprep.subr.mxu0 0.0
    %407 = vmatpush1.msra.mxu0 0.0
    %408 = vmatprep.subr.mxu0 0.0
    %409 = vmatpush1.msra.mxu0 0.0
    %410 = vmatprep.subr.mxu0 0.0
    %411 = vmatpush1.msra.mxu0 0.0
    %412 = vmatprep.subr.mxu0 0.0
    %413 = vmatpush1.msra.mxu0 0.0
    %414 = vmatprep.subr.mxu0 0.0
    %415 = vmatpush1.msra.mxu0 0.0
    %416 = vmatprep.subr.mxu0 0.0
    %417 = vmatpush1.msra.mxu0 0.0
    %418 = vmatprep.subr.mxu0 0.0
    %419 = vmatpush1.msra.mxu0 0.0
    %420 = vmatprep.subr.mxu0 0.0
    %421 = vmatpush1.msra.mxu0 0.0
    %422 = vmatprep.subr.mxu0 0.0
    %423 = vmatpush1.msra.mxu0 0.0
    %424 = vmatprep.subr.mxu0 0.0
    %425 = vmatpush1.msra.mxu0 0.0
    %426 = vmatprep.subr.mxu0 0.0
    %427 = vmatpush1.msra.mxu0 0.0
    %428 = vmatprep.subr.mxu0 0.0
    %429 = vmatpush1.msra.mxu0 0.0
    %430 = vmatprep.subr.mxu0 0.0
    %431 = vmatpush1.msra.mxu0 0.0
    %432 = vmatprep.subr.mxu0 0.0
    %433 = vmatpush1.msra.mxu0 0.0
    %434 = vmatprep.subr.mxu0 0.0
    %435 = vmatpush1.msra.mxu0 0.0
    %436 = vmatprep.subr.mxu0 0.0
    %437 = vmatpush1.msra.mxu0 0.0
    %438 = vmatprep.subr.mxu0 0.0
    %439 = vmatpush1.msra.mxu0 0.0
    %440 = vmatprep.subr.mxu0 0.0
    %441 = vmatpush1.msra.mxu0 0.0
    %442 = vmatprep.subr.mxu0 0.0
    %443 = vmatpush1.msra.mxu0 0.0
    %444 = vmatprep.subr.mxu0 0.0
    %445 = vmatpush1.msra.mxu0 0.0
    %446 = vmatprep.mubr.f32.mxu0 0.0
    %447 = vmatmul.mubr.f32.gmra.mrb[0].mxu0 %v380
    %v448 = vpop.f32.mrb[0].mxu0
    %v449 = vadd.f32 0.0, %v448
    %v450 = vpop.f32.mrb[0].mxu0
    %451 = vdwg.mxu0
    %453 = vrot.lane.b32.xlu0 %v279, 96
    %v454 = vpop.permute.xlu0 %453
    %v455 = vsel %vm289, %v279, 0
    %v457 = vsel %vm289, %v454, 0
    %459 = vmatprep.subr.mxu0 0.0
    %460 = vmatpush1.xpose.msra.mxu0 %v457
    %461 = vmatprep.subr.mxu0 0.0
    %462 = vmatpush1.xpose.msra.mxu0 0.0
    %463 = vmatprep.subr.mxu0 0.0
    %464 = vmatpush1.xpose.msra.mxu0 0.0
    %465 = vmatprep.subr.mxu0 0.0
    %466 = vmatpush1.xpose.msra.mxu0 0.0
    %467 = vmatprep.subr.mxu0 0.0
    %468 = vmatpush1.xpose.msra.mxu0 0.0
    %469 = vmatprep.subr.mxu0 0.0
    %470 = vmatpush1.xpose.msra.mxu0 0.0
    %471 = vmatprep.subr.mxu0 0.0
    %472 = vmatpush1.xpose.msra.mxu0 0.0
    %473 = vmatprep.subr.mxu0 0.0
    %474 = vmatpush1.xpose.msra.mxu0 0.0
    %475 = vmatprep.subr.mxu0 0.0
    %476 = vmatpush1.xpose.msra.mxu0 0.0
    %477 = vmatprep.subr.mxu0 0.0
    %478 = vmatpush1.xpose.msra.mxu0 0.0
    %479 = vmatprep.subr.mxu0 0.0
    %480 = vmatpush1.xpose.msra.mxu0 0.0
    %481 = vmatprep.subr.mxu0 0.0
    %482 = vmatpush1.xpose.msra.mxu0 0.0
    %483 = vmatprep.subr.mxu0 0.0
    %484 = vmatpush1.xpose.msra.mxu0 0.0
    %485 = vmatprep.subr.mxu0 0.0
    %486 = vmatpush1.xpose.msra.mxu0 0.0
    %487 = vmatprep.subr.mxu0 0.0
    %488 = vmatpush1.xpose.msra.mxu0 0.0
    %489 = vmatprep.subr.mxu0 0.0
    %490 = vmatpush1.xpose.msra.mxu0 0.0
    %491 = vmatprep.subr.mxu0 0.0
    %492 = vmatpush1.xpose.msra.mxu0 0.0
    %493 = vmatprep.subr.mxu0 0.0
    %494 = vmatpush1.xpose.msra.mxu0 0.0
    %495 = vmatprep.subr.mxu0 0.0
    %496 = vmatpush1.xpose.msra.mxu0 0.0
    %497 = vmatprep.subr.mxu0 0.0
    %498 = vmatpush1.xpose.msra.mxu0 0.0
    %499 = vmatprep.subr.mxu0 0.0
    %500 = vmatpush1.xpose.msra.mxu0 0.0
    %501 = vmatprep.subr.mxu0 0.0
    %502 = vmatpush1.xpose.msra.mxu0 0.0
    %503 = vmatprep.subr.mxu0 0.0
    %504 = vmatpush1.xpose.msra.mxu0 0.0
    %505 = vmatprep.subr.mxu0 0.0
    %506 = vmatpush1.xpose.msra.mxu0 0.0
    %507 = vmatprep.subr.mxu0 0.0
    %508 = vmatpush1.xpose.msra.mxu0 0.0
    %509 = vmatprep.subr.mxu0 0.0
    %510 = vmatpush1.xpose.msra.mxu0 0.0
    %511 = vmatprep.subr.mxu0 0.0
    %512 = vmatpush1.xpose.msra.mxu0 0.0
    %513 = vmatprep.subr.mxu0 0.0
    %514 = vmatpush1.xpose.msra.mxu0 0.0
    %515 = vmatprep.subr.mxu0 0.0
    %516 = vmatpush1.xpose.msra.mxu0 0.0
    %517 = vmatprep.subr.mxu0 0.0
    %518 = vmatpush1.xpose.msra.mxu0 0.0
    %519 = vmatprep.subr.mxu0 0.0
    %520 = vmatpush1.xpose.msra.mxu0 0.0
    %521 = vmatprep.subr.mxu0 0.0
    %522 = vmatpush1.xpose.msra.mxu0 0.0
    %523 = vmatprep.mubr.f32.mxu0 0.0
    %524 = vmatmul.mubr.f32.gmra.mrb[0].mxu0 %v455
    %v525 = vpop.f32.mrb[0].mxu0
    %v526 = vadd.f32 0.0, %v525
    %v527 = vpop.f32.mrb[0].mxu0
    %528 = vdwg.mxu0
    %v529 = vmul.f32 %v526, 0.35355338
    %v530 = vsel %vm289, %v529, -inf
    %531 = vmax.xlane.f32.xlu0 %v530
    %v532 = vpop.xlane.xlu0 %531
    %v533 = vsub.f32 %v529, %v532
    %v534 = vmul.f32 %v533, 1.442695
    %v535 = vpow.pop %v534
    %v536 = vsel %vm289, %v535, 0.0
    %537 = vadd.xlane.f32.xlu0 %v536
    %v538 = vpop.xlane.xlu0 %537
    %v539 = vrcp.pop %v538
    %v540 = vmul.f32 %v535, %v539
    %541 = vrot.lane.b32.xlu0 %v279, 64
    %v542 = vpop.permute.xlu0 %541
    %v545 = vsel %vm289, %v540, 0
    %547 = vmatprep.subr.mxu0 0.0
    %548 = vmatpush1.msra.mxu0 %v542
    %549 = vmatprep.subr.mxu0 0.0
    %550 = vmatpush1.msra.mxu0 0.0
    %551 = vmatprep.subr.mxu0 0.0
    %552 = vmatpush1.msra.mxu0 0.0
    %553 = vmatprep.subr.mxu0 0.0
    %554 = vmatpush1.msra.mxu0 0.0
    %555 = vmatprep.subr.mxu0 0.0
    %556 = vmatpush1.msra.mxu0 0.0
    %557 = vmatprep.subr.mxu0 0.0
    %558 = vmatpush1.msra.mxu0 0.0
    %559 = vmatprep.subr.mxu0 0.0
    %560 = vmatpush1.msra.mxu0 0.0
    %561 = vmatprep.subr.mxu0 0.0
    %562 = vmatpush1.msra.mxu0 0.0
    %563 = vmatprep.subr.mxu0 0.0
    %564 = vmatpush1.msra.mxu0 0.0
    %565 = vmatprep.subr.mxu0 0.0
    %566 = vmatpush1.msra.mxu0 0.0
    %567 = vmatprep.subr.mxu0 0.0
    %568 = vmatpush1.msra.mxu0 0.0
    %569 = vmatprep.subr.mxu0 0.0
    %570 = vmatpush1.msra.mxu0 0.0
    %571 = vmatprep.subr.mxu0 0.0
    %572 = vmatpush1.msra.mxu0 0.0
    %573 = vmatprep.subr.mxu0 0.0
    %574 = vmatpush1.msra.mxu0 0.0
    %575 = vmatprep.subr.mxu0 0.0
    %576 = vmatpush1.msra.mxu0 0.0
    %577 = vmatprep.subr.mxu0 0.0
    %578 = vmatpush1.msra.mxu0 0.0
    %579 = vmatprep.subr.mxu0 0.0
    %580 = vmatpush1.msra.mxu0 0.0
    %581 = vmatprep.subr.mxu0 0.0
    %582 = vmatpush1.msra.mxu0 0.0
    %583 = vmatprep.subr.mxu0 0.0
    %584 = vmatpush1.msra.mxu0 0.0
    %585 = vmatprep.subr.mxu0 0.0
    %586 = vmatpush1.msra.mxu0 0.0
    %587 = vmatprep.subr.mxu0 0.0
    %588 = vmatpush1.msra.mxu0 0.0
    %589 = vmatprep.subr.mxu0 0.0
    %590 = vmatpush1.msra.mxu0 0.0
    %591 = vmatprep.subr.mxu0 0.0
    %592 = vmatpush1.msra.mxu0 0.0
    %593 = vmatprep.subr.mxu0 0.0
    %594 = vmatpush1.msra.mxu0 0.0
    %595 = vmatprep.subr.mxu0 0.0
    %596 = vmatpush1.msra.mxu0 0.0
    %597 = vmatprep.subr.mxu0 0.0
    %598 = vmatpush1.msra.mxu0 0.0
    %599 = vmatprep.subr.mxu0 0.0
    %600 = vmatpush1.msra.mxu0 0.0
    %601 = vmatprep.subr.mxu0 0.0
    %602 = vmatpush1.msra.mxu0 0.0
    %603 = vmatprep.subr.mxu0 0.0
    %604 = vmatpush1.msra.mxu0 0.0
    %605 = vmatprep.subr.mxu0 0.0
    %606 = vmatpush1.msra.mxu0 0.0
    %607 = vmatprep.subr.mxu0 0.0
    %608 = vmatpush1.msra.mxu0 0.0
    %609 = vmatprep.subr.mxu0 0.0
    %610 = vmatpush1.msra.mxu0 0.0
    %611 = vmatprep.mubr.f32.mxu0 0.0
    %612 = vmatmul.mubr.f32.gmra.mrb[0].mxu0 %v545
    %v613 = vpop.f32.mrb[0].mxu0
    %v614 = vadd.f32 0.0, %v613
    %v615 = vpop.f32.mrb[0].mxu0
    %616 = vdwg.mxu0
    %617 = vrot.lane.b32.xlu0 %v274, 120
    %v618 = vpop.permute.xlu0 %617
    %619 = vrot.lane.b32.xlu0 %v274, 88
    %v620 = vpop.permute.xlu0 %619
    %v621 = vsel %vm289, %v618, 0
    %v623 = vsel %vm289, %v620, 0
    %625 = vmatprep.subr.mxu0 0.0
    %626 = vmatpush1.xpose.msra.mxu0 %v623
    %627 = vmatprep.subr.mxu0 0.0
    %628 = vmatpush1.xpose.msra.mxu0 0.0
    %629 = vmatprep.subr.mxu0 0.0
    %630 = vmatpush1.xpose.msra.mxu0 0.0
    %631 = vmatprep.subr.mxu0 0.0
    %632 = vmatpush1.xpose.msra.mxu0 0.0
    %633 = vmatprep.subr.mxu0 0.0
    %634 = vmatpush1.xpose.msra.mxu0 0.0
    %635 = vmatprep.subr.mxu0 0.0
    %636 = vmatpush1.xpose.msra.mxu0 0.0
    %637 = vmatprep.subr.mxu0 0.0
    %638 = vmatpush1.xpose.msra.mxu0 0.0
    %639 = vmatprep.subr.mxu0 0.0
    %640 = vmatpush1.xpose.msra.mxu0 0.0
    %641 = vmatprep.subr.mxu0 0.0
    %642 = vmatpush1.xpose.msra.mxu0 0.0
    %643 = vmatprep.subr.mxu0 0.0
    %644 = vmatpush1.xpose.msra.mxu0 0.0
    %645 = vmatprep.subr.mxu0 0.0
    %646 = vmatpush1.xpose.msra.mxu0 0.0
    %647 = vmatprep.subr.mxu0 0.0
    %648 = vmatpush1.xpose.msra.mxu0 0.0
    %649 = vmatprep.subr.mxu0 0.0
    %650 = vmatpush1.xpose.msra.mxu0 0.0
    %651 = vmatprep.subr.mxu0 0.0
    %652 = vmatpush1.xpose.msra.mxu0 0.0
    %653 = vmatprep.subr.mxu0 0.0
    %654 = vmatpush1.xpose.msra.mxu0 0.0
    %655 = vmatprep.subr.mxu0 0.0
    %656 = vmatpush1.xpose.msra.mxu0 0.0
    %657 = vmatprep.subr.mxu0 0.0
    %658 = vmatpush1.xpose.msra.mxu0 0.0
    %659 = vmatprep.subr.mxu0 0.0
    %660 = vmatpush1.xpose.msra.mxu0 0.0
    %661 = vmatprep.subr.mxu0 0.0
    %662 = vmatpush1.xpose.msra.mxu0 0.0
    %663 = vmatprep.subr.mxu0 0.0
    %664 = vmatpush1.xpose.msra.mxu0 0.0
    %665 = vmatprep.subr.mxu0 0.0
    %666 = vmatpush1.xpose.msra.mxu0 0.0
    %667 = vmatprep.subr.mxu0 0.0
    %668 = vmatpush1.xpose.msra.mxu0 0.0
    %669 = vmatprep.subr.mxu0 0.0
    %670 = vmatpush1.xpose.msra.mxu0 0.0
    %671 = vmatprep.subr.mxu0 0.0
    %672 = vmatpush1.xpose.msra.mxu0 0.0
    %673 = vmatprep.subr.mxu0 0.0
    %674 = vmatpush1.xpose.msra.mxu0 0.0
    %675 = vmatprep.subr.mxu0 0.0
    %676 = vmatpush1.xpose.msra.mxu0 0.0
    %677 = vmatprep.subr.mxu0 0.0
    %678 = vmatpush1.xpose.msra.mxu0 0.0
    %679 = vmatprep.subr.mxu0 0.0
    %680 = vmatpush1.xpose.msra.mxu0 0.0
    %681 = vmatprep.subr.mxu0 0.0
    %682 = vmatpush1.xpose.msra.mxu0 0.0
    %683 = vmatprep.subr.mxu0 0.0
    %684 = vmatpush1.xpose.msra.mxu0 0.0
    %685 = vmatprep.subr.mxu0 0.0
    %686 = vmatpush1.xpose.msra.mxu0 0.0
    %687 = vmatprep.subr.mxu0 0.0
    %688 = vmatpush1.xpose.msra.mxu0 0.0
    %689 = vmatprep.mubr.f32.mxu0 0.0
    %690 = vmatmul.mubr.f32.gmra.mrb[0].mxu0 %v621
    %v691 = vpop.f32.mrb[0].mxu0
    %v692 = vadd.f32 0.0, %v691
    %v693 = vpop.f32.mrb[0].mxu0
    %694 = vdwg.mxu0
    %v695 = vmul.f32 %v692, 0.35355338
    %v696 = vsel %vm289, %v695, -inf
    %697 = vmax.xlane.f32.xlu0 %v696
    %v698 = vpop.xlane.xlu0 %697
    %v699 = vsub.f32 %v695, %v698
    %v700 = vmul.f32 %v699, 1.442695
    %v701 = vpow.pop %v700
    %v702 = vsel %vm289, %v701, 0.0
    %703 = vadd.xlane.f32.xlu0 %v702
    %v704 = vpop.xlane.xlu0 %703
    %v705 = vrcp.pop %v704
    %v706 = vmul.f32 %v701, %v705
    %707 = vrot.lane.b32.xlu0 %v274, 56
    %v708 = vpop.permute.xlu0 %707
    %v711 = vsel %vm289, %v706, 0
    %713 = vmatprep.subr.mxu0 0.0
    %714 = vmatpush1.msra.mxu0 %v708
    %715 = vmatprep.subr.mxu0 0.0
    %716 = vmatpush1.msra.mxu0 0.0
    %717 = vmatprep.subr.mxu0 0.0
    %718 = vmatpush1.msra.mxu0 0.0
    %719 = vmatprep.subr.mxu0 0.0
    %720 = vmatpush1.msra.mxu0 0.0
    %721 = vmatprep.subr.mxu0 0.0
    %722 = vmatpush1.msra.mxu0 0.0
    %723 = vmatprep.subr.mxu0 0.0
    %724 = vmatpush1.msra.mxu0 0.0
    %725 = vmatprep.subr.mxu0 0.0
    %726 = vmatpush1.msra.mxu0 0.0
    %727 = vmatprep.subr.mxu0 0.0
    %728 = vmatpush1.msra.mxu0 0.0
    %729 = vmatprep.subr.mxu0 0.0
    %730 = vmatpush1.msra.mxu0 0.0
    %731 = vmatprep.subr.mxu0 0.0
    %732 = vmatpush1.msra.mxu0 0.0
    %733 = vmatprep.subr.mxu0 0.0
    %734 = vmatpush1.msra.mxu0 0.0
    %735 = vmatprep.subr.mxu0 0.0
    %736 = vmatpush1.msra.mxu0 0.0
    %737 = vmatprep.subr.mxu0 0.0
    %738 = vmatpush1.msra.mxu0 0.0
    %739 = vmatprep.subr.mxu0 0.0
    %740 = vmatpush1.msra.mxu0 0.0
    %741 = vmatprep.subr.mxu0 0.0
    %742 = vmatpush1.msra.mxu0 0.0
    %743 = vmatprep.subr.mxu0 0.0
    %744 = vmatpush1.msra.mxu0 0.0
    %745 = vmatprep.subr.mxu0 0.0
    %746 = vmatpush1.msra.mxu0 0.0
    %747 = vmatprep.subr.mxu0 0.0
    %748 = vmatpush1.msra.mxu0 0.0
    %749 = vmatprep.subr.mxu0 0.0
    %750 = vmatpush1.msra.mxu0 0.0
    %751 = vmatprep.subr.mxu0 0.0
    %752 = vmatpush1.msra.mxu0 0.0
    %753 = vmatprep.subr.mxu0 0.0
    %754 = vmatpush1.msra.mxu0 0.0
    %755 = vmatprep.subr.mxu0 0.0
    %756 = vmatpush1.msra.mxu0 0.0
    %757 = vmatprep.subr.mxu0 0.0
    %758 = vmatpush1.msra.mxu0 0.0
    %759 = vmatprep.subr.mxu0 0.0
    %760 = vmatpush1.msra.mxu0 0.0
    %761 = vmatprep.subr.mxu0 0.0
    %762 = vmatpush1.msra.mxu0 0.0
    %763 = vmatprep.subr.mxu0 0.0
    %764 = vmatpush1.msra.mxu0 0.0
    %765 = vmatprep.subr.mxu0 0.0
    %766 = vmatpush1.msra.mxu0 0.0
    %767 = vmatprep.subr.mxu0 0.0
    %768 = vmatpush1.msra.mxu0 0.0
    %769 = vmatprep.subr.mxu0 0.0
    %770 = vmatpush1.msra.mxu0 0.0
    %771 = vmatprep.subr.mxu0 0.0
    %772 = vmatpush1.msra.mxu0 0.0
    %773 = vmatprep.subr.mxu0 0.0
    %774 = vmatpush1.msra.mxu0 0.0
    %775 = vmatprep.subr.mxu0 0.0
    %776 = vmatpush1.msra.mxu0 0.0
    %777 = vmatprep.mubr.f32.mxu0 0.0
    %778 = vmatmul.mubr.f32.gmra.mrb[0].mxu0 %v711
    %v779 = vpop.f32.mrb[0].mxu0
    %v780 = vadd.f32 0.0, %v779
    %v781 = vpop.f32.mrb[0].mxu0
    %782 = vdwg.mxu0
    %783 = vrot.lane.b32.xlu0 %v279, 120
    %v784 = vpop.permute.xlu0 %783
    %785 = vrot.lane.b32.xlu0 %v279, 88
    %v786 = vpop.permute.xlu0 %785
    %v787 = vsel %vm289, %v784, 0
    %v789 = vsel %vm289, %v786, 0
    %791 = vmatprep.subr.mxu0 0.0
    %792 = vmatpush1.xpose.msra.mxu0 %v789
    %793 = vmatprep.subr.mxu0 0.0
    %794 = vmatpush1.xpose.msra.mxu0 0.0
    %795 = vmatprep.subr.mxu0 0.0
    %796 = vmatpush1.xpose.msra.mxu0 0.0
    %797 = vmatprep.subr.mxu0 0.0
    %798 = vmatpush1.xpose.msra.mxu0 0.0
    %799 = vmatprep.subr.mxu0 0.0
    %800 = vmatpush1.xpose.msra.mxu0 0.0
    %801 = vmatprep.subr.mxu0 0.0
    %802 = vmatpush1.xpose.msra.mxu0 0.0
    %803 = vmatprep.subr.mxu0 0.0
    %804 = vmatpush1.xpose.msra.mxu0 0.0
    %805 = vmatprep.subr.mxu0 0.0
    %806 = vmatpush1.xpose.msra.mxu0 0.0
    %807 = vmatprep.subr.mxu0 0.0
    %808 = vmatpush1.xpose.msra.mxu0 0.0
    %809 = vmatprep.subr.mxu0 0.0
    %810 = vmatpush1.xpose.msra.mxu0 0.0
    %811 = vmatprep.subr.mxu0 0.0
    %812 = vmatpush1.xpose.msra.mxu0 0.0
    %813 = vmatprep.subr.mxu0 0.0
    %814 = vmatpush1.xpose.msra.mxu0 0.0
    %815 = vmatprep.subr.mxu0 0.0
    %816 = vmatpush1.xpose.msra.mxu0 0.0
    %817 = vmatprep.subr.mxu0 0.0
    %818 = vmatpush1.xpose.msra.mxu0 0.0
    %819 = vmatprep.subr.mxu0 0.0
    %820 = vmatpush1.xpose.msra.mxu0 0.0
    %821 = vmatprep.subr.mxu0 0.0
    %822 = vmatpush1.xpose.msra.mxu0 0.0
    %823 = vmatprep.subr.mxu0 0.0
    %824 = vmatpush1.xpose.msra.mxu0 0.0
    %825 = vmatprep.subr.mxu0 0.0
    %826 = vmatpush1.xpose.msra.mxu0 0.0
    %827 = vmatprep.subr.mxu0 0.0
    %828 = vmatpush1.xpose.msra.mxu0 0.0
    %829 = vmatprep.subr.mxu0 0.0
    %830 = vmatpush1.xpose.msra.mxu0 0.0
    %831 = vmatprep.subr.mxu0 0.0
    %832 = vmatpush1.xpose.msra.mxu0 0.0
    %833 = vmatprep.subr.mxu0 0.0
    %834 = vmatpush1.xpose.msra.mxu0 0.0
    %835 = vmatprep.subr.mxu0 0.0
    %836 = vmatpush1.xpose.msra.mxu0 0.0
    %837 = vmatprep.subr.mxu0 0.0
    %838 = vmatpush1.xpose.msra.mxu0 0.0
    %839 = vmatprep.subr.mxu0 0.0
    %840 = vmatpush1.xpose.msra.mxu0 0.0
    %841 = vmatprep.subr.mxu0 0.0
    %842 = vmatpush1.xpose.msra.mxu0 0.0
    %843 = vmatprep.subr.mxu0 0.0
    %844 = vmatpush1.xpose.msra.mxu0 0.0
    %845 = vmatprep.subr.mxu0 0.0
    %846 = vmatpush1.xpose.msra.mxu0 0.0
    %847 = vmatprep.subr.mxu0 0.0
    %848 = vmatpush1.xpose.msra.mxu0 0.0
    %849 = vmatprep.subr.mxu0 0.0
    %850 = vmatpush1.xpose.msra.mxu0 0.0
    %851 = vmatprep.subr.mxu0 0.0
    %852 = vmatpush1.xpose.msra.mxu0 0.0
    %853 = vmatprep.subr.mxu0 0.0
    %854 = vmatpush1.xpose.msra.mxu0 0.0
    %855 = vmatprep.mubr.f32.mxu0 0.0
    %856 = vmatmul.mubr.f32.gmra.mrb[0].mxu0 %v787
    %v857 = vpop.f32.mrb[0].mxu0
    %v858 = vadd.f32 0.0, %v857
    %v859 = vpop.f32.mrb[0].mxu0
    %860 = vdwg.mxu0
    %v861 = vmul.f32 %v858, 0.35355338
    %v862 = vsel %vm289, %v861, -inf
    %863 = vmax.xlane.f32.xlu0 %v862
    %v864 = vpop.xlane.xlu0 %863
    %v865 = vsub.f32 %v861, %v864
    %v866 = vmul.f32 %v865, 1.442695
    %v867 = vpow.pop %v866
    %v868 = vsel %vm289, %v867, 0.0
    %869 = vadd.xlane.f32.xlu0 %v868
    %v870 = vpop.xlane.xlu0 %869
    %v871 = vrcp.pop %v870
    %v872 = vmul.f32 %v867, %v871
    %873 = vrot.lane.b32.xlu0 %v279, 56
    %v874 = vpop.permute.xlu0 %873
    %v877 = vsel %vm289, %v872, 0
    %879 = vmatprep.subr.mxu0 0.0
    %880 = vmatpush1.msra.mxu0 %v874
    %881 = vmatprep.subr.mxu0 0.0
    %882 = vmatpush1.msra.mxu0 0.0
    %883 = vmatprep.subr.mxu0 0.0
    %884 = vmatpush1.msra.mxu0 0.0
    %885 = vmatprep.subr.mxu0 0.0
    %886 = vmatpush1.msra.mxu0 0.0
    %887 = vmatprep.subr.mxu0 0.0
    %888 = vmatpush1.msra.mxu0 0.0
    %889 = vmatprep.subr.mxu0 0.0
    %890 = vmatpush1.msra.mxu0 0.0
    %891 = vmatprep.subr.mxu0 0.0
    %892 = vmatpush1.msra.mxu0 0.0
    %893 = vmatprep.subr.mxu0 0.0
    %894 = vmatpush1.msra.mxu0 0.0
    %895 = vmatprep.subr.mxu0 0.0
    %896 = vmatpush1.msra.mxu0 0.0
    %897 = vmatprep.subr.mxu0 0.0
    %898 = vmatpush1.msra.mxu0 0.0
    %899 = vmatprep.subr.mxu0 0.0
    %900 = vmatpush1.msra.mxu0 0.0
    %901 = vmatprep.subr.mxu0 0.0
    %902 = vmatpush1.msra.mxu0 0.0
    %903 = vmatprep.subr.mxu0 0.0
    %904 = vmatpush1.msra.mxu0 0.0
    %905 = vmatprep.subr.mxu0 0.0
    %906 = vmatpush1.msra.mxu0 0.0
    %907 = vmatprep.subr.mxu0 0.0
    %908 = vmatpush1.msra.mxu0 0.0
    %909 = vmatprep.subr.mxu0 0.0
    %910 = vmatpush1.msra.mxu0 0.0
    %911 = vmatprep.subr.mxu0 0.0
    %912 = vmatpush1.msra.mxu0 0.0
    %913 = vmatprep.subr.mxu0 0.0
    %914 = vmatpush1.msra.mxu0 0.0
    %915 = vmatprep.subr.mxu0 0.0
    %916 = vmatpush1.msra.mxu0 0.0
    %917 = vmatprep.subr.mxu0 0.0
    %918 = vmatpush1.msra.mxu0 0.0
    %919 = vmatprep.subr.mxu0 0.0
    %920 = vmatpush1.msra.mxu0 0.0
    %921 = vmatprep.subr.mxu0 0.0
    %922 = vmatpush1.msra.mxu0 0.0
    %923 = vmatprep.subr.mxu0 0.0
    %924 = vmatpush1.msra.mxu0 0.0
    %925 = vmatprep.subr.mxu0 0.0
    %926 = vmatpush1.msra.mxu0 0.0
    %927 = vmatprep.subr.mxu0 0.0
    %928 = vmatpush1.msra.mxu0 0.0
    %929 = vmatprep.subr.mxu0 0.0
    %930 = vmatpush1.msra.mxu0 0.0
    %931 = vmatprep.subr.mxu0 0.0
    %932 = vmatpush1.msra.mxu0 0.0
    %933 = vmatprep.subr.mxu0 0.0
    %934 = vmatpush1.msra.mxu0 0.0
    %935 = vmatprep.subr.mxu0 0.0
    %936 = vmatpush1.msra.mxu0 0.0
    %937 = vmatprep.subr.mxu0 0.0
    %938 = vmatpush1.msra.mxu0 0.0
    %939 = vmatprep.subr.mxu0 0.0
    %940 = vmatpush1.msra.mxu0 0.0
    %941 = vmatprep.subr.mxu0 0.0
    %942 = vmatpush1.msra.mxu0 0.0
    %943 = vmatprep.mubr.f32.mxu0 0.0
    %944 = vmatmul.mubr.f32.gmra.mrb[0].mxu0 %v877
    %v945 = vpop.f32.mrb[0].mxu0
    %v946 = vadd.f32 0.0, %v945
    %v947 = vpop.f32.mrb[0].mxu0
    %948 = vdwg.mxu0
    %v950 = vsel %vm289, %v780, 0
    %v953 = vsel %vm289, %v946, 0
    %955 = vmatprep.subr.mxu0 0.0
    %956 = vmatpush1.msra.mxu0 %v283
    %957 = vmatprep.subr.mxu0 0.0
    %958 = vmatpush1.msra.mxu0 0.0
    %959 = vmatprep.subr.mxu0 0.0
    %960 = vmatpush1.msra.mxu0 0.0
    %961 = vmatprep.subr.mxu0 0.0
    %962 = vmatpush1.msra.mxu0 0.0
    %963 = vmatprep.subr.mxu0 0.0
    %964 = vmatpush1.msra.mxu0 0.0
    %965 = vmatprep.subr.mxu0 0.0
    %966 = vmatpush1.msra.mxu0 0.0
    %967 = vmatprep.subr.mxu0 0.0
    %968 = vmatpush1.msra.mxu0 0.0
    %969 = vmatprep.subr.mxu0 0.0
    %970 = vmatpush1.msra.mxu0 0.0
    %971 = vmatprep.subr.mxu0 0.0
    %972 = vmatpush1.msra.mxu0 0.0
    %973 = vmatprep.subr.mxu0 0.0
    %974 = vmatpush1.msra.mxu0 0.0
    %975 = vmatprep.subr.mxu0 0.0
    %976 = vmatpush1.msra.mxu0 0.0
    %977 = vmatprep.subr.mxu0 0.0
    %978 = vmatpush1.msra.mxu0 0.0
    %979 = vmatprep.subr.mxu0 0.0
    %980 = vmatpush1.msra.mxu0 0.0
    %981 = vmatprep.subr.mxu0 0.0
    %982 = vmatpush1.msra.mxu0 0.0
    %983 = vmatprep.subr.mxu0 0.0
    %984 = vmatpush1.msra.mxu0 0.0
    %985 = vmatprep.subr.mxu0 0.0
    %986 = vmatpush1.msra.mxu0 0.0
    %987 = vmatprep.subr.mxu0 0.0
    %988 = vmatpush1.msra.mxu0 0.0
    %989 = vmatprep.subr.mxu0 0.0
    %990 = vmatpush1.msra.mxu0 0.0
    %991 = vmatprep.subr.mxu0 0.0
    %992 = vmatpush1.msra.mxu0 0.0
    %993 = vmatprep.subr.mxu0 0.0
    %994 = vmatpush1.msra.mxu0 0.0
    %995 = vmatprep.subr.mxu0 0.0
    %996 = vmatpush1.msra.mxu0 0.0
    %997 = vmatprep.subr.mxu0 0.0
    %998 = vmatpush1.msra.mxu0 0.0
    %999 = vmatprep.subr.mxu0 0.0
    %1000 = vmatpush1.msra.mxu0 0.0
    %1001 = vmatprep.subr.mxu0 0.0
    %1002 = vmatpush1.msra.mxu0 0.0
    %1003 = vmatprep.subr.mxu0 0.0
    %1004 = vmatpush1.msra.mxu0 0.0
    %1005 = vmatprep.subr.mxu0 0.0
    %1006 = vmatpush1.msra.mxu0 0.0
    %1007 = vmatprep.subr.mxu0 0.0
    %1008 = vmatpush1.msra.mxu0 0.0
    %1009 = vmatprep.subr.mxu0 0.0
    %1010 = vmatpush1.msra.mxu0 0.0
    %1011 = vmatprep.subr.mxu0 0.0
    %1012 = vmatpush1.msra.mxu0 0.0
    %1013 = vmatprep.subr.mxu0 0.0
    %1014 = vmatpush1.msra.mxu0 0.0
    %1015 = vmatprep.subr.mxu0 0.0
    %1016 = vmatpush1.msra.mxu0 0.0
    %1017 = vmatprep.subr.mxu0 0.0
    %1018 = vmatpush1.msra.mxu0 0.0
    %1019 = vmatprep.mubr.f32.mxu0 0.0
    %1020 = vmatmul.mubr.f32.gmra.mrb[0].mxu0 %v950
    %v1021 = vpop.f32.mrb[0].mxu0
    %v1022 = vadd.f32 0.0, %v1021
    %v1023 = vpop.f32.mrb[0].mxu0
    %1024 = vmatprep.mubr.f32.mxu0 0.0
    %1025 = vmatmul.mubr.f32.gmra.mrb[0].mxu0 %v953
    %v1026 = vpop.f32.mrb[0].mxu0
    %v1027 = vadd.f32 0.0, %v1026
    %v1028 = vpop.f32.mrb[0].mxu0
    %1029 = vdwg.mxu0
    %v1031 = vsel %vm289, %v449, 0
    %v1034 = vsel %vm289, %v614, 0
    %1036 = vmatprep.subr.mxu0 0.0
    %1037 = vmatpush1.msra.mxu0 %v282
    %1038 = vmatprep.subr.mxu0 0.0
    %1039 = vmatpush1.msra.mxu0 0.0
    %1040 = vmatprep.subr.mxu0 0.0
    %1041 = vmatpush1.msra.mxu0 0.0
    %1042 = vmatprep.subr.mxu0 0.0
    %1043 = vmatpush1.msra.mxu0 0.0
    %1044 = vmatprep.subr.mxu0 0.0
    %1045 = vmatpush1.msra.mxu0 0.0
    %1046 = vmatprep.subr.mxu0 0.0
    %1047 = vmatpush1.msra.mxu0 0.0
    %1048 = vmatprep.subr.mxu0 0.0
    %1049 = vmatpush1.msra.mxu0 0.0
    %1050 = vmatprep.subr.mxu0 0.0
    %1051 = vmatpush1.msra.mxu0 0.0
    %1052 = vmatprep.subr.mxu0 0.0
    %1053 = vmatpush1.msra.mxu0 0.0
    %1054 = vmatprep.subr.mxu0 0.0
    %1055 = vmatpush1.msra.mxu0 0.0
    %1056 = vmatprep.subr.mxu0 0.0
    %1057 = vmatpush1.msra.mxu0 0.0
    %1058 = vmatprep.subr.mxu0 0.0
    %1059 = vmatpush1.msra.mxu0 0.0
    %1060 = vmatprep.subr.mxu0 0.0
    %1061 = vmatpush1.msra.mxu0 0.0
    %1062 = vmatprep.subr.mxu0 0.0
    %1063 = vmatpush1.msra.mxu0 0.0
    %1064 = vmatprep.subr.mxu0 0.0
    %1065 = vmatpush1.msra.mxu0 0.0
    %1066 = vmatprep.subr.mxu0 0.0
    %1067 = vmatpush1.msra.mxu0 0.0
    %1068 = vmatprep.subr.mxu0 0.0
    %1069 = vmatpush1.msra.mxu0 0.0
    %1070 = vmatprep.subr.mxu0 0.0
    %1071 = vmatpush1.msra.mxu0 0.0
    %1072 = vmatprep.subr.mxu0 0.0
    %1073 = vmatpush1.msra.mxu0 0.0
    %1074 = vmatprep.subr.mxu0 0.0
    %1075 = vmatpush1.msra.mxu0 0.0
    %1076 = vmatprep.subr.mxu0 0.0
    %1077 = vmatpush1.msra.mxu0 0.0
    %1078 = vmatprep.subr.mxu0 0.0
    %1079 = vmatpush1.msra.mxu0 0.0
    %1080 = vmatprep.subr.mxu0 0.0
    %1081 = vmatpush1.msra.mxu0 0.0
    %1082 = vmatprep.subr.mxu0 0.0
    %1083 = vmatpush1.msra.mxu0 0.0
    %1084 = vmatprep.subr.mxu0 0.0
    %1085 = vmatpush1.msra.mxu0 0.0
    %1086 = vmatprep.subr.mxu0 0.0
    %1087 = vmatpush1.msra.mxu0 0.0
    %1088 = vmatprep.subr.mxu0 0.0
    %1089 = vmatpush1.msra.mxu0 0.0
    %1090 = vmatprep.subr.mxu0 0.0
    %1091 = vmatpush1.msra.mxu0 0.0
    %1092 = vmatprep.subr.mxu0 0.0
    %1093 = vmatpush1.msra.mxu0 0.0
    %1094 = vmatprep.subr.mxu0 0.0
    %1095 = vmatpush1.msra.mxu0 0.0
    %1096 = vmatprep.subr.mxu0 0.0
    %1097 = vmatpush1.msra.mxu0 0.0
    %1098 = vmatprep.subr.mxu0 0.0
    %1099 = vmatpush1.msra.mxu0 0.0
    %1100 = vmatprep.mubr.f32.mxu0 0.0
    %1101 = vmatmul.mubr.f32.gmra.mrb[0].mxu0 %v1031
    %v1102 = vpop.f32.mrb[0].mxu0
    %v1103 = vadd.f32 %v1022, %v1102
    %v1104 = vpop.f32.mrb[0].mxu0
    %1105 = vmatprep.mubr.f32.mxu0 0.0
    %1106 = vmatmul.mubr.f32.gmra.mrb[0].mxu0 %v1034
    %v1107 = vpop.f32.mrb[0].mxu0
    %v1108 = vadd.f32 %v1027, %v1107
    %v1109 = vpop.f32.mrb[0].mxu0
    %1110 = vdwg.mxu0
    %1111 = vrot.lane.b32.xlu0 %v274, 112
    %v1112 = vpop.permute.xlu0 %1111
    %1113 = vrot.lane.b32.xlu0 %v274, 80
    %v1114 = vpop.permute.xlu0 %1113
    %v1115 = vsel %vm289, %v1112, 0
    %v1117 = vsel %vm289, %v1114, 0
    %1119 = vmatprep.subr.mxu0 0.0
    %1120 = vmatpush1.xpose.msra.mxu0 %v1117
    %1121 = vmatprep.subr.mxu0 0.0
    %1122 = vmatpush1.xpose.msra.mxu0 0.0
    %1123 = vmatprep.subr.mxu0 0.0
    %1124 = vmatpush1.xpose.msra.mxu0 0.0
    %1125 = vmatprep.subr.mxu0 0.0
    %1126 = vmatpush1.xpose.msra.mxu0 0.0
    %1127 = vmatprep.subr.mxu0 0.0
    %1128 = vmatpush1.xpose.msra.mxu0 0.0
    %1129 = vmatprep.subr.mxu0 0.0
    %1130 = vmatpush1.xpose.msra.mxu0 0.0
    %1131 = vmatprep.subr.mxu0 0.0
    %1132 = vmatpush1.xpose.msra.mxu0 0.0
    %1133 = vmatprep.subr.mxu0 0.0
    %1134 = vmatpush1.xpose.msra.mxu0 0.0
    %1135 = vmatprep.subr.mxu0 0.0
    %1136 = vmatpush1.xpose.msra.mxu0 0.0
    %1137 = vmatprep.subr.mxu0 0.0
    %1138 = vmatpush1.xpose.msra.mxu0 0.0
    %1139 = vmatprep.subr.mxu0 0.0
    %1140 = vmatpush1.xpose.msra.mxu0 0.0
    %1141 = vmatprep.subr.mxu0 0.0
    %1142 = vmatpush1.xpose.msra.mxu0 0.0
    %1143 = vmatprep.subr.mxu0 0.0
    %1144 = vmatpush1.xpose.msra.mxu0 0.0
    %1145 = vmatprep.subr.mxu0 0.0
    %1146 = vmatpush1.xpose.msra.mxu0 0.0
    %1147 = vmatprep.subr.mxu0 0.0
    %1148 = vmatpush1.xpose.msra.mxu0 0.0
    %1149 = vmatprep.subr.mxu0 0.0
    %1150 = vmatpush1.xpose.msra.mxu0 0.0
    %1151 = vmatprep.subr.mxu0 0.0
    %1152 = vmatpush1.xpose.msra.mxu0 0.0
    %1153 = vmatprep.subr.mxu0 0.0
    %1154 = vmatpush1.xpose.msra.mxu0 0.0
    %1155 = vmatprep.subr.mxu0 0.0
    %1156 = vmatpush1.xpose.msra.mxu0 0.0
    %1157 = vmatprep.subr.mxu0 0.0
    %1158 = vmatpush1.xpose.msra.mxu0 0.0
    %1159 = vmatprep.subr.mxu0 0.0
    %1160 = vmatpush1.xpose.msra.mxu0 0.0
    %1161 = vmatprep.subr.mxu0 0.0
    %1162 = vmatpush1.xpose.msra.mxu0 0.0
    %1163 = vmatprep.subr.mxu0 0.0
    %1164 = vmatpush1.xpose.msra.mxu0 0.0
    %1165 = vmatprep.subr.mxu0 0.0
    %1166 = vmatpush1.xpose.msra.mxu0 0.0
    %1167 = vmatprep.subr.mxu0 0.0
    %1168 = vmatpush1.xpose.msra.mxu0 0.0
    %1169 = vmatprep.subr.mxu0 0.0
    %1170 = vmatpush1.xpose.msra.mxu0 0.0
    %1171 = vmatprep.subr.mxu0 0.0
    %1172 = vmatpush1.xpose.msra.mxu0 0.0
    %1173 = vmatprep.subr.mxu0 0.0
    %1174 = vmatpush1.xpose.msra.mxu0 0.0
    %1175 = vmatprep.subr.mxu0 0.0
    %1176 = vmatpush1.xpose.msra.mxu0 0.0
    %1177 = vmatprep.subr.mxu0 0.0
    %1178 = vmatpush1.xpose.msra.mxu0 0.0
    %1179 = vmatprep.subr.mxu0 0.0
    %1180 = vmatpush1.xpose.msra.mxu0 0.0
    %1181 = vmatprep.subr.mxu0 0.0
    %1182 = vmatpush1.xpose.msra.mxu0 0.0
    %1183 = vmatprep.mubr.f32.mxu0 0.0
    %1184 = vmatmul.mubr.f32.gmra.mrb[0].mxu0 %v1115
    %v1185 = vpop.f32.mrb[0].mxu0
    %v1186 = vadd.f32 0.0, %v1185
    %v1187 = vpop.f32.mrb[0].mxu0
    %1188 = vdwg.mxu0
    %v1189 = vmul.f32 %v1186, 0.35355338
    %v1190 = vsel %vm289, %v1189, -inf
    %1191 = vmax.xlane.f32.xlu0 %v1190
    %v1192 = vpop.xlane.xlu0 %1191
    %v1193 = vsub.f32 %v1189, %v1192
    %v1194 = vmul.f32 %v1193, 1.442695
    %v1195 = vpow.pop %v1194
    %v1196 = vsel %vm289, %v1195, 0.0
    %1197 = vadd.xlane.f32.xlu0 %v1196
    %v1198 = vpop.xlane.xlu0 %1197
    %v1199 = vrcp.pop %v1198
    %v1200 = vmul.f32 %v1195, %v1199
    %1201 = vrot.lane.b32.xlu0 %v274, 48
    %v1202 = vpop.permute.xlu0 %1201
    %v1205 = vsel %vm289, %v1200, 0
    %1207 = vmatprep.subr.mxu0 0.0
    %1208 = vmatpush1.msra.mxu0 %v1202
    %1209 = vmatprep.subr.mxu0 0.0
    %1210 = vmatpush1.msra.mxu0 0.0
    %1211 = vmatprep.subr.mxu0 0.0
    %1212 = vmatpush1.msra.mxu0 0.0
    %1213 = vmatprep.subr.mxu0 0.0
    %1214 = vmatpush1.msra.mxu0 0.0
    %1215 = vmatprep.subr.mxu0 0.0
    %1216 = vmatpush1.msra.mxu0 0.0
    %1217 = vmatprep.subr.mxu0 0.0
    %1218 = vmatpush1.msra.mxu0 0.0
    %1219 = vmatprep.subr.mxu0 0.0
    %1220 = vmatpush1.msra.mxu0 0.0
    %1221 = vmatprep.subr.mxu0 0.0
    %1222 = vmatpush1.msra.mxu0 0.0
    %1223 = vmatprep.subr.mxu0 0.0
    %1224 = vmatpush1.msra.mxu0 0.0
    %1225 = vmatprep.subr.mxu0 0.0
    %1226 = vmatpush1.msra.mxu0 0.0
    %1227 = vmatprep.subr.mxu0 0.0
    %1228 = vmatpush1.msra.mxu0 0.0
    %1229 = vmatprep.subr.mxu0 0.0
    %1230 = vmatpush1.msra.mxu0 0.0
    %1231 = vmatprep.subr.mxu0 0.0
    %1232 = vmatpush1.msra.mxu0 0.0
    %1233 = vmatprep.subr.mxu0 0.0
    %1234 = vmatpush1.msra.mxu0 0.0
    %1235 = vmatprep.subr.mxu0 0.0
    %1236 = vmatpush1.msra.mxu0 0.0
    %1237 = vmatprep.subr.mxu0 0.0
    %1238 = vmatpush1.msra.mxu0 0.0
    %1239 = vmatprep.subr.mxu0 0.0
    %1240 = vmatpush1.msra.mxu0 0.0
    %1241 = vmatprep.subr.mxu0 0.0
    %1242 = vmatpush1.msra.mxu0 0.0
    %1243 = vmatprep.subr.mxu0 0.0
    %1244 = vmatpush1.msra.mxu0 0.0
    %1245 = vmatprep.subr.mxu0 0.0
    %1246 = vmatpush1.msra.mxu0 0.0
    %1247 = vmatprep.subr.mxu0 0.0
    %1248 = vmatpush1.msra.mxu0 0.0
    %1249 = vmatprep.subr.mxu0 0.0
    %1250 = vmatpush1.msra.mxu0 0.0
    %1251 = vmatprep.subr.mxu0 0.0
    %1252 = vmatpush1.msra.mxu0 0.0
    %1253 = vmatprep.subr.mxu0 0.0
    %1254 = vmatpush1.msra.mxu0 0.0
    %1255 = vmatprep.subr.mxu0 0.0
    %1256 = vmatpush1.msra.mxu0 0.0
    %1257 = vmatprep.subr.mxu0 0.0
    %1258 = vmatpush1.msra.mxu0 0.0
    %1259 = vmatprep.subr.mxu0 0.0
    %1260 = vmatpush1.msra.mxu0 0.0
    %1261 = vmatprep.subr.mxu0 0.0
    %1262 = vmatpush1.msra.mxu0 0.0
    %1263 = vmatprep.subr.mxu0 0.0
    %1264 = vmatpush1.msra.mxu0 0.0
    %1265 = vmatprep.subr.mxu0 0.0
    %1266 = vmatpush1.msra.mxu0 0.0
    %1267 = vmatprep.subr.mxu0 0.0
    %1268 = vmatpush1.msra.mxu0 0.0
    %1269 = vmatprep.subr.mxu0 0.0
    %1270 = vmatpush1.msra.mxu0 0.0
    %1271 = vmatprep.mubr.f32.mxu0 0.0
    %1272 = vmatmul.mubr.f32.gmra.mrb[0].mxu0 %v1205
    %v1273 = vpop.f32.mrb[0].mxu0
    %v1274 = vadd.f32 0.0, %v1273
    %v1275 = vpop.f32.mrb[0].mxu0
    %1276 = vdwg.mxu0
    %1277 = vrot.lane.b32.xlu0 %v279, 112
    %v1278 = vpop.permute.xlu0 %1277
    %1279 = vrot.lane.b32.xlu0 %v279, 80
    %v1280 = vpop.permute.xlu0 %1279
    %v1281 = vsel %vm289, %v1278, 0
    %v1283 = vsel %vm289, %v1280, 0
    %1285 = vmatprep.subr.mxu0 0.0
    %1286 = vmatpush1.xpose.msra.mxu0 %v1283
    %1287 = vmatprep.subr.mxu0 0.0
    %1288 = vmatpush1.xpose.msra.mxu0 0.0
    %1289 = vmatprep.subr.mxu0 0.0
    %1290 = vmatpush1.xpose.msra.mxu0 0.0
    %1291 = vmatprep.subr.mxu0 0.0
    %1292 = vmatpush1.xpose.msra.mxu0 0.0
    %1293 = vmatprep.subr.mxu0 0.0
    %1294 = vmatpush1.xpose.msra.mxu0 0.0
    %1295 = vmatprep.subr.mxu0 0.0
    %1296 = vmatpush1.xpose.msra.mxu0 0.0
    %1297 = vmatprep.subr.mxu0 0.0
    %1298 = vmatpush1.xpose.msra.mxu0 0.0
    %1299 = vmatprep.subr.mxu0 0.0
    %1300 = vmatpush1.xpose.msra.mxu0 0.0
    %1301 = vmatprep.subr.mxu0 0.0
    %1302 = vmatpush1.xpose.msra.mxu0 0.0
    %1303 = vmatprep.subr.mxu0 0.0
    %1304 = vmatpush1.xpose.msra.mxu0 0.0
    %1305 = vmatprep.subr.mxu0 0.0
    %1306 = vmatpush1.xpose.msra.mxu0 0.0
    %1307 = vmatprep.subr.mxu0 0.0
    %1308 = vmatpush1.xpose.msra.mxu0 0.0
    %1309 = vmatprep.subr.mxu0 0.0
    %1310 = vmatpush1.xpose.msra.mxu0 0.0
    %1311 = vmatprep.subr.mxu0 0.0
    %1312 = vmatpush1.xpose.msra.mxu0 0.0
    %1313 = vmatprep.subr.mxu0 0.0
    %1314 = vmatpush1.xpose.msra.mxu0 0.0
    %1315 = vmatprep.subr.mxu0 0.0
    %1316 = vmatpush1.xpose.msra.mxu0 0.0
    %1317 = vmatprep.subr.mxu0 0.0
    %1318 = vmatpush1.xpose.msra.mxu0 0.0
    %1319 = vmatprep.subr.mxu0 0.0
    %1320 = vmatpush1.xpose.msra.mxu0 0.0
    %1321 = vmatprep.subr.mxu0 0.0
    %1322 = vmatpush1.xpose.msra.mxu0 0.0
    %1323 = vmatprep.subr.mxu0 0.0
    %1324 = vmatpush1.xpose.msra.mxu0 0.0
    %1325 = vmatprep.subr.mxu0 0.0
    %1326 = vmatpush1.xpose.msra.mxu0 0.0
    %1327 = vmatprep.subr.mxu0 0.0
    %1328 = vmatpush1.xpose.msra.mxu0 0.0
    %1329 = vmatprep.subr.mxu0 0.0
    %1330 = vmatpush1.xpose.msra.mxu0 0.0
    %1331 = vmatprep.subr.mxu0 0.0
    %1332 = vmatpush1.xpose.msra.mxu0 0.0
    %1333 = vmatprep.subr.mxu0 0.0
    %1334 = vmatpush1.xpose.msra.mxu0 0.0
    %1335 = vmatprep.subr.mxu0 0.0
    %1336 = vmatpush1.xpose.msra.mxu0 0.0
    %1337 = vmatprep.subr.mxu0 0.0
    %1338 = vmatpush1.xpose.msra.mxu0 0.0
    %1339 = vmatprep.subr.mxu0 0.0
    %1340 = vmatpush1.xpose.msra.mxu0 0.0
    %1341 = vmatprep.subr.mxu0 0.0
    %1342 = vmatpush1.xpose.msra.mxu0 0.0
    %1343 = vmatprep.subr.mxu0 0.0
    %1344 = vmatpush1.xpose.msra.mxu0 0.0
    %1345 = vmatprep.subr.mxu0 0.0
    %1346 = vmatpush1.xpose.msra.mxu0 0.0
    %1347 = vmatprep.subr.mxu0 0.0
    %1348 = vmatpush1.xpose.msra.mxu0 0.0
    %1349 = vmatprep.mubr.f32.mxu0 0.0
    %1350 = vmatmul.mubr.f32.gmra.mrb[0].mxu0 %v1281
    %v1351 = vpop.f32.mrb[0].mxu0
    %v1352 = vadd.f32 0.0, %v1351
    %v1353 = vpop.f32.mrb[0].mxu0
    %1354 = vdwg.mxu0
    %v1355 = vmul.f32 %v1352, 0.35355338
    %v1356 = vsel %vm289, %v1355, -inf
    %1357 = vmax.xlane.f32.xlu0 %v1356
    %v1358 = vpop.xlane.xlu0 %1357
    %v1359 = vsub.f32 %v1355, %v1358
    %v1360 = vmul.f32 %v1359, 1.442695
    %v1361 = vpow.pop %v1360
    %v1362 = vsel %vm289, %v1361, 0.0
    %1363 = vadd.xlane.f32.xlu0 %v1362
    %v1364 = vpop.xlane.xlu0 %1363
    %v1365 = vrcp.pop %v1364
    %v1366 = vmul.f32 %v1361, %v1365
    %1367 = vrot.lane.b32.xlu0 %v279, 48
    %v1368 = vpop.permute.xlu0 %1367
    %v1371 = vsel %vm289, %v1366, 0
    %1373 = vmatprep.subr.mxu0 0.0
    %1374 = vmatpush1.msra.mxu0 %v1368
    %1375 = vmatprep.subr.mxu0 0.0
    %1376 = vmatpush1.msra.mxu0 0.0
    %1377 = vmatprep.subr.mxu0 0.0
    %1378 = vmatpush1.msra.mxu0 0.0
    %1379 = vmatprep.subr.mxu0 0.0
    %1380 = vmatpush1.msra.mxu0 0.0
    %1381 = vmatprep.subr.mxu0 0.0
    %1382 = vmatpush1.msra.mxu0 0.0
    %1383 = vmatprep.subr.mxu0 0.0
    %1384 = vmatpush1.msra.mxu0 0.0
    %1385 = vmatprep.subr.mxu0 0.0
    %1386 = vmatpush1.msra.mxu0 0.0
    %1387 = vmatprep.subr.mxu0 0.0
    %1388 = vmatpush1.msra.mxu0 0.0
    %1389 = vmatprep.subr.mxu0 0.0
    %1390 = vmatpush1.msra.mxu0 0.0
    %1391 = vmatprep.subr.mxu0 0.0
    %1392 = vmatpush1.msra.mxu0 0.0
    %1393 = vmatprep.subr.mxu0 0.0
    %1394 = vmatpush1.msra.mxu0 0.0
    %1395 = vmatprep.subr.mxu0 0.0
    %1396 = vmatpush1.msra.mxu0 0.0
    %1397 = vmatprep.subr.mxu0 0.0
    %1398 = vmatpush1.msra.mxu0 0.0
    %1399 = vmatprep.subr.mxu0 0.0
    %1400 = vmatpush1.msra.mxu0 0.0
    %1401 = vmatprep.subr.mxu0 0.0
    %1402 = vmatpush1.msra.mxu0 0.0
    %1403 = vmatprep.subr.mxu0 0.0
    %1404 = vmatpush1.msra.mxu0 0.0
    %1405 = vmatprep.subr.mxu0 0.0
    %1406 = vmatpush1.msra.mxu0 0.0
    %1407 = vmatprep.subr.mxu0 0.0
    %1408 = vmatpush1.msra.mxu0 0.0
    %1409 = vmatprep.subr.mxu0 0.0
    %1410 = vmatpush1.msra.mxu0 0.0
    %1411 = vmatprep.subr.mxu0 0.0
    %1412 = vmatpush1.msra.mxu0 0.0
    %1413 = vmatprep.subr.mxu0 0.0
    %1414 = vmatpush1.msra.mxu0 0.0
    %1415 = vmatprep.subr.mxu0 0.0
    %1416 = vmatpush1.msra.mxu0 0.0
    %1417 = vmatprep.subr.mxu0 0.0
    %1418 = vmatpush1.msra.mxu0 0.0
    %1419 = vmatprep.subr.mxu0 0.0
    %1420 = vmatpush1.msra.mxu0 0.0
    %1421 = vmatprep.subr.mxu0 0.0
    %1422 = vmatpush1.msra.mxu0 0.0
    %1423 = vmatprep.subr.mxu0 0.0
    %1424 = vmatpush1.msra.mxu0 0.0
    %1425 = vmatprep.subr.mxu0 0.0
    %1426 = vmatpush1.msra.mxu0 0.0
    %1427 = vmatprep.subr.mxu0 0.0
    %1428 = vmatpush1.msra.mxu0 0.0
    %1429 = vmatprep.subr.mxu0 0.0
    %1430 = vmatpush1.msra.mxu0 0.0
    %1431 = vmatprep.subr.mxu0 0.0
    %1432 = vmatpush1.msra.mxu0 0.0
    %1433 = vmatprep.subr.mxu0 0.0
    %1434 = vmatpush1.msra.mxu0 0.0
    %1435 = vmatprep.subr.mxu0 0.0
    %1436 = vmatpush1.msra.mxu0 0.0
    %1437 = vmatprep.mubr.f32.mxu0 0.0
    %1438 = vmatmul.mubr.f32.gmra.mrb[0].mxu0 %v1371
    %v1439 = vpop.f32.mrb[0].mxu0
    %v1440 = vadd.f32 0.0, %v1439
    %v1441 = vpop.f32.mrb[0].mxu0
    %1442 = vdwg.mxu0
    %v1444 = vsel %vm289, %v1274, 0
    %v1447 = vsel %vm289, %v1440, 0
    %1449 = vmatprep.subr.mxu0 0.0
    %1450 = vmatpush1.msra.mxu0 %v284
    %1451 = vmatprep.subr.mxu0 0.0
    %1452 = vmatpush1.msra.mxu0 0.0
    %1453 = vmatprep.subr.mxu0 0.0
    %1454 = vmatpush1.msra.mxu0 0.0
    %1455 = vmatprep.subr.mxu0 0.0
    %1456 = vmatpush1.msra.mxu0 0.0
    %1457 = vmatprep.subr.mxu0 0.0
    %1458 = vmatpush1.msra.mxu0 0.0
    %1459 = vmatprep.subr.mxu0 0.0
    %1460 = vmatpush1.msra.mxu0 0.0
    %1461 = vmatprep.subr.mxu0 0.0
    %1462 = vmatpush1.msra.mxu0 0.0
    %1463 = vmatprep.subr.mxu0 0.0
    %1464 = vmatpush1.msra.mxu0 0.0
    %1465 = vmatprep.subr.mxu0 0.0
    %1466 = vmatpush1.msra.mxu0 0.0
    %1467 = vmatprep.subr.mxu0 0.0
    %1468 = vmatpush1.msra.mxu0 0.0
    %1469 = vmatprep.subr.mxu0 0.0
    %1470 = vmatpush1.msra.mxu0 0.0
    %1471 = vmatprep.subr.mxu0 0.0
    %1472 = vmatpush1.msra.mxu0 0.0
    %1473 = vmatprep.subr.mxu0 0.0
    %1474 = vmatpush1.msra.mxu0 0.0
    %1475 = vmatprep.subr.mxu0 0.0
    %1476 = vmatpush1.msra.mxu0 0.0
    %1477 = vmatprep.subr.mxu0 0.0
    %1478 = vmatpush1.msra.mxu0 0.0
    %1479 = vmatprep.subr.mxu0 0.0
    %1480 = vmatpush1.msra.mxu0 0.0
    %1481 = vmatprep.subr.mxu0 0.0
    %1482 = vmatpush1.msra.mxu0 0.0
    %1483 = vmatprep.subr.mxu0 0.0
    %1484 = vmatpush1.msra.mxu0 0.0
    %1485 = vmatprep.subr.mxu0 0.0
    %1486 = vmatpush1.msra.mxu0 0.0
    %1487 = vmatprep.subr.mxu0 0.0
    %1488 = vmatpush1.msra.mxu0 0.0
    %1489 = vmatprep.subr.mxu0 0.0
    %1490 = vmatpush1.msra.mxu0 0.0
    %1491 = vmatprep.subr.mxu0 0.0
    %1492 = vmatpush1.msra.mxu0 0.0
    %1493 = vmatprep.subr.mxu0 0.0
    %1494 = vmatpush1.msra.mxu0 0.0
    %1495 = vmatprep.subr.mxu0 0.0
    %1496 = vmatpush1.msra.mxu0 0.0
    %1497 = vmatprep.subr.mxu0 0.0
    %1498 = vmatpush1.msra.mxu0 0.0
    %1499 = vmatprep.subr.mxu0 0.0
    %1500 = vmatpush1.msra.mxu0 0.0
    %1501 = vmatprep.subr.mxu0 0.0
    %1502 = vmatpush1.msra.mxu0 0.0
    %1503 = vmatprep.subr.mxu0 0.0
    %1504 = vmatpush1.msra.mxu0 0.0
    %1505 = vmatprep.subr.mxu0 0.0
    %1506 = vmatpush1.msra.mxu0 0.0
    %1507 = vmatprep.subr.mxu0 0.0
    %1508 = vmatpush1.msra.mxu0 0.0
    %1509 = vmatprep.subr.mxu0 0.0
    %1510 = vmatpush1.msra.mxu0 0.0
    %1511 = vmatprep.subr.mxu0 0.0
    %1512 = vmatpush1.msra.mxu0 0.0
    %1513 = vmatprep.mubr.f32.mxu0 0.0
    %1514 = vmatmul.mubr.f32.gmra.mrb[0].mxu0 %v1444
    %v1515 = vpop.f32.mrb[0].mxu0
    %v1516 = vadd.f32 0.0, %v1515
    %v1517 = vpop.f32.mrb[0].mxu0
    %1518 = vmatprep.mubr.f32.mxu0 0.0
    %1519 = vmatmul.mubr.f32.gmra.mrb[0].mxu0 %v1447
    %v1520 = vpop.f32.mrb[0].mxu0
    %v1521 = vadd.f32 0.0, %v1520
    %v1522 = vpop.f32.mrb[0].mxu0
    %1523 = vdwg.mxu0
    %v1524 = vadd.f32 %v1103, %v1516
    %v1525 = vadd.f32 %v1108, %v1521
    %1526 = vrot.lane.b32.xlu0 %v274, 104
    %v1527 = vpop.permute.xlu0 %1526
    %1528 = vrot.lane.b32.xlu0 %v274, 72
    %v1529 = vpop.permute.xlu0 %1528
    %v1530 = vsel %vm289, %v1527, 0
    %v1532 = vsel %vm289, %v1529, 0
    %1534 = vmatprep.subr.mxu0 0.0
    %1535 = vmatpush1.xpose.msra.mxu0 %v1532
    %1536 = vmatprep.subr.mxu0 0.0
    %1537 = vmatpush1.xpose.msra.mxu0 0.0
    %1538 = vmatprep.subr.mxu0 0.0
    %1539 = vmatpush1.xpose.msra.mxu0 0.0
    %1540 = vmatprep.subr.mxu0 0.0
    %1541 = vmatpush1.xpose.msra.mxu0 0.0
    %1542 = vmatprep.subr.mxu0 0.0
    %1543 = vmatpush1.xpose.msra.mxu0 0.0
    %1544 = vmatprep.subr.mxu0 0.0
    %1545 = vmatpush1.xpose.msra.mxu0 0.0
    %1546 = vmatprep.subr.mxu0 0.0
    %1547 = vmatpush1.xpose.msra.mxu0 0.0
    %1548 = vmatprep.subr.mxu0 0.0
    %1549 = vmatpush1.xpose.msra.mxu0 0.0
    %1550 = vmatprep.subr.mxu0 0.0
    %1551 = vmatpush1.xpose.msra.mxu0 0.0
    %1552 = vmatprep.subr.mxu0 0.0
    %1553 = vmatpush1.xpose.msra.mxu0 0.0
    %1554 = vmatprep.subr.mxu0 0.0
    %1555 = vmatpush1.xpose.msra.mxu0 0.0
    %1556 = vmatprep.subr.mxu0 0.0
    %1557 = vmatpush1.xpose.msra.mxu0 0.0
    %1558 = vmatprep.subr.mxu0 0.0
    %1559 = vmatpush1.xpose.msra.mxu0 0.0
    %1560 = vmatprep.subr.mxu0 0.0
    %1561 = vmatpush1.xpose.msra.mxu0 0.0
    %1562 = vmatprep.subr.mxu0 0.0
    %1563 = vmatpush1.xpose.msra.mxu0 0.0
    %1564 = vmatprep.subr.mxu0 0.0
    %1565 = vmatpush1.xpose.msra.mxu0 0.0
    %1566 = vmatprep.subr.mxu0 0.0
    %1567 = vmatpush1.xpose.msra.mxu0 0.0
    %1568 = vmatprep.subr.mxu0 0.0
    %1569 = vmatpush1.xpose.msra.mxu0 0.0
    %1570 = vmatprep.subr.mxu0 0.0
    %1571 = vmatpush1.xpose.msra.mxu0 0.0
    %1572 = vmatprep.subr.mxu0 0.0
    %1573 = vmatpush1.xpose.msra.mxu0 0.0
    %1574 = vmatprep.subr.mxu0 0.0
    %1575 = vmatpush1.xpose.msra.mxu0 0.0
    %1576 = vmatprep.subr.mxu0 0.0
    %1577 = vmatpush1.xpose.msra.mxu0 0.0
    %1578 = vmatprep.subr.mxu0 0.0
    %1579 = vmatpush1.xpose.msra.mxu0 0.0
    %1580 = vmatprep.subr.mxu0 0.0
    %1581 = vmatpush1.xpose.msra.mxu0 0.0
    %1582 = vmatprep.subr.mxu0 0.0
    %1583 = vmatpush1.xpose.msra.mxu0 0.0
    %1584 = vmatprep.subr.mxu0 0.0
    %1585 = vmatpush1.xpose.msra.mxu0 0.0
    %1586 = vmatprep.subr.mxu0 0.0
    %1587 = vmatpush1.xpose.msra.mxu0 0.0
    %1588 = vmatprep.subr.mxu0 0.0
    %1589 = vmatpush1.xpose.msra.mxu0 0.0
    %1590 = vmatprep.subr.mxu0 0.0
    %1591 = vmatpush1.xpose.msra.mxu0 0.0
    %1592 = vmatprep.subr.mxu0 0.0
    %1593 = vmatpush1.xpose.msra.mxu0 0.0
    %1594 = vmatprep.subr.mxu0 0.0
    %1595 = vmatpush1.xpose.msra.mxu0 0.0
    %1596 = vmatprep.subr.mxu0 0.0
    %1597 = vmatpush1.xpose.msra.mxu0 0.0
    %1598 = vmatprep.mubr.f32.mxu0 0.0
    %1599 = vmatmul.mubr.f32.gmra.mrb[0].mxu0 %v1530
    %v1600 = vpop.f32.mrb[0].mxu0
    %v1601 = vadd.f32 0.0, %v1600
    %v1602 = vpop.f32.mrb[0].mxu0
    %1603 = vdwg.mxu0
    %v1604 = vmul.f32 %v1601, 0.35355338
    %v1605 = vsel %vm289, %v1604, -inf
    %1606 = vmax.xlane.f32.xlu0 %v1605
    %v1607 = vpop.xlane.xlu0 %1606
    %v1608 = vsub.f32 %v1604, %v1607
    %v1609 = vmul.f32 %v1608, 1.442695
    %v1610 = vpow.pop %v1609
    %v1611 = vsel %vm289, %v1610, 0.0
    %1612 = vadd.xlane.f32.xlu0 %v1611
    %v1613 = vpop.xlane.xlu0 %1612
    %v1614 = vrcp.pop %v1613
    %v1615 = vmul.f32 %v1610, %v1614
    %1616 = vrot.lane.b32.xlu0 %v274, 40
    %v1617 = vpop.permute.xlu0 %1616
    %v1620 = vsel %vm289, %v1615, 0
    %1622 = vmatprep.subr.mxu0 0.0
    %1623 = vmatpush1.msra.mxu0 %v1617
    %1624 = vmatprep.subr.mxu0 0.0
    %1625 = vmatpush1.msra.mxu0 0.0
    %1626 = vmatprep.subr.mxu0 0.0
    %1627 = vmatpush1.msra.mxu0 0.0
    %1628 = vmatprep.subr.mxu0 0.0
    %1629 = vmatpush1.msra.mxu0 0.0
    %1630 = vmatprep.subr.mxu0 0.0
    %1631 = vmatpush1.msra.mxu0 0.0
    %1632 = vmatprep.subr.mxu0 0.0
    %1633 = vmatpush1.msra.mxu0 0.0
    %1634 = vmatprep.subr.mxu0 0.0
    %1635 = vmatpush1.msra.mxu0 0.0
    %1636 = vmatprep.subr.mxu0 0.0
    %1637 = vmatpush1.msra.mxu0 0.0
    %1638 = vmatprep.subr.mxu0 0.0
    %1639 = vmatpush1.msra.mxu0 0.0
    %1640 = vmatprep.subr.mxu0 0.0
    %1641 = vmatpush1.msra.mxu0 0.0
    %1642 = vmatprep.subr.mxu0 0.0
    %1643 = vmatpush1.msra.mxu0 0.0
    %1644 = vmatprep.subr.mxu0 0.0
    %1645 = vmatpush1.msra.mxu0 0.0
    %1646 = vmatprep.subr.mxu0 0.0
    %1647 = vmatpush1.msra.mxu0 0.0
    %1648 = vmatprep.subr.mxu0 0.0
    %1649 = vmatpush1.msra.mxu0 0.0
    %1650 = vmatprep.subr.mxu0 0.0
    %1651 = vmatpush1.msra.mxu0 0.0
    %1652 = vmatprep.subr.mxu0 0.0
    %1653 = vmatpush1.msra.mxu0 0.0
    %1654 = vmatprep.subr.mxu0 0.0
    %1655 = vmatpush1.msra.mxu0 0.0
    %1656 = vmatprep.subr.mxu0 0.0
    %1657 = vmatpush1.msra.mxu0 0.0
    %1658 = vmatprep.subr.mxu0 0.0
    %1659 = vmatpush1.msra.mxu0 0.0
    %1660 = vmatprep.subr.mxu0 0.0
    %1661 = vmatpush1.msra.mxu0 0.0
    %1662 = vmatprep.subr.mxu0 0.0
    %1663 = vmatpush1.msra.mxu0 0.0
    %1664 = vmatprep.subr.mxu0 0.0
    %1665 = vmatpush1.msra.mxu0 0.0
    %1666 = vmatprep.subr.mxu0 0.0
    %1667 = vmatpush1.msra.mxu0 0.0
    %1668 = vmatprep.subr.mxu0 0.0
    %1669 = vmatpush1.msra.mxu0 0.0
    %1670 = vmatprep.subr.mxu0 0.0
    %1671 = vmatpush1.msra.mxu0 0.0
    %1672 = vmatprep.subr.mxu0 0.0
    %1673 = vmatpush1.msra.mxu0 0.0
    %1674 = vmatprep.subr.mxu0 0.0
    %1675 = vmatpush1.msra.mxu0 0.0
    %1676 = vmatprep.subr.mxu0 0.0
    %1677 = vmatpush1.msra.mxu0 0.0
    %1678 = vmatprep.subr.mxu0 0.0
    %1679 = vmatpush1.msra.mxu0 0.0
    %1680 = vmatprep.subr.mxu0 0.0
    %1681 = vmatpush1.msra.mxu0 0.0
    %1682 = vmatprep.subr.mxu0 0.0
    %1683 = vmatpush1.msra.mxu0 0.0
    %1684 = vmatprep.subr.mxu0 0.0
    %1685 = vmatpush1.msra.mxu0 0.0
    %1686 = vmatprep.mubr.f32.mxu0 0.0
    %1687 = vmatmul.mubr.f32.gmra.mrb[0].mxu0 %v1620
    %v1688 = vpop.f32.mrb[0].mxu0
    %v1689 = vadd.f32 0.0, %v1688
    %v1690 = vpop.f32.mrb[0].mxu0
    %1691 = vdwg.mxu0
    %1692 = vrot.lane.b32.xlu0 %v279, 104
    %v1693 = vpop.permute.xlu0 %1692
    %1694 = vrot.lane.b32.xlu0 %v279, 72
    %v1695 = vpop.permute.xlu0 %1694
    %v1696 = vsel %vm289, %v1693, 0
    %v1698 = vsel %vm289, %v1695, 0
    %1700 = vmatprep.subr.mxu0 0.0
    %1701 = vmatpush1.xpose.msra.mxu0 %v1698
    %1702 = vmatprep.subr.mxu0 0.0
    %1703 = vmatpush1.xpose.msra.mxu0 0.0
    %1704 = vmatprep.subr.mxu0 0.0
    %1705 = vmatpush1.xpose.msra.mxu0 0.0
    %1706 = vmatprep.subr.mxu0 0.0
    %1707 = vmatpush1.xpose.msra.mxu0 0.0
    %1708 = vmatprep.subr.mxu0 0.0
    %1709 = vmatpush1.xpose.msra.mxu0 0.0
    %1710 = vmatprep.subr.mxu0 0.0
    %1711 = vmatpush1.xpose.msra.mxu0 0.0
    %1712 = vmatprep.subr.mxu0 0.0
    %1713 = vmatpush1.xpose.msra.mxu0 0.0
    %1714 = vmatprep.subr.mxu0 0.0
    %1715 = vmatpush1.xpose.msra.mxu0 0.0
    %1716 = vmatprep.subr.mxu0 0.0
    %1717 = vmatpush1.xpose.msra.mxu0 0.0
    %1718 = vmatprep.subr.mxu0 0.0
    %1719 = vmatpush1.xpose.msra.mxu0 0.0
    %1720 = vmatprep.subr.mxu0 0.0
    %1721 = vmatpush1.xpose.msra.mxu0 0.0
    %1722 = vmatprep.subr.mxu0 0.0
    %1723 = vmatpush1.xpose.msra.mxu0 0.0
    %1724 = vmatprep.subr.mxu0 0.0
    %1725 = vmatpush1.xpose.msra.mxu0 0.0
    %1726 = vmatprep.subr.mxu0 0.0
    %1727 = vmatpush1.xpose.msra.mxu0 0.0
    %1728 = vmatprep.subr.mxu0 0.0
    %1729 = vmatpush1.xpose.msra.mxu0 0.0
    %1730 = vmatprep.subr.mxu0 0.0
    %1731 = vmatpush1.xpose.msra.mxu0 0.0
    %1732 = vmatprep.subr.mxu0 0.0
    %1733 = vmatpush1.xpose.msra.mxu0 0.0
    %1734 = vmatprep.subr.mxu0 0.0
    %1735 = vmatpush1.xpose.msra.mxu0 0.0
    %1736 = vmatprep.subr.mxu0 0.0
    %1737 = vmatpush1.xpose.msra.mxu0 0.0
    %1738 = vmatprep.subr.mxu0 0.0
    %1739 = vmatpush1.xpose.msra.mxu0 0.0
    %1740 = vmatprep.subr.mxu0 0.0
    %1741 = vmatpush1.xpose.msra.mxu0 0.0
    %1742 = vmatprep.subr.mxu0 0.0
    %1743 = vmatpush1.xpose.msra.mxu0 0.0
    %1744 = vmatprep.subr.mxu0 0.0
    %1745 = vmatpush1.xpose.msra.mxu0 0.0
    %1746 = vmatprep.subr.mxu0 0.0
    %1747 = vmatpush1.xpose.msra.mxu0 0.0
    %1748 = vmatprep.subr.mxu0 0.0
    %1749 = vmatpush1.xpose.msra.mxu0 0.0
    %1750 = vmatprep.subr.mxu0 0.0
    %1751 = vmatpush1.xpose.msra.mxu0 0.0
    %1752 = vmatprep.subr.mxu0 0.0
    %1753 = vmatpush1.xpose.msra.mxu0 0.0
    %1754 = vmatprep.subr.mxu0 0.0
    %1755 = vmatpush1.xpose.msra.mxu0 0.0
    %1756 = vmatprep.subr.mxu0 0.0
    %1757 = vmatpush1.xpose.msra.mxu0 0.0
    %1758 = vmatprep.subr.mxu0 0.0
    %1759 = vmatpush1.xpose.msra.mxu0 0.0
    %1760 = vmatprep.subr.mxu0 0.0
    %1761 = vmatpush1.xpose.msra.mxu0 0.0
    %1762 = vmatprep.subr.mxu0 0.0
    %1763 = vmatpush1.xpose.msra.mxu0 0.0
    %1764 = vmatprep.mubr.f32.mxu0 0.0
    %1765 = vmatmul.mubr.f32.gmra.mrb[0].mxu0 %v1696
    %v1766 = vpop.f32.mrb[0].mxu0
    %v1767 = vadd.f32 0.0, %v1766
    %v1768 = vpop.f32.mrb[0].mxu0
    %1769 = vdwg.mxu0
    %v1770 = vmul.f32 %v1767, 0.35355338
    %v1771 = vsel %vm289, %v1770, -inf
    %1772 = vmax.xlane.f32.xlu0 %v1771
    %v1773 = vpop.xlane.xlu0 %1772
    %v1774 = vsub.f32 %v1770, %v1773
    %v1775 = vmul.f32 %v1774, 1.442695
    %v1776 = vpow.pop %v1775
    %v1777 = vsel %vm289, %v1776, 0.0
    %1778 = vadd.xlane.f32.xlu0 %v1777
    %v1779 = vpop.xlane.xlu0 %1778
    %v1780 = vrcp.pop %v1779
    %v1781 = vmul.f32 %v1776, %v1780
    %1782 = vrot.lane.b32.xlu0 %v279, 40
    %v1783 = vpop.permute.xlu0 %1782
    %v1786 = vsel %vm289, %v1781, 0
    %1788 = vmatprep.subr.mxu0 0.0
    %1789 = vmatpush1.msra.mxu0 %v1783
    %1790 = vmatprep.subr.mxu0 0.0
    %1791 = vmatpush1.msra.mxu0 0.0
    %1792 = vmatprep.subr.mxu0 0.0
    %1793 = vmatpush1.msra.mxu0 0.0
    %1794 = vmatprep.subr.mxu0 0.0
    %1795 = vmatpush1.msra.mxu0 0.0
    %1796 = vmatprep.subr.mxu0 0.0
    %1797 = vmatpush1.msra.mxu0 0.0
    %1798 = vmatprep.subr.mxu0 0.0
    %1799 = vmatpush1.msra.mxu0 0.0
    %1800 = vmatprep.subr.mxu0 0.0
    %1801 = vmatpush1.msra.mxu0 0.0
    %1802 = vmatprep.subr.mxu0 0.0
    %1803 = vmatpush1.msra.mxu0 0.0
    %1804 = vmatprep.subr.mxu0 0.0
    %1805 = vmatpush1.msra.mxu0 0.0
    %1806 = vmatprep.subr.mxu0 0.0
    %1807 = vmatpush1.msra.mxu0 0.0
    %1808 = vmatprep.subr.mxu0 0.0
    %1809 = vmatpush1.msra.mxu0 0.0
    %1810 = vmatprep.subr.mxu0 0.0
    %1811 = vmatpush1.msra.mxu0 0.0
    %1812 = vmatprep.subr.mxu0 0.0
    %1813 = vmatpush1.msra.mxu0 0.0
    %1814 = vmatprep.subr.mxu0 0.0
    %1815 = vmatpush1.msra.mxu0 0.0
    %1816 = vmatprep.subr.mxu0 0.0
    %1817 = vmatpush1.msra.mxu0 0.0
    %1818 = vmatprep.subr.mxu0 0.0
    %1819 = vmatpush1.msra.mxu0 0.0
    %1820 = vmatprep.subr.mxu0 0.0
    %1821 = vmatpush1.msra.mxu0 0.0
    %1822 = vmatprep.subr.mxu0 0.0
    %1823 = vmatpush1.msra.mxu0 0.0
    %1824 = vmatprep.subr.mxu0 0.0
    %1825 = vmatpush1.msra.mxu0 0.0
    %1826 = vmatprep.subr.mxu0 0.0
    %1827 = vmatpush1.msra.mxu0 0.0
    %1828 = vmatprep.subr.mxu0 0.0
    %1829 = vmatpush1.msra.mxu0 0.0
    %1830 = vmatprep.subr.mxu0 0.0
    %1831 = vmatpush1.msra.mxu0 0.0
    %1832 = vmatprep.subr.mxu0 0.0
    %1833 = vmatpush1.msra.mxu0 0.0
    %1834 = vmatprep.subr.mxu0 0.0
    %1835 = vmatpush1.msra.mxu0 0.0
    %1836 = vmatprep.subr.mxu0 0.0
    %1837 = vmatpush1.msra.mxu0 0.0
    %1838 = vmatprep.subr.mxu0 0.0
    %1839 = vmatpush1.msra.mxu0 0.0
    %1840 = vmatprep.subr.mxu0 0.0
    %1841 = vmatpush1.msra.mxu0 0.0
    %1842 = vmatprep.subr.mxu0 0.0
    %1843 = vmatpush1.msra.mxu0 0.0
    %1844 = vmatprep.subr.mxu0 0.0
    %1845 = vmatpush1.msra.mxu0 0.0
    %1846 = vmatprep.subr.mxu0 0.0
    %1847 = vmatpush1.msra.mxu0 0.0
    %1848 = vmatprep.subr.mxu0 0.0
    %1849 = vmatpush1.msra.mxu0 0.0
    %1850 = vmatprep.subr.mxu0 0.0
    %1851 = vmatpush1.msra.mxu0 0.0
    %1852 = vmatprep.mubr.f32.mxu0 0.0
    %1853 = vmatmul.mubr.f32.gmra.mrb[0].mxu0 %v1786
    %v1854 = vpop.f32.mrb[0].mxu0
    %v1855 = vadd.f32 0.0, %v1854
    %v1856 = vpop.f32.mrb[0].mxu0
    %1857 = vdwg.mxu0
    %v1859 = vsel %vm289, %v1689, 0
    %v1862 = vsel %vm289, %v1855, 0
    %1864 = vmatprep.subr.mxu0 0.0
    %1865 = vmatpush1.msra.mxu0 %v285
    %1866 = vmatprep.subr.mxu0 0.0
    %1867 = vmatpush1.msra.mxu0 0.0
    %1868 = vmatprep.subr.mxu0 0.0
    %1869 = vmatpush1.msra.mxu0 0.0
    %1870 = vmatprep.subr.mxu0 0.0
    %1871 = vmatpush1.msra.mxu0 0.0
    %1872 = vmatprep.subr.mxu0 0.0
    %1873 = vmatpush1.msra.mxu0 0.0
    %1874 = vmatprep.subr.mxu0 0.0
    %1875 = vmatpush1.msra.mxu0 0.0
    %1876 = vmatprep.subr.mxu0 0.0
    %1877 = vmatpush1.msra.mxu0 0.0
    %1878 = vmatprep.subr.mxu0 0.0
    %1879 = vmatpush1.msra.mxu0 0.0
    %1880 = vmatprep.subr.mxu0 0.0
    %1881 = vmatpush1.msra.mxu0 0.0
    %1882 = vmatprep.subr.mxu0 0.0
    %1883 = vmatpush1.msra.mxu0 0.0
    %1884 = vmatprep.subr.mxu0 0.0
    %1885 = vmatpush1.msra.mxu0 0.0
    %1886 = vmatprep.subr.mxu0 0.0
    %1887 = vmatpush1.msra.mxu0 0.0
    %1888 = vmatprep.subr.mxu0 0.0
    %1889 = vmatpush1.msra.mxu0 0.0
    %1890 = vmatprep.subr.mxu0 0.0
    %1891 = vmatpush1.msra.mxu0 0.0
    %1892 = vmatprep.subr.mxu0 0.0
    %1893 = vmatpush1.msra.mxu0 0.0
    %1894 = vmatprep.subr.mxu0 0.0
    %1895 = vmatpush1.msra.mxu0 0.0
    %1896 = vmatprep.subr.mxu0 0.0
    %1897 = vmatpush1.msra.mxu0 0.0
    %1898 = vmatprep.subr.mxu0 0.0
    %1899 = vmatpush1.msra.mxu0 0.0
    %1900 = vmatprep.subr.mxu0 0.0
    %1901 = vmatpush1.msra.mxu0 0.0
    %1902 = vmatprep.subr.mxu0 0.0
    %1903 = vmatpush1.msra.mxu0 0.0
    %1904 = vmatprep.subr.mxu0 0.0
    %1905 = vmatpush1.msra.mxu0 0.0
    %1906 = vmatprep.subr.mxu0 0.0
    %1907 = vmatpush1.msra.mxu0 0.0
    %1908 = vmatprep.subr.mxu0 0.0
    %1909 = vmatpush1.msra.mxu0 0.0
    %1910 = vmatprep.subr.mxu0 0.0
    %1911 = vmatpush1.msra.mxu0 0.0
    %1912 = vmatprep.subr.mxu0 0.0
    %1913 = vmatpush1.msra.mxu0 0.0
    %1914 = vmatprep.subr.mxu0 0.0
    %1915 = vmatpush1.msra.mxu0 0.0
    %1916 = vmatprep.subr.mxu0 0.0
    %1917 = vmatpush1.msra.mxu0 0.0
    %1918 = vmatprep.subr.mxu0 0.0
    %1919 = vmatpush1.msra.mxu0 0.0
    %1920 = vmatprep.subr.mxu0 0.0
    %1921 = vmatpush1.msra.mxu0 0.0
    %1922 = vmatprep.subr.mxu0 0.0
    %1923 = vmatpush1.msra.mxu0 0.0
    %1924 = vmatprep.subr.mxu0 0.0
    %1925 = vmatpush1.msra.mxu0 0.0
    %1926 = vmatprep.subr.mxu0 0.0
    %1927 = vmatpush1.msra.mxu0 0.0
    %1928 = vmatprep.mubr.f32.mxu0 0.0
    %1929 = vmatmul.mubr.f32.gmra.mrb[0].mxu0 %v1859
    %v1930 = vpop.f32.mrb[0].mxu0
    %v1931 = vadd.f32 0.0, %v1930
    %v1932 = vpop.f32.mrb[0].mxu0
    %1933 = vmatprep.mubr.f32.mxu0 0.0
    %1934 = vmatmul.mubr.f32.gmra.mrb[0].mxu0 %v1862
    %v1935 = vpop.f32.mrb[0].mxu0
    %v1936 = vadd.f32 0.0, %v1935
    %v1937 = vpop.f32.mrb[0].mxu0
    %1938 = vdwg.mxu0
    %v1939 = vadd.f32 %v1524, %v1931
    %v1940 = vadd.f32 %v1525, %v1936
    %v1941 = vld [vmem:[%s6] sm:$0x1]
    %v1943 = vlaneseq
    %v1944 = vshrl.u32 %v1943, 7
    %v1945 = vsub.s32 0, %v1944
    %v1946 = vrot.slane %v1941, %v1945
    %v1948 = vadd.f32 %v1939, %v1946
    %v1949 = vadd.f32 %v1940, %v1946
    %v1950 = vld [vmem:[%s7] sm:$0x3]
    %v1951 = vadd.f32 %v182, %v1948
    %v1952 = vadd.f32 %v187, %v1949
    %v1953 = vsel %vm108, %v1951, 0.0
    %1954 = vadd.xlane.f32.xlu0 %v1953
    %v1955 = vpop.xlane.xlu0 %1954
    %v1956 = vsel %vm108, %v1952, 0.0
    %1957 = vadd.xlane.f32.xlu0 %v1956
    %v1958 = vpop.xlane.xlu0 %1957
    %v1959 = vrcp.pop 32.0
    %v1960 = vmul.f32 %v1955, %v1959
    %v1961 = vmul.f32 %v1958, %v1959
    %v1962 = vsub.f32 %v1951, %v1960
    %v1963 = vsub.f32 %v1952, %v1961
    %v1964 = vmul.f32 %v1962, %v1962
    %v1965 = vmul.f32 %v1963, %v1963
    %v1966 = vsel %vm108, %v1964, 0.0
    %1967 = vadd.xlane.f32.xlu0 %v1966
    %v1968 = vpop.xlane.xlu0 %1967
    %v1969 = vsel %vm108, %v1965, 0.0
    %1970 = vadd.xlane.f32.xlu0 %v1969
    %v1971 = vpop.xlane.xlu0 %1970
    %v1972 = vmul.f32 %v1968, %v1959
    %v1973 = vmul.f32 %v1971, %v1959
    %v1974 = vadd.f32 %v1972, 1e-05
    %v1975 = vadd.f32 %v1973, 1e-05
    %v1976 = vrsqrt.pop %v1974
    %v1977 = vrsqrt.pop %v1975
    %v1978 = vmul.f32 %v1962, %v1976
    %v1979 = vmul.f32 %v1963, %v1977
    %v1980 = vlaneseq
    %v1981 = vshrl.u32 %v1980, 7
    %v1982 = vsub.s32 0, %v1981
    %v1983 = vrot.slane %v1950, %v1982
    %v1984 = vmul.f32 %v1978, %v1983
    %v1985 = vmul.f32 %v1979, %v1983
    %v1986 = vlaneseq
    %v1987 = vshrl.u32 %v1986, 7
    %v1988 = vsub.s32 1, %v1987
    %v1989 = vrot.slane %v1950, %v1988
    %v1990 = vadd.f32 %v1984, %v1989
    %v1991 = vadd.f32 %v1985, %v1989
    %v1992 = vld [vmem:[%s8] sm:$0xff]
    %v1993 = vld [vmem:[%s8 + $0x8] sm:$0xff]
    %v1994 = vld [vmem:[%s8 + $0x10] sm:$0xff]
    %v1995 = vld [vmem:[%s8 + $0x18] sm:$0xff]
    %v1996 = vld [vmem:[%s9] sm:$0x1]
    %v1998 = vlaneseq
    %v1999 = vshrl.u32 %v1998, 7
    %v2000 = vsub.s32 0, %v1999
    %v2001 = vrot.slane %v1996, %v2000
    %v2004 = vsel %vm108, %v1990, 0
    %v2007 = vsel %vm108, %v1991, 0
    %2009 = vmatprep.subr.mxu0 0.0
    %2010 = vmatpush1.msra.mxu0 %v1992
    %2011 = vmatprep.subr.mxu0 0.0
    %2012 = vmatpush1.msra.mxu0 %v1993
    %2013 = vmatprep.subr.mxu0 0.0
    %2014 = vmatpush1.msra.mxu0 %v1994
    %2015 = vmatprep.subr.mxu0 0.0
    %2016 = vmatpush1.msra.mxu0 %v1995
    %2017 = vmatprep.subr.mxu0 0.0
    %2018 = vmatpush1.msra.mxu0 0.0
    %2019 = vmatprep.subr.mxu0 0.0
    %2020 = vmatpush1.msra.mxu0 0.0
    %2021 = vmatprep.subr.mxu0 0.0
    %2022 = vmatpush1.msra.mxu0 0.0
    %2023 = vmatprep.subr.mxu0 0.0
    %2024 = vmatpush1.msra.mxu0 0.0
    %2025 = vmatprep.subr.mxu0 0.0
    %2026 = vmatpush1.msra.mxu0 0.0
    %2027 = vmatprep.subr.mxu0 0.0
    %2028 = vmatpush1.msra.mxu0 0.0
    %2029 = vmatprep.subr.mxu0 0.0
    %2030 = vmatpush1.msra.mxu0 0.0
    %2031 = vmatprep.subr.mxu0 0.0
    %2032 = vmatpush1.msra.mxu0 0.0
    %2033 = vmatprep.subr.mxu0 0.0
    %2034 = vmatpush1.msra.mxu0 0.0
    %2035 = vmatprep.subr.mxu0 0.0
    %2036 = vmatpush1.msra.mxu0 0.0
    %2037 = vmatprep.subr.mxu0 0.0
    %2038 = vmatpush1.msra.mxu0 0.0
    %2039 = vmatprep.subr.mxu0 0.0
    %2040 = vmatpush1.msra.mxu0 0.0
    %2041 = vmatprep.subr.mxu0 0.0
    %2042 = vmatpush1.msra.mxu0 0.0
    %2043 = vmatprep.subr.mxu0 0.0
    %2044 = vmatpush1.msra.mxu0 0.0
    %2045 = vmatprep.subr.mxu0 0.0
    %2046 = vmatpush1.msra.mxu0 0.0
    %2047 = vmatprep.subr.mxu0 0.0
    %2048 = vmatpush1.msra.mxu0 0.0
    %2049 = vmatprep.subr.mxu0 0.0
    %2050 = vmatpush1.msra.mxu0 0.0
    %2051 = vmatprep.subr.mxu0 0.0
    %2052 = vmatpush1.msra.mxu0 0.0
    %2053 = vmatprep.subr.mxu0 0.0
    %2054 = vmatpush1.msra.mxu0 0.0
    %2055 = vmatprep.subr.mxu0 0.0
    %2056 = vmatpush1.msra.mxu0 0.0
    %2057 = vmatprep.subr.mxu0 0.0
    %2058 = vmatpush1.msra.mxu0 0.0
    %2059 = vmatprep.subr.mxu0 0.0
    %2060 = vmatpush1.msra.mxu0 0.0
    %2061 = vmatprep.subr.mxu0 0.0
    %2062 = vmatpush1.msra.mxu0 0.0
    %2063 = vmatprep.subr.mxu0 0.0
    %2064 = vmatpush1.msra.mxu0 0.0
    %2065 = vmatprep.subr.mxu0 0.0
    %2066 = vmatpush1.msra.mxu0 0.0
    %2067 = vmatprep.subr.mxu0 0.0
    %2068 = vmatpush1.msra.mxu0 0.0
    %2069 = vmatprep.subr.mxu0 0.0
    %2070 = vmatpush1.msra.mxu0 0.0
    %2071 = vmatprep.subr.mxu0 0.0
    %2072 = vmatpush1.msra.mxu0 0.0
    %2073 = vmatprep.mubr.f32.mxu0 0.0
    %2074 = vmatmul.mubr.f32.gmra.mrb[0].mxu0 %v2004
    %v2075 = vpop.f32.mrb[0].mxu0
    %v2076 = vadd.f32 %v2001, %v2075
    %v2077 = vpop.f32.mrb[0].mxu0
    %2078 = vmatprep.mubr.f32.mxu0 0.0
    %2079 = vmatmul.mubr.f32.gmra.mrb[0].mxu0 %v2007
    %v2080 = vpop.f32.mrb[0].mxu0
    %v2081 = vadd.f32 %v2001, %v2080
    %v2082 = vpop.f32.mrb[0].mxu0
    %2083 = vdwg.mxu0
    %vm2084 = vcmask 523264
    %v2085 = vsel %vm2084, %v2076, -inf
    %2086 = vmax.xlane.f32.xlu0 %v2085
    %v2087 = vpop.xlane.xlu0 %2086
    %v2088 = vsel %vm2084, %v2081, -inf
    %2089 = vmax.xlane.f32.xlu0 %v2088
    %v2090 = vpop.xlane.xlu0 %2089
    %v2091 = vsub.f32 %v2076, %v2087
    %v2092 = vsub.f32 %v2081, %v2090
    %v2093 = vmul.f32 %v2091, 1.442695
    %v2094 = vpow.pop %v2093
    %v2095 = vmul.f32 %v2092, 1.442695
    %v2096 = vpow.pop %v2095
    %v2097 = vsel %vm2084, %v2094, 0.0
    %2098 = vadd.xlane.f32.xlu0 %v2097
    %v2099 = vpop.xlane.xlu0 %2098
    %v2100 = vsel %vm2084, %v2096, 0.0
    %2101 = vadd.xlane.f32.xlu0 %v2100
    %v2102 = vpop.xlane.xlu0 %2101
    %v2103 = vrcp.pop %v2099
    %v2104 = vrcp.pop %v2102
    %v2105 = vmul.f32 %v2094, %v2103
    %v2106 = vmul.f32 %v2096, %v2104
    %v2107 = vld [vmem:[%s10] sm:$0xff]
    %v2108 = vld [vmem:[%s10 + $0x8] sm:$0xff]
    %v2109 = vld [vmem:[%s10 + $0x10] sm:$0xff]
    %v2110 = vld [vmem:[%s10 + $0x18] sm:$0xff]
    %v2111 = vld [vmem:[%s10 + $0x20] sm:$0xff]
    %v2112 = vld [vmem:[%s10 + $0x28] sm:$0xff]
    %v2113 = vld [vmem:[%s10 + $0x30] sm:$0xff]
    %v2114 = vld [vmem:[%s10 + $0x38] sm:$0xff]
    %v2116 = vsel %vm2084, %v2105, 0
    %v2119 = vsel %vm2084, %v2106, 0
    %2121 = vmatprep.subr.mxu0 0.0
    %2122 = vmatpush1.msra.mxu0 %v2107
    %2123 = vmatprep.subr.mxu0 0.0
    %2124 = vmatpush1.msra.mxu0 %v2108
    %2125 = vmatprep.subr.mxu0 0.0
    %2126 = vmatpush1.msra.mxu0 %v2109
    %2127 = vmatprep.subr.mxu0 0.0
    %2128 = vmatpush1.msra.mxu0 %v2110
    %2129 = vmatprep.subr.mxu0 0.0
    %2130 = vmatpush1.msra.mxu0 %v2111
    %2131 = vmatprep.subr.mxu0 0.0
    %2132 = vmatpush1.msra.mxu0 %v2112
    %2133 = vmatprep.subr.mxu0 0.0
    %2134 = vmatpush1.msra.mxu0 %v2113
    %2135 = vmatprep.subr.mxu0 0.0
    %2136 = vmatpush1.msra.mxu0 %v2114
    %2137 = vmatprep.subr.mxu0 0.0
    %2138 = vmatpush1.msra.mxu0 0.0
    %2139 = vmatprep.subr.mxu0 0.0
    %2140 = vmatpush1.msra.mxu0 0.0
    %2141 = vmatprep.subr.mxu0 0.0
    %2142 = vmatpush1.msra.mxu0 0.0
    %2143 = vmatprep.subr.mxu0 0.0
    %2144 = vmatpush1.msra.mxu0 0.0
    %2145 = vmatprep.subr.mxu0 0.0
    %2146 = vmatpush1.msra.mxu0 0.0
    %2147 = vmatprep.subr.mxu0 0.0
    %2148 = vmatpush1.msra.mxu0 0.0
    %2149 = vmatprep.subr.mxu0 0.0
    %2150 = vmatpush1.msra.mxu0 0.0
    %2151 = vmatprep.subr.mxu0 0.0
    %2152 = vmatpush1.msra.mxu0 0.0
    %2153 = vmatprep.subr.mxu0 0.0
    %2154 = vmatpush1.msra.mxu0 0.0
    %2155 = vmatprep.subr.mxu0 0.0
    %2156 = vmatpush1.msra.mxu0 0.0
    %2157 = vmatprep.subr.mxu0 0.0
    %2158 = vmatpush1.msra.mxu0 0.0
    %2159 = vmatprep.subr.mxu0 0.0
    %2160 = vmatpush1.msra.mxu0 0.0
    %2161 = vmatprep.subr.mxu0 0.0
    %2162 = vmatpush1.msra.mxu0 0.0
    %2163 = vmatprep.subr.mxu0 0.0
    %2164 = vmatpush1.msra.mxu0 0.0
    %2165 = vmatprep.subr.mxu0 0.0
    %2166 = vmatpush1.msra.mxu0 0.0
    %2167 = vmatprep.subr.mxu0 0.0
    %2168 = vmatpush1.msra.mxu0 0.0
    %2169 = vmatprep.subr.mxu0 0.0
    %2170 = vmatpush1.msra.mxu0 0.0
    %2171 = vmatprep.subr.mxu0 0.0
    %2172 = vmatpush1.msra.mxu0 0.0
    %2173 = vmatprep.subr.mxu0 0.0
    %2174 = vmatpush1.msra.mxu0 0.0
    %2175 = vmatprep.subr.mxu0 0.0
    %2176 = vmatpush1.msra.mxu0 0.0
    %2177 = vmatprep.subr.mxu0 0.0
    %2178 = vmatpush1.msra.mxu0 0.0
    %2179 = vmatprep.subr.mxu0 0.0
    %2180 = vmatpush1.msra.mxu0 0.0
    %2181 = vmatprep.subr.mxu0 0.0
    %2182 = vmatpush1.msra.mxu0 0.0
    %2183 = vmatprep.subr.mxu0 0.0
    %2184 = vmatpush1.msra.mxu0 0.0
    %2185 = vmatprep.mubr.f32.mxu0 0.0
    %2186 = vmatmul.mubr.f32.gmra.mrb[0].mxu0 %v2116
    %v2187 = vpop.f32.mrb[0].mxu0
    %v2188 = vadd.f32 0.0, %v2187
    %v2189 = vpop.f32.mrb[0].mxu0
    %2190 = vmatprep.mubr.f32.mxu0 0.0
    %2191 = vmatmul.mubr.f32.gmra.mrb[0].mxu0 %v2119
    %v2192 = vpop.f32.mrb[0].mxu0
    %v2193 = vadd.f32 0.0, %v2192
    %v2194 = vpop.f32.mrb[0].mxu0
    %2195 = vdwg.mxu0
    %v2196 = vld [vmem:[%s11] sm:$0x3]
    %v2197 = vadd.f32 %v1990, %v2188
    %v2198 = vadd.f32 %v1991, %v2193
    %v2199 = vsel %vm108, %v2197, 0.0
    %2200 = vadd.xlane.f32.xlu0 %v2199
    %v2201 = vpop.xlane.xlu0 %2200
    %v2202 = vsel %vm108, %v2198, 0.0
    %2203 = vadd.xlane.f32.xlu0 %v2202
    %v2204 = vpop.xlane.xlu0 %2203
    %v2205 = vmul.f32 %v2201, %v1959
    %v2206 = vmul.f32 %v2204, %v1959
    %v2207 = vsub.f32 %v2197, %v2205
    %v2208 = vsub.f32 %v2198, %v2206
    %v2209 = vmul.f32 %v2207, %v2207
    %v2210 = vmul.f32 %v2208, %v2208
    %v2211 = vsel %vm108, %v2209, 0.0
    %2212 = vadd.xlane.f32.xlu0 %v2211
    %v2213 = vpop.xlane.xlu0 %2212
    %v2214 = vsel %vm108, %v2210, 0.0
    %2215 = vadd.xlane.f32.xlu0 %v2214
    %v2216 = vpop.xlane.xlu0 %2215
    %v2217 = vmul.f32 %v2213, %v1959
    %v2218 = vmul.f32 %v2216, %v1959
    %v2219 = vadd.f32 %v2217, 1e-05
    %v2220 = vadd.f32 %v2218, 1e-05
    %v2221 = vrsqrt.pop %v2219
    %v2222 = vrsqrt.pop %v2220
    %v2223 = vmul.f32 %v2207, %v2221
    %v2224 = vmul.f32 %v2208, %v2222
    %v2225 = vlaneseq
    %v2226 = vshrl.u32 %v2225, 7
    %v2227 = vsub.s32 0, %v2226
    %v2228 = vrot.slane %v2196, %v2227
    %v2229 = vmul.f32 %v2223, %v2228
    %v2230 = vmul.f32 %v2224, %v2228
    %v2231 = vlaneseq
    %v2232 = vshrl.u32 %v2231, 7
    %v2233 = vsub.s32 1, %v2232
    %v2234 = vrot.slane %v2196, %v2233
    %v2235 = vadd.f32 %v2229, %v2234
    %v2236 = vadd.f32 %v2230, %v2234
    %s2237 = scalar_lea.vmem %s3, 32
    %v2238 = vld [vmem:[%s2237] sm:$0xff]
    %v2239 = vld [vmem:[%s2237 + $0x8] sm:$0xff]
    %v2240 = vld [vmem:[%s2237 + $0x10] sm:$0xff]
    %v2241 = vld [vmem:[%s2237 + $0x18] sm:$0xff]
    %s2242 = scalar_lea.vmem [#allocation7], 1
    %v2243 = vld [vmem:[%s2242] sm:$0x1]
    %v2245 = vlaneseq
    %v2246 = vshrl.u32 %v2245, 7
    %v2247 = vsub.s32 0, %v2246
    %v2248 = vrot.slane %v2243, %v2247
    %v2251 = vsel %vm108, %v2235, 0
    %v2254 = vsel %vm108, %v2236, 0
    %2256 = vmatprep.subr.mxu0 0.0
    %2257 = vmatpush1.msra.mxu0 %v2238
    %2258 = vmatprep.subr.mxu0 0.0
    %2259 = vmatpush1.msra.mxu0 %v2239
    %2260 = vmatprep.subr.mxu0 0.0
    %2261 = vmatpush1.msra.mxu0 %v2240
    %2262 = vmatprep.subr.mxu0 0.0
    %2263 = vmatpush1.msra.mxu0 %v2241
    %2264 = vmatprep.subr.mxu0 0.0
    %2265 = vmatpush1.msra.mxu0 0.0
    %2266 = vmatprep.subr.mxu0 0.0
    %2267 = vmatpush1.msra.mxu0 0.0
    %2268 = vmatprep.subr.mxu0 0.0
    %2269 = vmatpush1.msra.mxu0 0.0
    %2270 = vmatprep.subr.mxu0 0.0
    %2271 = vmatpush1.msra.mxu0 0.0
    %2272 = vmatprep.subr.mxu0 0.0
    %2273 = vmatpush1.msra.mxu0 0.0
    %2274 = vmatprep.subr.mxu0 0.0
    %2275 = vmatpush1.msra.mxu0 0.0
    %2276 = vmatprep.subr.mxu0 0.0
    %2277 = vmatpush1.msra.mxu0 0.0
    %2278 = vmatprep.subr.mxu0 0.0
    %2279 = vmatpush1.msra.mxu0 0.0
    %2280 = vmatprep.subr.mxu0 0.0
    %2281 = vmatpush1.msra.mxu0 0.0
    %2282 = vmatprep.subr.mxu0 0.0
    %2283 = vmatpush1.msra.mxu0 0.0
    %2284 = vmatprep.subr.mxu0 0.0
    %2285 = vmatpush1.msra.mxu0 0.0
    %2286 = vmatprep.subr.mxu0 0.0
    %2287 = vmatpush1.msra.mxu0 0.0
    %2288 = vmatprep.subr.mxu0 0.0
    %2289 = vmatpush1.msra.mxu0 0.0
    %2290 = vmatprep.subr.mxu0 0.0
    %2291 = vmatpush1.msra.mxu0 0.0
    %2292 = vmatprep.subr.mxu0 0.0
    %2293 = vmatpush1.msra.mxu0 0.0
    %2294 = vmatprep.subr.mxu0 0.0
    %2295 = vmatpush1.msra.mxu0 0.0
    %2296 = vmatprep.subr.mxu0 0.0
    %2297 = vmatpush1.msra.mxu0 0.0
    %2298 = vmatprep.subr.mxu0 0.0
    %2299 = vmatpush1.msra.mxu0 0.0
    %2300 = vmatprep.subr.mxu0 0.0
    %2301 = vmatpush1.msra.mxu0 0.0
    %2302 = vmatprep.subr.mxu0 0.0
    %2303 = vmatpush1.msra.mxu0 0.0
    %2304 = vmatprep.subr.mxu0 0.0
    %2305 = vmatpush1.msra.mxu0 0.0
    %2306 = vmatprep.subr.mxu0 0.0
    %2307 = vmatpush1.msra.mxu0 0.0
    %2308 = vmatprep.subr.mxu0 0.0
    %2309 = vmatpush1.msra.mxu0 0.0
    %2310 = vmatprep.subr.mxu0 0.0
    %2311 = vmatpush1.msra.mxu0 0.0
    %2312 = vmatprep.subr.mxu0 0.0
    %2313 = vmatpush1.msra.mxu0 0.0
    %2314 = vmatprep.subr.mxu0 0.0
    %2315 = vmatpush1.msra.mxu0 0.0
    %2316 = vmatprep.subr.mxu0 0.0
    %2317 = vmatpush1.msra.mxu0 0.0
    %2318 = vmatprep.subr.mxu0 0.0
    %2319 = vmatpush1.msra.mxu0 0.0
    %2320 = vmatprep.mubr.f32.mxu0 0.0
    %2321 = vmatmul.mubr.f32.gmra.mrb[0].mxu0 %v2251
    %v2322 = vpop.f32.mrb[0].mxu0
    %v2323 = vadd.f32 %v2248, %v2322
    %v2324 = vpop.f32.mrb[0].mxu0
    %2325 = vmatprep.mubr.f32.mxu0 0.0
    %2326 = vmatmul.mubr.f32.gmra.mrb[0].mxu0 %v2254
    %v2327 = vpop.f32.mrb[0].mxu0
    %v2328 = vadd.f32 %v2248, %v2327
    %v2329 = vpop.f32.mrb[0].mxu0
    %2330 = vdwg.mxu0
    %s2331 = scalar_lea.vmem %s5, 32
    %v2332 = vld [vmem:[%s2331] sm:$0xff]
    %v2333 = vld [vmem:[%s2331 + $0x8] sm:$0xff]
    %v2334 = vld [vmem:[%s2331 + $0x10] sm:$0xff]
    %v2335 = vld [vmem:[%s2331 + $0x18] sm:$0xff]
    %2337 = vrot.lane.b32.xlu0 %v2323, 96
    %v2338 = vpop.permute.xlu0 %2337
    %v2339 = vsel %vm289, %v2323, 0
    %v2341 = vsel %vm289, %v2338, 0
    %2343 = vmatprep.subr.mxu0 0.0
    %2344 = vmatpush1.xpose.msra.mxu0 %v2341
    %2345 = vmatprep.subr.mxu0 0.0
    %2346 = vmatpush1.xpose.msra.mxu0 0.0
    %2347 = vmatprep.subr.mxu0 0.0
    %2348 = vmatpush1.xpose.msra.mxu0 0.0
    %2349 = vmatprep.subr.mxu0 0.0
    %2350 = vmatpush1.xpose.msra.mxu0 0.0
    %2351 = vmatprep.subr.mxu0 0.0
    %2352 = vmatpush1.xpose.msra.mxu0 0.0
    %2353 = vmatprep.subr.mxu0 0.0
    %2354 = vmatpush1.xpose.msra.mxu0 0.0
    %2355 = vmatprep.subr.mxu0 0.0
    %2356 = vmatpush1.xpose.msra.mxu0 0.0
    %2357 = vmatprep.subr.mxu0 0.0
    %2358 = vmatpush1.xpose.msra.mxu0 0.0
    %2359 = vmatprep.subr.mxu0 0.0
    %2360 = vmatpush1.xpose.msra.mxu0 0.0
    %2361 = vmatprep.subr.mxu0 0.0
    %2362 = vmatpush1.xpose.msra.mxu0 0.0
    %2363 = vmatprep.subr.mxu0 0.0
    %2364 = vmatpush1.xpose.msra.mxu0 0.0
    %2365 = vmatprep.subr.mxu0 0.0
    %2366 = vmatpush1.xpose.msra.mxu0 0.0
    %2367 = vmatprep.subr.mxu0 0.0
    %2368 = vmatpush1.xpose.msra.mxu0 0.0
    %2369 = vmatprep.subr.mxu0 0.0
    %2370 = vmatpush1.xpose.msra.mxu0 0.0
    %2371 = vmatprep.subr.mxu0 0.0
    %2372 = vmatpush1.xpose.msra.mxu0 0.0
    %2373 = vmatprep.subr.mxu0 0.0
    %2374 = vmatpush1.xpose.msra.mxu0 0.0
    %2375 = vmatprep.subr.mxu0 0.0
    %2376 = vmatpush1.xpose.msra.mxu0 0.0
    %2377 = vmatprep.subr.mxu0 0.0
    %2378 = vmatpush1.xpose.msra.mxu0 0.0
    %2379 = vmatprep.subr.mxu0 0.0
    %2380 = vmatpush1.xpose.msra.mxu0 0.0
    %2381 = vmatprep.subr.mxu0 0.0
    %2382 = vmatpush1.xpose.msra.mxu0 0.0
    %2383 = vmatprep.subr.mxu0 0.0
    %2384 = vmatpush1.xpose.msra.mxu0 0.0
    %2385 = vmatprep.subr.mxu0 0.0
    %2386 = vmatpush1.xpose.msra.mxu0 0.0
    %2387 = vmatprep.subr.mxu0 0.0
    %2388 = vmatpush1.xpose.msra.mxu0 0.0
    %2389 = vmatprep.subr.mxu0 0.0
    %2390 = vmatpush1.xpose.msra.mxu0 0.0
    %2391 = vmatprep.subr.mxu0 0.0
    %2392 = vmatpush1.xpose.msra.mxu0 0.0
    %2393 = vmatprep.subr.mxu0 0.0
    %2394 = vmatpush1.xpose.msra.mxu0 0.0
    %2395 = vmatprep.subr.mxu0 0.0
    %2396 = vmatpush1.xpose.msra.mxu0 0.0
    %2397 = vmatprep.subr.mxu0 0.0
    %2398 = vmatpush1.xpose.msra.mxu0 0.0
    %2399 = vmatprep.subr.mxu0 0.0
    %2400 = vmatpush1.xpose.msra.mxu0 0.0
    %2401 = vmatprep.subr.mxu0 0.0
    %2402 = vmatpush1.xpose.msra.mxu0 0.0
    %2403 = vmatprep.subr.mxu0 0.0
    %2404 = vmatpush1.xpose.msra.mxu0 0.0
    %2405 = vmatprep.subr.mxu0 0.0
    %2406 = vmatpush1.xpose.msra.mxu0 0.0
    %2407 = vmatprep.mubr.f32.mxu0 0.0
    %2408 = vmatmul.mubr.f32.gmra.mrb[0].mxu0 %v2339
    %v2409 = vpop.f32.mrb[0].mxu0
    %v2410 = vadd.f32 0.0, %v2409
    %v2411 = vpop.f32.mrb[0].mxu0
    %2412 = vdwg.mxu0
    %v2413 = vmul.f32 %v2410, 0.35355338
    %v2414 = vsel %vm289, %v2413, -inf
    %2415 = vmax.xlane.f32.xlu0 %v2414
    %v2416 = vpop.xlane.xlu0 %2415
    %v2417 = vsub.f32 %v2413, %v2416
    %v2418 = vmul.f32 %v2417, 1.442695
    %v2419 = vpow.pop %v2418
    %v2420 = vsel %vm289, %v2419, 0.0
    %2421 = vadd.xlane.f32.xlu0 %v2420
    %v2422 = vpop.xlane.xlu0 %2421
    %v2423 = vrcp.pop %v2422
    %v2424 = vmul.f32 %v2419, %v2423
    %2425 = vrot.lane.b32.xlu0 %v2323, 64
    %v2426 = vpop.permute.xlu0 %2425
    %v2429 = vsel %vm289, %v2424, 0
    %2431 = vmatprep.subr.mxu0 0.0
    %2432 = vmatpush1.msra.mxu0 %v2426
    %2433 = vmatprep.subr.mxu0 0.0
    %2434 = vmatpush1.msra.mxu0 0.0
    %2435 = vmatprep.subr.mxu0 0.0
    %2436 = vmatpush1.msra.mxu0 0.0
    %2437 = vmatprep.subr.mxu0 0.0
    %2438 = vmatpush1.msra.mxu0 0.0
    %2439 = vmatprep.subr.mxu0 0.0
    %2440 = vmatpush1.msra.mxu0 0.0
    %2441 = vmatprep.subr.mxu0 0.0
    %2442 = vmatpush1.msra.mxu0 0.0
    %2443 = vmatprep.subr.mxu0 0.0
    %2444 = vmatpush1.msra.mxu0 0.0
    %2445 = vmatprep.subr.mxu0 0.0
    %2446 = vmatpush1.msra.mxu0 0.0
    %2447 = vmatprep.subr.mxu0 0.0
    %2448 = vmatpush1.msra.mxu0 0.0
    %2449 = vmatprep.subr.mxu0 0.0
    %2450 = vmatpush1.msra.mxu0 0.0
    %2451 = vmatprep.subr.mxu0 0.0
    %2452 = vmatpush1.msra.mxu0 0.0
    %2453 = vmatprep.subr.mxu0 0.0
    %2454 = vmatpush1.msra.mxu0 0.0
    %2455 = vmatprep.subr.mxu0 0.0
    %2456 = vmatpush1.msra.mxu0 0.0
    %2457 = vmatprep.subr.mxu0 0.0
    %2458 = vmatpush1.msra.mxu0 0.0
    %2459 = vmatprep.subr.mxu0 0.0
    %2460 = vmatpush1.msra.mxu0 0.0
    %2461 = vmatprep.subr.mxu0 0.0
    %2462 = vmatpush1.msra.mxu0 0.0
    %2463 = vmatprep.subr.mxu0 0.0
    %2464 = vmatpush1.msra.mxu0 0.0
    %2465 = vmatprep.subr.mxu0 0.0
    %2466 = vmatpush1.msra.mxu0 0.0
    %2467 = vmatprep.subr.mxu0 0.0
    %2468 = vmatpush1.msra.mxu0 0.0
    %2469 = vmatprep.subr.mxu0 0.0
    %2470 = vmatpush1.msra.mxu0 0.0
    %2471 = vmatprep.subr.mxu0 0.0
    %2472 = vmatpush1.msra.mxu0 0.0
    %2473 = vmatprep.subr.mxu0 0.0
    %2474 = vmatpush1.msra.mxu0 0.0
    %2475 = vmatprep.subr.mxu0 0.0
    %2476 = vmatpush1.msra.mxu0 0.0
    %2477 = vmatprep.subr.mxu0 0.0
    %2478 = vmatpush1.msra.mxu0 0.0
    %2479 = vmatprep.subr.mxu0 0.0
    %2480 = vmatpush1.msra.mxu0 0.0
    %2481 = vmatprep.subr.mxu0 0.0
    %2482 = vmatpush1.msra.mxu0 0.0
    %2483 = vmatprep.subr.mxu0 0.0
    %2484 = vmatpush1.msra.mxu0 0.0
    %2485 = vmatprep.subr.mxu0 0.0
    %2486 = vmatpush1.msra.mxu0 0.0
    %2487 = vmatprep.subr.mxu0 0.0
    %2488 = vmatpush1.msra.mxu0 0.0
    %2489 = vmatprep.subr.mxu0 0.0
    %2490 = vmatpush1.msra.mxu0 0.0
    %2491 = vmatprep.subr.mxu0 0.0
    %2492 = vmatpush1.msra.mxu0 0.0
    %2493 = vmatprep.subr.mxu0 0.0
    %2494 = vmatpush1.msra.mxu0 0.0
    %2495 = vmatprep.mubr.f32.mxu0 0.0
    %2496 = vmatmul.mubr.f32.gmra.mrb[0].mxu0 %v2429
    %v2497 = vpop.f32.mrb[0].mxu0
    %v2498 = vadd.f32 0.0, %v2497
    %v2499 = vpop.f32.mrb[0].mxu0
    %2500 = vdwg.mxu0
    %2502 = vrot.lane.b32.xlu0 %v2328, 96
    %v2503 = vpop.permute.xlu0 %2502
    %v2504 = vsel %vm289, %v2328, 0
    %v2506 = vsel %vm289, %v2503, 0
    %2508 = vmatprep.subr.mxu0 0.0
    %2509 = vmatpush1.xpose.msra.mxu0 %v2506
    %2510 = vmatprep.subr.mxu0 0.0
    %2511 = vmatpush1.xpose.msra.mxu0 0.0
    %2512 = vmatprep.subr.mxu0 0.0
    %2513 = vmatpush1.xpose.msra.mxu0 0.0
    %2514 = vmatprep.subr.mxu0 0.0
    %2515 = vmatpush1.xpose.msra.mxu0 0.0
    %2516 = vmatprep.subr.mxu0 0.0
    %2517 = vmatpush1.xpose.msra.mxu0 0.0
    %2518 = vmatprep.subr.mxu0 0.0
    %2519 = vmatpush1.xpose.msra.mxu0 0.0
    %2520 = vmatprep.subr.mxu0 0.0
    %2521 = vmatpush1.xpose.msra.mxu0 0.0
    %2522 = vmatprep.subr.mxu0 0.0
    %2523 = vmatpush1.xpose.msra.mxu0 0.0
    %2524 = vmatprep.subr.mxu0 0.0
    %2525 = vmatpush1.xpose.msra.mxu0 0.0
    %2526 = vmatprep.subr.mxu0 0.0
    %2527 = vmatpush1.xpose.msra.mxu0 0.0
    %2528 = vmatprep.subr.mxu0 0.0
    %2529 = vmatpush1.xpose.msra.mxu0 0.0
    %2530 = vmatprep.subr.mxu0 0.0
    %2531 = vmatpush1.xpose.msra.mxu0 0.0
    %2532 = vmatprep.subr.mxu0 0.0
    %2533 = vmatpush1.xpose.msra.mxu0 0.0
    %2534 = vmatprep.subr.mxu0 0.0
    %2535 = vmatpush1.xpose.msra.mxu0 0.0
    %2536 = vmatprep.subr.mxu0 0.0
    %2537 = vmatpush1.xpose.msra.mxu0 0.0
    %2538 = vmatprep.subr.mxu0 0.0
    %2539 = vmatpush1.xpose.msra.mxu0 0.0
    %2540 = vmatprep.subr.mxu0 0.0
    %2541 = vmatpush1.xpose.msra.mxu0 0.0
    %2542 = vmatprep.subr.mxu0 0.0
    %2543 = vmatpush1.xpose.msra.mxu0 0.0
    %2544 = vmatprep.subr.mxu0 0.0
    %2545 = vmatpush1.xpose.msra.mxu0 0.0
    %2546 = vmatprep.subr.mxu0 0.0
    %2547 = vmatpush1.xpose.msra.mxu0 0.0
    %2548 = vmatprep.subr.mxu0 0.0
    %2549 = vmatpush1.xpose.msra.mxu0 0.0
    %2550 = vmatprep.subr.mxu0 0.0
    %2551 = vmatpush1.xpose.msra.mxu0 0.0
    %2552 = vmatprep.subr.mxu0 0.0
    %2553 = vmatpush1.xpose.msra.mxu0 0.0
    %2554 = vmatprep.subr.mxu0 0.0
    %2555 = vmatpush1.xpose.msra.mxu0 0.0
    %2556 = vmatprep.subr.mxu0 0.0
    %2557 = vmatpush1.xpose.msra.mxu0 0.0
    %2558 = vmatprep.subr.mxu0 0.0
    %2559 = vmatpush1.xpose.msra.mxu0 0.0
    %2560 = vmatprep.subr.mxu0 0.0
    %2561 = vmatpush1.xpose.msra.mxu0 0.0
    %2562 = vmatprep.subr.mxu0 0.0
    %2563 = vmatpush1.xpose.msra.mxu0 0.0
    %2564 = vmatprep.subr.mxu0 0.0
    %2565 = vmatpush1.xpose.msra.mxu0 0.0
    %2566 = vmatprep.subr.mxu0 0.0
    %2567 = vmatpush1.xpose.msra.mxu0 0.0
    %2568 = vmatprep.subr.mxu0 0.0
    %2569 = vmatpush1.xpose.msra.mxu0 0.0
    %2570 = vmatprep.subr.mxu0 0.0
    %2571 = vmatpush1.xpose.msra.mxu0 0.0
    %2572 = vmatprep.mubr.f32.mxu0 0.0
    %2573 = vmatmul.mubr.f32.gmra.mrb[0].mxu0 %v2504
    %v2574 = vpop.f32.mrb[0].mxu0
    %v2575 = vadd.f32 0.0, %v2574
    %v2576 = vpop.f32.mrb[0].mxu0
    %2577 = vdwg.mxu0
    %v2578 = vmul.f32 %v2575, 0.35355338
    %v2579 = vsel %vm289, %v2578, -inf
    %2580 = vmax.xlane.f32.xlu0 %v2579
    %v2581 = vpop.xlane.xlu0 %2580
    %v2582 = vsub.f32 %v2578, %v2581
    %v2583 = vmul.f32 %v2582, 1.442695
    %v2584 = vpow.pop %v2583
    %v2585 = vsel %vm289, %v2584, 0.0
    %2586 = vadd.xlane.f32.xlu0 %v2585
    %v2587 = vpop.xlane.xlu0 %2586
    %v2588 = vrcp.pop %v2587
    %v2589 = vmul.f32 %v2584, %v2588
    %2590 = vrot.lane.b32.xlu0 %v2328, 64
    %v2591 = vpop.permute.xlu0 %2590
    %v2594 = vsel %vm289, %v2589, 0
    %2596 = vmatprep.subr.mxu0 0.0
    %2597 = vmatpush1.msra.mxu0 %v2591
    %2598 = vmatprep.subr.mxu0 0.0
    %2599 = vmatpush1.msra.mxu0 0.0
    %2600 = vmatprep.subr.mxu0 0.0
    %2601 = vmatpush1.msra.mxu0 0.0
    %2602 = vmatprep.subr.mxu0 0.0
    %2603 = vmatpush1.msra.mxu0 0.0
    %2604 = vmatprep.subr.mxu0 0.0
    %2605 = vmatpush1.msra.mxu0 0.0
    %2606 = vmatprep.subr.mxu0 0.0
    %2607 = vmatpush1.msra.mxu0 0.0
    %2608 = vmatprep.subr.mxu0 0.0
    %2609 = vmatpush1.msra.mxu0 0.0
    %2610 = vmatprep.subr.mxu0 0.0
    %2611 = vmatpush1.msra.mxu0 0.0
    %2612 = vmatprep.subr.mxu0 0.0
    %2613 = vmatpush1.msra.mxu0 0.0
    %2614 = vmatprep.subr.mxu0 0.0
    %2615 = vmatpush1.msra.mxu0 0.0
    %2616 = vmatprep.subr.mxu0 0.0
    %2617 = vmatpush1.msra.mxu0 0.0
    %2618 = vmatprep.subr.mxu0 0.0
    %2619 = vmatpush1.msra.mxu0 0.0
    %2620 = vmatprep.subr.mxu0 0.0
    %2621 = vmatpush1.msra.mxu0 0.0
    %2622 = vmatprep.subr.mxu0 0.0
    %2623 = vmatpush1.msra.mxu0 0.0
    %2624 = vmatprep.subr.mxu0 0.0
    %2625 = vmatpush1.msra.mxu0 0.0
    %2626 = vmatprep.subr.mxu0 0.0
    %2627 = vmatpush1.msra.mxu0 0.0
    %2628 = vmatprep.subr.mxu0 0.0
    %2629 = vmatpush1.msra.mxu0 0.0
    %2630 = vmatprep.subr.mxu0 0.0
    %2631 = vmatpush1.msra.mxu0 0.0
    %2632 = vmatprep.subr.mxu0 0.0
    %2633 = vmatpush1.msra.mxu0 0.0
    %2634 = vmatprep.subr.mxu0 0.0
    %2635 = vmatpush1.msra.mxu0 0.0
    %2636 = vmatprep.subr.mxu0 0.0
    %2637 = vmatpush1.msra.mxu0 0.0
    %2638 = vmatprep.subr.mxu0 0.0
    %2639 = vmatpush1.msra.mxu0 0.0
    %2640 = vmatprep.subr.mxu0 0.0
    %2641 = vmatpush1.msra.mxu0 0.0
    %2642 = vmatprep.subr.mxu0 0.0
    %2643 = vmatpush1.msra.mxu0 0.0
    %2644 = vmatprep.subr.mxu0 0.0
    %2645 = vmatpush1.msra.mxu0 0.0
    %2646 = vmatprep.subr.mxu0 0.0
    %2647 = vmatpush1.msra.mxu0 0.0
    %2648 = vmatprep.subr.mxu0 0.0
    %2649 = vmatpush1.msra.mxu0 0.0
    %2650 = vmatprep.subr.mxu0 0.0
    %2651 = vmatpush1.msra.mxu0 0.0
    %2652 = vmatprep.subr.mxu0 0.0
    %2653 = vmatpush1.msra.mxu0 0.0
    %2654 = vmatprep.subr.mxu0 0.0
    %2655 = vmatpush1.msra.mxu0 0.0
    %2656 = vmatprep.subr.mxu0 0.0
    %2657 = vmatpush1.msra.mxu0 0.0
    %2658 = vmatprep.subr.mxu0 0.0
    %2659 = vmatpush1.msra.mxu0 0.0
    %2660 = vmatprep.mubr.f32.mxu0 0.0
    %2661 = vmatmul.mubr.f32.gmra.mrb[0].mxu0 %v2594
    %v2662 = vpop.f32.mrb[0].mxu0
    %v2663 = vadd.f32 0.0, %v2662
    %v2664 = vpop.f32.mrb[0].mxu0
    %2665 = vdwg.mxu0
    %2666 = vrot.lane.b32.xlu0 %v2323, 120
    %v2667 = vpop.permute.xlu0 %2666
    %2668 = vrot.lane.b32.xlu0 %v2323, 88
    %v2669 = vpop.permute.xlu0 %2668
    %v2670 = vsel %vm289, %v2667, 0
    %v2672 = vsel %vm289, %v2669, 0
    %2674 = vmatprep.subr.mxu0 0.0
    %2675 = vmatpush1.xpose.msra.mxu0 %v2672
    %2676 = vmatprep.subr.mxu0 0.0
    %2677 = vmatpush1.xpose.msra.mxu0 0.0
    %2678 = vmatprep.subr.mxu0 0.0
    %2679 = vmatpush1.xpose.msra.mxu0 0.0
    %2680 = vmatprep.subr.mxu0 0.0
    %2681 = vmatpush1.xpose.msra.mxu0 0.0
    %2682 = vmatprep.subr.mxu0 0.0
    %2683 = vmatpush1.xpose.msra.mxu0 0.0
    %2684 = vmatprep.subr.mxu0 0.0
    %2685 = vmatpush1.xpose.msra.mxu0 0.0
    %2686 = vmatprep.subr.mxu0 0.0
    %2687 = vmatpush1.xpose.msra.mxu0 0.0
    %2688 = vmatprep.subr.mxu0 0.0
    %2689 = vmatpush1.xpose.msra.mxu0 0.0
    %2690 = vmatprep.subr.mxu0 0.0
    %2691 = vmatpush1.xpose.msra.mxu0 0.0
    %2692 = vmatprep.subr.mxu0 0.0
    %2693 = vmatpush1.xpose.msra.mxu0 0.0
    %2694 = vmatprep.subr.mxu0 0.0
    %2695 = vmatpush1.xpose.msra.mxu0 0.0
    %2696 = vmatprep.subr.mxu0 0.0
    %2697 = vmatpush1.xpose.msra.mxu0 0.0
    %2698 = vmatprep.subr.mxu0 0.0
    %2699 = vmatpush1.xpose.msra.mxu0 0.0
    %2700 = vmatprep.subr.mxu0 0.0
    %2701 = vmatpush1.xpose.msra.mxu0 0.0
    %2702 = vmatprep.subr.mxu0 0.0
    %2703 = vmatpush1.xpose.msra.mxu0 0.0
    %2704 = vmatprep.subr.mxu0 0.0
    %2705 = vmatpush1.xpose.msra.mxu0 0.0
    %2706 = vmatprep.subr.mxu0 0.0
    %2707 = vmatpush1.xpose.msra.mxu0 0.0
    %2708 = vmatprep.subr.mxu0 0.0
    %2709 = vmatpush1.xpose.msra.mxu0 0.0
    %2710 = vmatprep.subr.mxu0 0.0
    %2711 = vmatpush1.xpose.msra.mxu0 0.0
    %2712 = vmatprep.subr.mxu0 0.0
    %2713 = vmatpush1.xpose.msra.mxu0 0.0
    %2714 = vmatprep.subr.mxu0 0.0
    %2715 = vmatpush1.xpose.msra.mxu0 0.0
    %2716 = vmatprep.subr.mxu0 0.0
    %2717 = vmatpush1.xpose.msra.mxu0 0.0
    %2718 = vmatprep.subr.mxu0 0.0
    %2719 = vmatpush1.xpose.msra.mxu0 0.0
    %2720 = vmatprep.subr.mxu0 0.0
    %2721 = vmatpush1.xpose.msra.mxu0 0.0
    %2722 = vmatprep.subr.mxu0 0.0
    %2723 = vmatpush1.xpose.msra.mxu0 0.0
    %2724 = vmatprep.subr.mxu0 0.0
    %2725 = vmatpush1.xpose.msra.mxu0 0.0
    %2726 = vmatprep.subr.mxu0 0.0
    %2727 = vmatpush1.xpose.msra.mxu0 0.0
    %2728 = vmatprep.subr.mxu0 0.0
    %2729 = vmatpush1.xpose.msra.mxu0 0.0
    %2730 = vmatprep.subr.mxu0 0.0
    %2731 = vmatpush1.xpose.msra.mxu0 0.0
    %2732 = vmatprep.subr.mxu0 0.0
    %2733 = vmatpush1.xpose.msra.mxu0 0.0
    %2734 = vmatprep.subr.mxu0 0.0
    %2735 = vmatpush1.xpose.msra.mxu0 0.0
    %2736 = vmatprep.subr.mxu0 0.0
    %2737 = vmatpush1.xpose.msra.mxu0 0.0
    %2738 = vmatprep.mubr.f32.mxu0 0.0
    %2739 = vmatmul.mubr.f32.gmra.mrb[0].mxu0 %v2670
    %v2740 = vpop.f32.mrb[0].mxu0
    %v2741 = vadd.f32 0.0, %v2740
    %v2742 = vpop.f32.mrb[0].mxu0
    %2743 = vdwg.mxu0
    %v2744 = vmul.f32 %v2741, 0.35355338
    %v2745 = vsel %vm289, %v2744, -inf
    %2746 = vmax.xlane.f32.xlu0 %v2745
    %v2747 = vpop.xlane.xlu0 %2746
    %v2748 = vsub.f32 %v2744, %v2747
    %v2749 = vmul.f32 %v2748, 1.442695
    %v2750 = vpow.pop %v2749
    %v2751 = vsel %vm289, %v2750, 0.0
    %2752 = vadd.xlane.f32.xlu0 %v2751
    %v2753 = vpop.xlane.xlu0 %2752
    %v2754 = vrcp.pop %v2753
    %v2755 = vmul.f32 %v2750, %v2754
    %2756 = vrot.lane.b32.xlu0 %v2323, 56
    %v2757 = vpop.permute.xlu0 %2756
    %v2760 = vsel %vm289, %v2755, 0
    %2762 = vmatprep.subr.mxu0 0.0
    %2763 = vmatpush1.msra.mxu0 %v2757
    %2764 = vmatprep.subr.mxu0 0.0
    %2765 = vmatpush1.msra.mxu0 0.0
    %2766 = vmatprep.subr.mxu0 0.0
    %2767 = vmatpush1.msra.mxu0 0.0
    %2768 = vmatprep.subr.mxu0 0.0
    %2769 = vmatpush1.msra.mxu0 0.0
    %2770 = vmatprep.subr.mxu0 0.0
    %2771 = vmatpush1.msra.mxu0 0.0
    %2772 = vmatprep.subr.mxu0 0.0
    %2773 = vmatpush1.msra.mxu0 0.0
    %2774 = vmatprep.subr.mxu0 0.0
    %2775 = vmatpush1.msra.mxu0 0.0
    %2776 = vmatprep.subr.mxu0 0.0
    %2777 = vmatpush1.msra.mxu0 0.0
    %2778 = vmatprep.subr.mxu0 0.0
    %2779 = vmatpush1.msra.mxu0 0.0
    %2780 = vmatprep.subr.mxu0 0.0
    %2781 = vmatpush1.msra.mxu0 0.0
    %2782 = vmatprep.subr.mxu0 0.0
    %2783 = vmatpush1.msra.mxu0 0.0
    %2784 = vmatprep.subr.mxu0 0.0
    %2785 = vmatpush1.msra.mxu0 0.0
    %2786 = vmatprep.subr.mxu0 0.0
    %2787 = vmatpush1.msra.mxu0 0.0
    %2788 = vmatprep.subr.mxu0 0.0
    %2789 = vmatpush1.msra.mxu0 0.0
    %2790 = vmatprep.subr.mxu0 0.0
    %2791 = vmatpush1.msra.mxu0 0.0
    %2792 = vmatprep.subr.mxu0 0.0
    %2793 = vmatpush1.msra.mxu0 0.0
    %2794 = vmatprep.subr.mxu0 0.0
    %2795 = vmatpush1.msra.mxu0 0.0
    %2796 = vmatprep.subr.mxu0 0.0
    %2797 = vmatpush1.msra.mxu0 0.0
    %2798 = vmatprep.subr.mxu0 0.0
    %2799 = vmatpush1.msra.mxu0 0.0
    %2800 = vmatprep.subr.mxu0 0.0
    %2801 = vmatpush1.msra.mxu0 0.0
    %2802 = vmatprep.subr.mxu0 0.0
    %2803 = vmatpush1.msra.mxu0 0.0
    %2804 = vmatprep.subr.mxu0 0.0
    %2805 = vmatpush1.msra.mxu0 0.0
    %2806 = vmatprep.subr.mxu0 0.0
    %2807 = vmatpush1.msra.mxu0 0.0
    %2808 = vmatprep.subr.mxu0 0.0
    %2809 = vmatpush1.msra.mxu0 0.0
    %2810 = vmatprep.subr.mxu0 0.0
    %2811 = vmatpush1.msra.mxu0 0.0
    %2812 = vmatprep.subr.mxu0 0.0
    %2813 = vmatpush1.msra.mxu0 0.0
    %2814 = vmatprep.subr.mxu0 0.0
    %2815 = vmatpush1.msra.mxu0 0.0
    %2816 = vmatprep.subr.mxu0 0.0
    %2817 = vmatpush1.msra.mxu0 0.0
    %2818 = vmatprep.subr.mxu0 0.0
    %2819 = vmatpush1.msra.mxu0 0.0
    %2820 = vmatprep.subr.mxu0 0.0
    %2821 = vmatpush1.msra.mxu0 0.0
    %2822 = vmatprep.subr.mxu0 0.0
    %2823 = vmatpush1.msra.mxu0 0.0
    %2824 = vmatprep.subr.mxu0 0.0
    %2825 = vmatpush1.msra.mxu0 0.0
    %2826 = vmatprep.mubr.f32.mxu0 0.0
    %2827 = vmatmul.mubr.f32.gmra.mrb[0].mxu0 %v2760
    %v2828 = vpop.f32.mrb[0].mxu0
    %v2829 = vadd.f32 0.0, %v2828
    %v2830 = vpop.f32.mrb[0].mxu0
    %2831 = vdwg.mxu0
    %2832 = vrot.lane.b32.xlu0 %v2328, 120
    %v2833 = vpop.permute.xlu0 %2832
    %2834 = vrot.lane.b32.xlu0 %v2328, 88
    %v2835 = vpop.permute.xlu0 %2834
    %v2836 = vsel %vm289, %v2833, 0
    %v2838 = vsel %vm289, %v2835, 0
    %2840 = vmatprep.subr.mxu0 0.0
    %2841 = vmatpush1.xpose.msra.mxu0 %v2838
    %2842 = vmatprep.subr.mxu0 0.0
    %2843 = vmatpush1.xpose.msra.mxu0 0.0
    %2844 = vmatprep.subr.mxu0 0.0
    %2845 = vmatpush1.xpose.msra.mxu0 0.0
    %2846 = vmatprep.subr.mxu0 0.0
    %2847 = vmatpush1.xpose.msra.mxu0 0.0
    %2848 = vmatprep.subr.mxu0 0.0
    %2849 = vmatpush1.xpose.msra.mxu0 0.0
    %2850 = vmatprep.subr.mxu0 0.0
    %2851 = vmatpush1.xpose.msra.mxu0 0.0
    %2852 = vmatprep.subr.mxu0 0.0
    %2853 = vmatpush1.xpose.msra.mxu0 0.0
    %2854 = vmatprep.subr.mxu0 0.0
    %2855 = vmatpush1.xpose.msra.mxu0 0.0
    %2856 = vmatprep.subr.mxu0 0.0
    %2857 = vmatpush1.xpose.msra.mxu0 0.0
    %2858 = vmatprep.subr.mxu0 0.0
    %2859 = vmatpush1.xpose.msra.mxu0 0.0
    %2860 = vmatprep.subr.mxu0 0.0
    %2861 = vmatpush1.xpose.msra.mxu0 0.0
    %2862 = vmatprep.subr.mxu0 0.0
    %2863 = vmatpush1.xpose.msra.mxu0 0.0
    %2864 = vmatprep.subr.mxu0 0.0
    %2865 = vmatpush1.xpose.msra.mxu0 0.0
    %2866 = vmatprep.subr.mxu0 0.0
    %2867 = vmatpush1.xpose.msra.mxu0 0.0
    %2868 = vmatprep.subr.mxu0 0.0
    %2869 = vmatpush1.xpose.msra.mxu0 0.0
    %2870 = vmatprep.subr.mxu0 0.0
    %2871 = vmatpush1.xpose.msra.mxu0 0.0
    %2872 = vmatprep.subr.mxu0 0.0
    %2873 = vmatpush1.xpose.msra.mxu0 0.0
    %2874 = vmatprep.subr.mxu0 0.0
    %2875 = vmatpush1.xpose.msra.mxu0 0.0
    %2876 = vmatprep.subr.mxu0 0.0
    %2877 = vmatpush1.xpose.msra.mxu0 0.0
    %2878 = vmatprep.subr.mxu0 0.0
    %2879 = vmatpush1.xpose.msra.mxu0 0.0
    %2880 = vmatprep.subr.mxu0 0.0
    %2881 = vmatpush1.xpose.msra.mxu0 0.0
    %2882 = vmatprep.subr.mxu0 0.0
    %2883 = vmatpush1.xpose.msra.mxu0 0.0
    %2884 = vmatprep.subr.mxu0 0.0
    %2885 = vmatpush1.xpose.msra.mxu0 0.0
    %2886 = vmatprep.subr.mxu0 0.0
    %2887 = vmatpush1.xpose.msra.mxu0 0.0
    %2888 = vmatprep.subr.mxu0 0.0
    %2889 = vmatpush1.xpose.msra.mxu0 0.0
    %2890 = vmatprep.subr.mxu0 0.0
    %2891 = vmatpush1.xpose.msra.mxu0 0.0
    %2892 = vmatprep.subr.mxu0 0.0
    %2893 = vmatpush1.xpose.msra.mxu0 0.0
    %2894 = vmatprep.subr.mxu0 0.0
    %2895 = vmatpush1.xpose.msra.mxu0 0.0
    %2896 = vmatprep.subr.mxu0 0.0
    %2897 = vmatpush1.xpose.msra.mxu0 0.0
    %2898 = vmatprep.subr.mxu0 0.0
    %2899 = vmatpush1.xpose.msra.mxu0 0.0
    %2900 = vmatprep.subr.mxu0 0.0
    %2901 = vmatpush1.xpose.msra.mxu0 0.0
    %2902 = vmatprep.subr.mxu0 0.0
    %2903 = vmatpush1.xpose.msra.mxu0 0.0
    %2904 = vmatprep.mubr.f32.mxu0 0.0
    %2905 = vmatmul.mubr.f32.gmra.mrb[0].mxu0 %v2836
    %v2906 = vpop.f32.mrb[0].mxu0
    %v2907 = vadd.f32 0.0, %v2906
    %v2908 = vpop.f32.mrb[0].mxu0
    %2909 = vdwg.mxu0
    %v2910 = vmul.f32 %v2907, 0.35355338
    %v2911 = vsel %vm289, %v2910, -inf
    %2912 = vmax.xlane.f32.xlu0 %v2911
    %v2913 = vpop.xlane.xlu0 %2912
    %v2914 = vsub.f32 %v2910, %v2913
    %v2915 = vmul.f32 %v2914, 1.442695
    %v2916 = vpow.pop %v2915
    %v2917 = vsel %vm289, %v2916, 0.0
    %2918 = vadd.xlane.f32.xlu0 %v2917
    %v2919 = vpop.xlane.xlu0 %2918
    %v2920 = vrcp.pop %v2919
    %v2921 = vmul.f32 %v2916, %v2920
    %2922 = vrot.lane.b32.xlu0 %v2328, 56
    %v2923 = vpop.permute.xlu0 %2922
    %v2926 = vsel %vm289, %v2921, 0
    %2928 = vmatprep.subr.mxu0 0.0
    %2929 = vmatpush1.msra.mxu0 %v2923
    %2930 = vmatprep.subr.mxu0 0.0
    %2931 = vmatpush1.msra.mxu0 0.0
    %2932 = vmatprep.subr.mxu0 0.0
    %2933 = vmatpush1.msra.mxu0 0.0
    %2934 = vmatprep.subr.mxu0 0.0
    %2935 = vmatpush1.msra.mxu0 0.0
    %2936 = vmatprep.subr.mxu0 0.0
    %2937 = vmatpush1.msra.mxu0 0.0
    %2938 = vmatprep.subr.mxu0 0.0
    %2939 = vmatpush1.msra.mxu0 0.0
    %2940 = vmatprep.subr.mxu0 0.0
    %2941 = vmatpush1.msra.mxu0 0.0
    %2942 = vmatprep.subr.mxu0 0.0
    %2943 = vmatpush1.msra.mxu0 0.0
    %2944 = vmatprep.subr.mxu0 0.0
    %2945 = vmatpush1.msra.mxu0 0.0
    %2946 = vmatprep.subr.mxu0 0.0
    %2947 = vmatpush1.msra.mxu0 0.0
    %2948 = vmatprep.subr.mxu0 0.0
    %2949 = vmatpush1.msra.mxu0 0.0
    %2950 = vmatprep.subr.mxu0 0.0
    %2951 = vmatpush1.msra.mxu0 0.0
    %2952 = vmatprep.subr.mxu0 0.0
    %2953 = vmatpush1.msra.mxu0 0.0
    %2954 = vmatprep.subr.mxu0 0.0
    %2955 = vmatpush1.msra.mxu0 0.0
    %2956 = vmatprep.subr.mxu0 0.0
    %2957 = vmatpush1.msra.mxu0 0.0
    %2958 = vmatprep.subr.mxu0 0.0
    %2959 = vmatpush1.msra.mxu0 0.0
    %2960 = vmatprep.subr.mxu0 0.0
    %2961 = vmatpush1.msra.mxu0 0.0
    %2962 = vmatprep.subr.mxu0 0.0
    %2963 = vmatpush1.msra.mxu0 0.0
    %2964 = vmatprep.subr.mxu0 0.0
    %2965 = vmatpush1.msra.mxu0 0.0
    %2966 = vmatprep.subr.mxu0 0.0
    %2967 = vmatpush1.msra.mxu0 0.0
    %2968 = vmatprep.subr.mxu0 0.0
    %2969 = vmatpush1.msra.mxu0 0.0
    %2970 = vmatprep.subr.mxu0 0.0
    %2971 = vmatpush1.msra.mxu0 0.0
    %2972 = vmatprep.subr.mxu0 0.0
    %2973 = vmatpush1.msra.mxu0 0.0
    %2974 = vmatprep.subr.mxu0 0.0
    %2975 = vmatpush1.msra.mxu0 0.0
    %2976 = vmatprep.subr.mxu0 0.0
    %2977 = vmatpush1.msra.mxu0 0.0
    %2978 = vmatprep.subr.mxu0 0.0
    %2979 = vmatpush1.msra.mxu0 0.0
    %2980 = vmatprep.subr.mxu0 0.0
    %2981 = vmatpush1.msra.mxu0 0.0
    %2982 = vmatprep.subr.mxu0 0.0
    %2983 = vmatpush1.msra.mxu0 0.0
    %2984 = vmatprep.subr.mxu0 0.0
    %2985 = vmatpush1.msra.mxu0 0.0
    %2986 = vmatprep.subr.mxu0 0.0
    %2987 = vmatpush1.msra.mxu0 0.0
    %2988 = vmatprep.subr.mxu0 0.0
    %2989 = vmatpush1.msra.mxu0 0.0
    %2990 = vmatprep.subr.mxu0 0.0
    %2991 = vmatpush1.msra.mxu0 0.0
    %2992 = vmatprep.mubr.f32.mxu0 0.0
    %2993 = vmatmul.mubr.f32.gmra.mrb[0].mxu0 %v2926
    %v2994 = vpop.f32.mrb[0].mxu0
    %v2995 = vadd.f32 0.0, %v2994
    %v2996 = vpop.f32.mrb[0].mxu0
    %2997 = vdwg.mxu0
    %v2999 = vsel %vm289, %v2829, 0
    %v3002 = vsel %vm289, %v2995, 0
    %3004 = vmatprep.subr.mxu0 0.0
    %3005 = vmatpush1.msra.mxu0 %v2333
    %3006 = vmatprep.subr.mxu0 0.0
    %3007 = vmatpush1.msra.mxu0 0.0
    %3008 = vmatprep.subr.mxu0 0.0
    %3009 = vmatpush1.msra.mxu0 0.0
    %3010 = vmatprep.subr.mxu0 0.0
    %3011 = vmatpush1.msra.mxu0 0.0
    %3012 = vmatprep.subr.mxu0 0.0
    %3013 = vmatpush1.msra.mxu0 0.0
    %3014 = vmatprep.subr.mxu0 0.0
    %3015 = vmatpush1.msra.mxu0 0.0
    %3016 = vmatprep.subr.mxu0 0.0
    %3017 = vmatpush1.msra.mxu0 0.0
    %3018 = vmatprep.subr.mxu0 0.0
    %3019 = vmatpush1.msra.mxu0 0.0
    %3020 = vmatprep.subr.mxu0 0.0
    %3021 = vmatpush1.msra.mxu0 0.0
    %3022 = vmatprep.subr.mxu0 0.0
    %3023 = vmatpush1.msra.mxu0 0.0
    %3024 = vmatprep.subr.mxu0 0.0
    %3025 = vmatpush1.msra.mxu0 0.0
    %3026 = vmatprep.subr.mxu0 0.0
    %3027 = vmatpush1.msra.mxu0 0.0
    %3028 = vmatprep.subr.mxu0 0.0
    %3029 = vmatpush1.msra.mxu0 0.0
    %3030 = vmatprep.subr.mxu0 0.0
    %3031 = vmatpush1.msra.mxu0 0.0
    %3032 = vmatprep.subr.mxu0 0.0
    %3033 = vmatpush1.msra.mxu0 0.0
    %3034 = vmatprep.subr.mxu0 0.0
    %3035 = vmatpush1.msra.mxu0 0.0
    %3036 = vmatprep.subr.mxu0 0.0
    %3037 = vmatpush1.msra.mxu0 0.0
    %3038 = vmatprep.subr.mxu0 0.0
    %3039 = vmatpush1.msra.mxu0 0.0
    %3040 = vmatprep.subr.mxu0 0.0
    %3041 = vmatpush1.msra.mxu0 0.0
    %3042 = vmatprep.subr.mxu0 0.0
    %3043 = vmatpush1.msra.mxu0 0.0
    %3044 = vmatprep.subr.mxu0 0.0
    %3045 = vmatpush1.msra.mxu0 0.0
    %3046 = vmatprep.subr.mxu0 0.0
    %3047 = vmatpush1.msra.mxu0 0.0
    %3048 = vmatprep.subr.mxu0 0.0
    %3049 = vmatpush1.msra.mxu0 0.0
    %3050 = vmatprep.subr.mxu0 0.0
    %3051 = vmatpush1.msra.mxu0 0.0
    %3052 = vmatprep.subr.mxu0 0.0
    %3053 = vmatpush1.msra.mxu0 0.0
    %3054 = vmatprep.subr.mxu0 0.0
    %3055 = vmatpush1.msra.mxu0 0.0
    %3056 = vmatprep.subr.mxu0 0.0
    %3057 = vmatpush1.msra.mxu0 0.0
    %3058 = vmatprep.subr.mxu0 0.0
    %3059 = vmatpush1.msra.mxu0 0.0
    %3060 = vmatprep.subr.mxu0 0.0
    %3061 = vmatpush1.msra.mxu0 0.0
    %3062 = vmatprep.subr.mxu0 0.0
    %3063 = vmatpush1.msra.mxu0 0.0
    %3064 = vmatprep.subr.mxu0 0.0
    %3065 = vmatpush1.msra.mxu0 0.0
    %3066 = vmatprep.subr.mxu0 0.0
    %3067 = vmatpush1.msra.mxu0 0.0
    %3068 = vmatprep.mubr.f32.mxu0 0.0
    %3069 = vmatmul.mubr.f32.gmra.mrb[0].mxu0 %v2999
    %v3070 = vpop.f32.mrb[0].mxu0
    %v3071 = vadd.f32 0.0, %v3070
    %v3072 = vpop.f32.mrb[0].mxu0
    %3073 = vmatprep.mubr.f32.mxu0 0.0
    %3074 = vmatmul.mubr.f32.gmra.mrb[0].mxu0 %v3002
    %v3075 = vpop.f32.mrb[0].mxu0
    %v3076 = vadd.f32 0.0, %v3075
    %v3077 = vpop.f32.mrb[0].mxu0
    %3078 = vdwg.mxu0
    %v3080 = vsel %vm289, %v2498, 0
    %v3083 = vsel %vm289, %v2663, 0
    %3085 = vmatprep.subr.mxu0 0.0
    %3086 = vmatpush1.msra.mxu0 %v2332
    %3087 = vmatprep.subr.mxu0 0.0
    %3088 = vmatpush1.msra.mxu0 0.0
    %3089 = vmatprep.subr.mxu0 0.0
    %3090 = vmatpush1.msra.mxu0 0.0
    %3091 = vmatprep.subr.mxu0 0.0
    %3092 = vmatpush1.msra.mxu0 0.0
    %3093 = vmatprep.subr.mxu0 0.0
    %3094 = vmatpush1.msra.mxu0 0.0
    %3095 = vmatprep.subr.mxu0 0.0
    %3096 = vmatpush1.msra.mxu0 0.0
    %3097 = vmatprep.subr.mxu0 0.0
    %3098 = vmatpush1.msra.mxu0 0.0
    %3099 = vmatprep.subr.mxu0 0.0
    %3100 = vmatpush1.msra.mxu0 0.0
    %3101 = vmatprep.subr.mxu0 0.0
    %3102 = vmatpush1.msra.mxu0 0.0
    %3103 = vmatprep.subr.mxu0 0.0
    %3104 = vmatpush1.msra.mxu0 0.0
    %3105 = vmatprep.subr.mxu0 0.0
    %3106 = vmatpush1.msra.mxu0 0.0
    %3107 = vmatprep.subr.mxu0 0.0
    %3108 = vmatpush1.msra.mxu0 0.0
    %3109 = vmatprep.subr.mxu0 0.0
    %3110 = vmatpush1.msra.mxu0 0.0
    %3111 = vmatprep.subr.mxu0 0.0
    %3112 = vmatpush1.msra.mxu0 0.0
    %3113 = vmatprep.subr.mxu0 0.0
    %3114 = vmatpush1.msra.mxu0 0.0
    %3115 = vmatprep.subr.mxu0 0.0
    %3116 = vmatpush1.msra.mxu0 0.0
    %3117 = vmatprep.subr.mxu0 0.0
    %3118 = vmatpush1.msra.mxu0 0.0
    %3119 = vmatprep.subr.mxu0 0.0
    %3120 = vmatpush1.msra.mxu0 0.0
    %3121 = vmatprep.subr.mxu0 0.0
    %3122 = vmatpush1.msra.mxu0 0.0
    %3123 = vmatprep.subr.mxu0 0.0
    %3124 = vmatpush1.msra.mxu0 0.0
    %3125 = vmatprep.subr.mxu0 0.0
    %3126 = vmatpush1.msra.mxu0 0.0
    %3127 = vmatprep.subr.mxu0 0.0
    %3128 = vmatpush1.msra.mxu0 0.0
    %3129 = vmatprep.subr.mxu0 0.0
    %3130 = vmatpush1.msra.mxu0 0.0
    %3131 = vmatprep.subr.mxu0 0.0
    %3132 = vmatpush1.msra.mxu0 0.0
    %3133 = vmatprep.subr.mxu0 0.0
    %3134 = vmatpush1.msra.mxu0 0.0
    %3135 = vmatprep.subr.mxu0 0.0
    %3136 = vmatpush1.msra.mxu0 0.0
    %3137 = vmatprep.subr.mxu0 0.0
    %3138 = vmatpush1.msra.mxu0 0.0
    %3139 = vmatprep.subr.mxu0 0.0
    %3140 = vmatpush1.msra.mxu0 0.0
    %3141 = vmatprep.subr.mxu0 0.0
    %3142 = vmatpush1.msra.mxu0 0.0
    %3143 = vmatprep.subr.mxu0 0.0
    %3144 = vmatpush1.msra.mxu0 0.0
    %3145 = vmatprep.subr.mxu0 0.0
    %3146 = vmatpush1.msra.mxu0 0.0
    %3147 = vmatprep.subr.mxu0 0.0
    %3148 = vmatpush1.msra.mxu0 0.0
    %3149 = vmatprep.mubr.f32.mxu0 0.0
    %3150 = vmatmul.mubr.f32.gmra.mrb[0].mxu0 %v3080
    %v3151 = vpop.f32.mrb[0].mxu0
    %v3152 = vadd.f32 %v3071, %v3151
    %v3153 = vpop.f32.mrb[0].mxu0
    %3154 = vmatprep.mubr.f32.mxu0 0.0
    %3155 = vmatmul.mubr.f32.gmra.mrb[0].mxu0 %v3083
    %v3156 = vpop.f32.mrb[0].mxu0
    %v3157 = vadd.f32 %v3076, %v3156
    %v3158 = vpop.f32.mrb[0].mxu0
    %3159 = vdwg.mxu0
    %3160 = vrot.lane.b32.xlu0 %v2323, 112
    %v3161 = vpop.permute.xlu0 %3160
    %3162 = vrot.lane.b32.xlu0 %v2323, 80
    %v3163 = vpop.permute.xlu0 %3162
    %v3164 = vsel %vm289, %v3161, 0
    %v3166 = vsel %vm289, %v3163, 0
    %3168 = vmatprep.subr.mxu0 0.0
    %3169 = vmatpush1.xpose.msra.mxu0 %v3166
    %3170 = vmatprep.subr.mxu0 0.0
    %3171 = vmatpush1.xpose.msra.mxu0 0.0
    %3172 = vmatprep.subr.mxu0 0.0
    %3173 = vmatpush1.xpose.msra.mxu0 0.0
    %3174 = vmatprep.subr.mxu0 0.0
    %3175 = vmatpush1.xpose.msra.mxu0 0.0
    %3176 = vmatprep.subr.mxu0 0.0
    %3177 = vmatpush1.xpose.msra.mxu0 0.0
    %3178 = vmatprep.subr.mxu0 0.0
    %3179 = vmatpush1.xpose.msra.mxu0 0.0
    %3180 = vmatprep.subr.mxu0 0.0
    %3181 = vmatpush1.xpose.msra.mxu0 0.0
    %3182 = vmatprep.subr.mxu0 0.0
    %3183 = vmatpush1.xpose.msra.mxu0 0.0
    %3184 = vmatprep.subr.mxu0 0.0
    %3185 = vmatpush1.xpose.msra.mxu0 0.0
    %3186 = vmatprep.subr.mxu0 0.0
    %3187 = vmatpush1.xpose.msra.mxu0 0.0
    %3188 = vmatprep.subr.mxu0 0.0
    %3189 = vmatpush1.xpose.msra.mxu0 0.0
    %3190 = vmatprep.subr.mxu0 0.0
    %3191 = vmatpush1.xpose.msra.mxu0 0.0
    %3192 = vmatprep.subr.mxu0 0.0
    %3193 = vmatpush1.xpose.msra.mxu0 0.0
    %3194 = vmatprep.subr.mxu0 0.0
    %3195 = vmatpush1.xpose.msra.mxu0 0.0
    %3196 = vmatprep.subr.mxu0 0.0
    %3197 = vmatpush1.xpose.msra.mxu0 0.0
    %3198 = vmatprep.subr.mxu0 0.0
    %3199 = vmatpush1.xpose.msra.mxu0 0.0
    %3200 = vmatprep.subr.mxu0 0.0
    %3201 = vmatpush1.xpose.msra.mxu0 0.0
    %3202 = vmatprep.subr.mxu0 0.0
    %3203 = vmatpush1.xpose.msra.mxu0 0.0
    %3204 = vmatprep.subr.mxu0 0.0
    %3205 = vmatpush1.xpose.msra.mxu0 0.0
    %3206 = vmatprep.subr.mxu0 0.0
    %3207 = vmatpush1.xpose.msra.mxu0 0.0
    %3208 = vmatprep.subr.mxu0 0.0
    %3209 = vmatpush1.xpose.msra.mxu0 0.0
    %3210 = vmatprep.subr.mxu0 0.0
    %3211 = vmatpush1.xpose.msra.mxu0 0.0
    %3212 = vmatprep.subr.mxu0 0.0
    %3213 = vmatpush1.xpose.msra.mxu0 0.0
    %3214 = vmatprep.subr.mxu0 0.0
    %3215 = vmatpush1.xpose.msra.mxu0 0.0
    %3216 = vmatprep.subr.mxu0 0.0
    %3217 = vmatpush1.xpose.msra.mxu0 0.0
    %3218 = vmatprep.subr.mxu0 0.0
    %3219 = vmatpush1.xpose.msra.mxu0 0.0
    %3220 = vmatprep.subr.mxu0 0.0
    %3221 = vmatpush1.xpose.msra.mxu0 0.0
    %3222 = vmatprep.subr.mxu0 0.0
    %3223 = vmatpush1.xpose.msra.mxu0 0.0
    %3224 = vmatprep.subr.mxu0 0.0
    %3225 = vmatpush1.xpose.msra.mxu0 0.0
    %3226 = vmatprep.subr.mxu0 0.0
    %3227 = vmatpush1.xpose.msra.mxu0 0.0
    %3228 = vmatprep.subr.mxu0 0.0
    %3229 = vmatpush1.xpose.msra.mxu0 0.0
    %3230 = vmatprep.subr.mxu0 0.0
    %3231 = vmatpush1.xpose.msra.mxu0 0.0
    %3232 = vmatprep.mubr.f32.mxu0 0.0
    %3233 = vmatmul.mubr.f32.gmra.mrb[0].mxu0 %v3164
    %v3234 = vpop.f32.mrb[0].mxu0
    %v3235 = vadd.f32 0.0, %v3234
    %v3236 = vpop.f32.mrb[0].mxu0
    %3237 = vdwg.mxu0
    %v3238 = vmul.f32 %v3235, 0.35355338
    %v3239 = vsel %vm289, %v3238, -inf
    %3240 = vmax.xlane.f32.xlu0 %v3239
    %v3241 = vpop.xlane.xlu0 %3240
    %v3242 = vsub.f32 %v3238, %v3241
    %v3243 = vmul.f32 %v3242, 1.442695
    %v3244 = vpow.pop %v3243
    %v3245 = vsel %vm289, %v3244, 0.0
    %3246 = vadd.xlane.f32.xlu0 %v3245
    %v3247 = vpop.xlane.xlu0 %3246
    %v3248 = vrcp.pop %v3247
    %v3249 = vmul.f32 %v3244, %v3248
    %3250 = vrot.lane.b32.xlu0 %v2323, 48
    %v3251 = vpop.permute.xlu0 %3250
    %v3254 = vsel %vm289, %v3249, 0
    %3256 = vmatprep.subr.mxu0 0.0
    %3257 = vmatpush1.msra.mxu0 %v3251
    %3258 = vmatprep.subr.mxu0 0.0
    %3259 = vmatpush1.msra.mxu0 0.0
    %3260 = vmatprep.subr.mxu0 0.0
    %3261 = vmatpush1.msra.mxu0 0.0
    %3262 = vmatprep.subr.mxu0 0.0
    %3263 = vmatpush1.msra.mxu0 0.0
    %3264 = vmatprep.subr.mxu0 0.0
    %3265 = vmatpush1.msra.mxu0 0.0
    %3266 = vmatprep.subr.mxu0 0.0
    %3267 = vmatpush1.msra.mxu0 0.0
    %3268 = vmatprep.subr.mxu0 0.0
    %3269 = vmatpush1.msra.mxu0 0.0
    %3270 = vmatprep.subr.mxu0 0.0
    %3271 = vmatpush1.msra.mxu0 0.0
    %3272 = vmatprep.subr.mxu0 0.0
    %3273 = vmatpush1.msra.mxu0 0.0
    %3274 = vmatprep.subr.mxu0 0.0
    %3275 = vmatpush1.msra.mxu0 0.0
    %3276 = vmatprep.subr.mxu0 0.0
    %3277 = vmatpush1.msra.mxu0 0.0
    %3278 = vmatprep.subr.mxu0 0.0
    %3279 = vmatpush1.msra.mxu0 0.0
    %3280 = vmatprep.subr.mxu0 0.0
    %3281 = vmatpush1.msra.mxu0 0.0
    %3282 = vmatprep.subr.mxu0 0.0
    %3283 = vmatpush1.msra.mxu0 0.0
    %3284 = vmatprep.subr.mxu0 0.0
    %3285 = vmatpush1.msra.mxu0 0.0
    %3286 = vmatprep.subr.mxu0 0.0
    %3287 = vmatpush1.msra.mxu0 0.0
    %3288 = vmatprep.subr.mxu0 0.0
    %3289 = vmatpush1.msra.mxu0 0.0
    %3290 = vmatprep.subr.mxu0 0.0
    %3291 = vmatpush1.msra.mxu0 0.0
    %3292 = vmatprep.subr.mxu0 0.0
    %3293 = vmatpush1.msra.mxu0 0.0
    %3294 = vmatprep.subr.mxu0 0.0
    %3295 = vmatpush1.msra.mxu0 0.0
    %3296 = vmatprep.subr.mxu0 0.0
    %3297 = vmatpush1.msra.mxu0 0.0
    %3298 = vmatprep.subr.mxu0 0.0
    %3299 = vmatpush1.msra.mxu0 0.0
    %3300 = vmatprep.subr.mxu0 0.0
    %3301 = vmatpush1.msra.mxu0 0.0
    %3302 = vmatprep.subr.mxu0 0.0
    %3303 = vmatpush1.msra.mxu0 0.0
    %3304 = vmatprep.subr.mxu0 0.0
    %3305 = vmatpush1.msra.mxu0 0.0
    %3306 = vmatprep.subr.mxu0 0.0
    %3307 = vmatpush1.msra.mxu0 0.0
    %3308 = vmatprep.subr.mxu0 0.0
    %3309 = vmatpush1.msra.mxu0 0.0
    %3310 = vmatprep.subr.mxu0 0.0
    %3311 = vmatpush1.msra.mxu0 0.0
    %3312 = vmatprep.subr.mxu0 0.0
    %3313 = vmatpush1.msra.mxu0 0.0
    %3314 = vmatprep.subr.mxu0 0.0
    %3315 = vmatpush1.msra.mxu0 0.0
    %3316 = vmatprep.subr.mxu0 0.0
    %3317 = vmatpush1.msra.mxu0 0.0
    %3318 = vmatprep.subr.mxu0 0.0
    %3319 = vmatpush1.msra.mxu0 0.0
    %3320 = vmatprep.mubr.f32.mxu0 0.0
    %3321 = vmatmul.mubr.f32.gmra.mrb[0].mxu0 %v3254
    %v3322 = vpop.f32.mrb[0].mxu0
    %v3323 = vadd.f32 0.0, %v3322
    %v3324 = vpop.f32.mrb[0].mxu0
    %3325 = vdwg.mxu0
    %3326 = vrot.lane.b32.xlu0 %v2328, 112
    %v3327 = vpop.permute.xlu0 %3326
    %3328 = vrot.lane.b32.xlu0 %v2328, 80
    %v3329 = vpop.permute.xlu0 %3328
    %v3330 = vsel %vm289, %v3327, 0
    %v3332 = vsel %vm289, %v3329, 0
    %3334 = vmatprep.subr.mxu0 0.0
    %3335 = vmatpush1.xpose.msra.mxu0 %v3332
    %3336 = vmatprep.subr.mxu0 0.0
    %3337 = vmatpush1.xpose.msra.mxu0 0.0
    %3338 = vmatprep.subr.mxu0 0.0
    %3339 = vmatpush1.xpose.msra.mxu0 0.0
    %3340 = vmatprep.subr.mxu0 0.0
    %3341 = vmatpush1.xpose.msra.mxu0 0.0
    %3342 = vmatprep.subr.mxu0 0.0
    %3343 = vmatpush1.xpose.msra.mxu0 0.0
    %3344 = vmatprep.subr.mxu0 0.0
    %3345 = vmatpush1.xpose.msra.mxu0 0.0
    %3346 = vmatprep.subr.mxu0 0.0
    %3347 = vmatpush1.xpose.msra.mxu0 0.0
    %3348 = vmatprep.subr.mxu0 0.0
    %3349 = vmatpush1.xpose.msra.mxu0 0.0
    %3350 = vmatprep.subr.mxu0 0.0
    %3351 = vmatpush1.xpose.msra.mxu0 0.0
    %3352 = vmatprep.subr.mxu0 0.0
    %3353 = vmatpush1.xpose.msra.mxu0 0.0
    %3354 = vmatprep.subr.mxu0 0.0
    %3355 = vmatpush1.xpose.msra.mxu0 0.0
    %3356 = vmatprep.subr.mxu0 0.0
    %3357 = vmatpush1.xpose.msra.mxu0 0.0
    %3358 = vmatprep.subr.mxu0 0.0
    %3359 = vmatpush1.xpose.msra.mxu0 0.0
    %3360 = vmatprep.subr.mxu0 0.0
    %3361 = vmatpush1.xpose.msra.mxu0 0.0
    %3362 = vmatprep.subr.mxu0 0.0
    %3363 = vmatpush1.xpose.msra.mxu0 0.0
    %3364 = vmatprep.subr.mxu0 0.0
    %3365 = vmatpush1.xpose.msra.mxu0 0.0
    %3366 = vmatprep.subr.mxu0 0.0
    %3367 = vmatpush1.xpose.msra.mxu0 0.0
    %3368 = vmatprep.subr.mxu0 0.0
    %3369 = vmatpush1.xpose.msra.mxu0 0.0
    %3370 = vmatprep.subr.mxu0 0.0
    %3371 = vmatpush1.xpose.msra.mxu0 0.0
    %3372 = vmatprep.subr.mxu0 0.0
    %3373 = vmatpush1.xpose.msra.mxu0 0.0
    %3374 = vmatprep.subr.mxu0 0.0
    %3375 = vmatpush1.xpose.msra.mxu0 0.0
    %3376 = vmatprep.subr.mxu0 0.0
    %3377 = vmatpush1.xpose.msra.mxu0 0.0
    %3378 = vmatprep.subr.mxu0 0.0
    %3379 = vmatpush1.xpose.msra.mxu0 0.0
    %3380 = vmatprep.subr.mxu0 0.0
    %3381 = vmatpush1.xpose.msra.mxu0 0.0
    %3382 = vmatprep.subr.mxu0 0.0
    %3383 = vmatpush1.xpose.msra.mxu0 0.0
    %3384 = vmatprep.subr.mxu0 0.0
    %3385 = vmatpush1.xpose.msra.mxu0 0.0
    %3386 = vmatprep.subr.mxu0 0.0
    %3387 = vmatpush1.xpose.msra.mxu0 0.0
    %3388 = vmatprep.subr.mxu0 0.0
    %3389 = vmatpush1.xpose.msra.mxu0 0.0
    %3390 = vmatprep.subr.mxu0 0.0
    %3391 = vmatpush1.xpose.msra.mxu0 0.0
    %3392 = vmatprep.subr.mxu0 0.0
    %3393 = vmatpush1.xpose.msra.mxu0 0.0
    %3394 = vmatprep.subr.mxu0 0.0
    %3395 = vmatpush1.xpose.msra.mxu0 0.0
    %3396 = vmatprep.subr.mxu0 0.0
    %3397 = vmatpush1.xpose.msra.mxu0 0.0
    %3398 = vmatprep.mubr.f32.mxu0 0.0
    %3399 = vmatmul.mubr.f32.gmra.mrb[0].mxu0 %v3330
    %v3400 = vpop.f32.mrb[0].mxu0
    %v3401 = vadd.f32 0.0, %v3400
    %v3402 = vpop.f32.mrb[0].mxu0
    %3403 = vdwg.mxu0
    %v3404 = vmul.f32 %v3401, 0.35355338
    %v3405 = vsel %vm289, %v3404, -inf
    %3406 = vmax.xlane.f32.xlu0 %v3405
    %v3407 = vpop.xlane.xlu0 %3406
    %v3408 = vsub.f32 %v3404, %v3407
    %v3409 = vmul.f32 %v3408, 1.442695
    %v3410 = vpow.pop %v3409
    %v3411 = vsel %vm289, %v3410, 0.0
    %3412 = vadd.xlane.f32.xlu0 %v3411
    %v3413 = vpop.xlane.xlu0 %3412
    %v3414 = vrcp.pop %v3413
    %v3415 = vmul.f32 %v3410, %v3414
    %3416 = vrot.lane.b32.xlu0 %v2328, 48
    %v3417 = vpop.permute.xlu0 %3416
    %v3420 = vsel %vm289, %v3415, 0
    %3422 = vmatprep.subr.mxu0 0.0
    %3423 = vmatpush1.msra.mxu0 %v3417
    %3424 = vmatprep.subr.mxu0 0.0
    %3425 = vmatpush1.msra.mxu0 0.0
    %3426 = vmatprep.subr.mxu0 0.0
    %3427 = vmatpush1.msra.mxu0 0.0
    %3428 = vmatprep.subr.mxu0 0.0
    %3429 = vmatpush1.msra.mxu0 0.0
    %3430 = vmatprep.subr.mxu0 0.0
    %3431 = vmatpush1.msra.mxu0 0.0
    %3432 = vmatprep.subr.mxu0 0.0
    %3433 = vmatpush1.msra.mxu0 0.0
    %3434 = vmatprep.subr.mxu0 0.0
    %3435 = vmatpush1.msra.mxu0 0.0
    %3436 = vmatprep.subr.mxu0 0.0
    %3437 = vmatpush1.msra.mxu0 0.0
    %3438 = vmatprep.subr.mxu0 0.0
    %3439 = vmatpush1.msra.mxu0 0.0
    %3440 = vmatprep.subr.mxu0 0.0
    %3441 = vmatpush1.msra.mxu0 0.0
    %3442 = vmatprep.subr.mxu0 0.0
    %3443 = vmatpush1.msra.mxu0 0.0
    %3444 = vmatprep.subr.mxu0 0.0
    %3445 = vmatpush1.msra.mxu0 0.0
    %3446 = vmatprep.subr.mxu0 0.0
    %3447 = vmatpush1.msra.mxu0 0.0
    %3448 = vmatprep.subr.mxu0 0.0
    %3449 = vmatpush1.msra.mxu0 0.0
    %3450 = vmatprep.subr.mxu0 0.0
    %3451 = vmatpush1.msra.mxu0 0.0
    %3452 = vmatprep.subr.mxu0 0.0
    %3453 = vmatpush1.msra.mxu0 0.0
    %3454 = vmatprep.subr.mxu0 0.0
    %3455 = vmatpush1.msra.mxu0 0.0
    %3456 = vmatprep.subr.mxu0 0.0
    %3457 = vmatpush1.msra.mxu0 0.0
    %3458 = vmatprep.subr.mxu0 0.0
    %3459 = vmatpush1.msra.mxu0 0.0
    %3460 = vmatprep.subr.mxu0 0.0
    %3461 = vmatpush1.msra.mxu0 0.0
    %3462 = vmatprep.subr.mxu0 0.0
    %3463 = vmatpush1.msra.mxu0 0.0
    %3464 = vmatprep.subr.mxu0 0.0
    %3465 = vmatpush1.msra.mxu0 0.0
    %3466 = vmatprep.subr.mxu0 0.0
    %3467 = vmatpush1.msra.mxu0 0.0
    %3468 = vmatprep.subr.mxu0 0.0
    %3469 = vmatpush1.msra.mxu0 0.0
    %3470 = vmatprep.subr.mxu0 0.0
    %3471 = vmatpush1.msra.mxu0 0.0
    %3472 = vmatprep.subr.mxu0 0.0
    %3473 = vmatpush1.msra.mxu0 0.0
    %3474 = vmatprep.subr.mxu0 0.0
    %3475 = vmatpush1.msra.mxu0 0.0
    %3476 = vmatprep.subr.mxu0 0.0
    %3477 = vmatpush1.msra.mxu0 0.0
    %3478 = vmatprep.subr.mxu0 0.0
    %3479 = vmatpush1.msra.mxu0 0.0
    %3480 = vmatprep.subr.mxu0 0.0
    %3481 = vmatpush1.msra.mxu0 0.0
    %3482 = vmatprep.subr.mxu0 0.0
    %3483 = vmatpush1.msra.mxu0 0.0
    %3484 = vmatprep.subr.mxu0 0.0
    %3485 = vmatpush1.msra.mxu0 0.0
    %3486 = vmatprep.mubr.f32.mxu0 0.0
    %3487 = vmatmul.mubr.f32.gmra.mrb[0].mxu0 %v3420
    %v3488 = vpop.f32.mrb[0].mxu0
    %v3489 = vadd.f32 0.0, %v3488
    %v3490 = vpop.f32.mrb[0].mxu0
    %3491 = vdwg.mxu0
    %v3493 = vsel %vm289, %v3323, 0
    %v3496 = vsel %vm289, %v3489, 0
    %3498 = vmatprep.subr.mxu0 0.0
    %3499 = vmatpush1.msra.mxu0 %v2334
    %3500 = vmatprep.subr.mxu0 0.0
    %3501 = vmatpush1.msra.mxu0 0.0
    %3502 = vmatprep.subr.mxu0 0.0
    %3503 = vmatpush1.msra.mxu0 0.0
    %3504 = vmatprep.subr.mxu0 0.0
    %3505 = vmatpush1.msra.mxu0 0.0
    %3506 = vmatprep.subr.mxu0 0.0
    %3507 = vmatpush1.msra.mxu0 0.0
    %3508 = vmatprep.subr.mxu0 0.0
    %3509 = vmatpush1.msra.mxu0 0.0
    %3510 = vmatprep.subr.mxu0 0.0
    %3511 = vmatpush1.msra.mxu0 0.0
    %3512 = vmatprep.subr.mxu0 0.0
    %3513 = vmatpush1.msra.mxu0 0.0
    %3514 = vmatprep.subr.mxu0 0.0
    %3515 = vmatpush1.msra.mxu0 0.0
    %3516 = vmatprep.subr.mxu0 0.0
    %3517 = vmatpush1.msra.mxu0 0.0
    %3518 = vmatprep.subr.mxu0 0.0
    %3519 = vmatpush1.msra.mxu0 0.0
    %3520 = vmatprep.subr.mxu0 0.0
    %3521 = vmatpush1.msra.mxu0 0.0
    %3522 = vmatprep.subr.mxu0 0.0
    %3523 = vmatpush1.msra.mxu0 0.0
    %3524 = vmatprep.subr.mxu0 0.0
    %3525 = vmatpush1.msra.mxu0 0.0
    %3526 = vmatprep.subr.mxu0 0.0
    %3527 = vmatpush1.msra.mxu0 0.0
    %3528 = vmatprep.subr.mxu0 0.0
    %3529 = vmatpush1.msra.mxu0 0.0
    %3530 = vmatprep.subr.mxu0 0.0
    %3531 = vmatpush1.msra.mxu0 0.0
    %3532 = vmatprep.subr.mxu0 0.0
    %3533 = vmatpush1.msra.mxu0 0.0
    %3534 = vmatprep.subr.mxu0 0.0
    %3535 = vmatpush1.msra.mxu0 0.0
    %3536 = vmatprep.subr.mxu0 0.0
    %3537 = vmatpush1.msra.mxu0 0.0
    %3538 = vmatprep.subr.mxu0 0.0
    %3539 = vmatpush1.msra.mxu0 0.0
    %3540 = vmatprep.subr.mxu0 0.0
    %3541 = vmatpush1.msra.mxu0 0.0
    %3542 = vmatprep.subr.mxu0 0.0
    %3543 = vmatpush1.msra.mxu0 0.0
    %3544 = vmatprep.subr.mxu0 0.0
    %3545 = vmatpush1.msra.mxu0 0.0
    %3546 = vmatprep.subr.mxu0 0.0
    %3547 = vmatpush1.msra.mxu0 0.0
    %3548 = vmatprep.subr.mxu0 0.0
    %3549 = vmatpush1.msra.mxu0 0.0
    %3550 = vmatprep.subr.mxu0 0.0
    %3551 = vmatpush1.msra.mxu0 0.0
    %3552 = vmatprep.subr.mxu0 0.0
    %3553 = vmatpush1.msra.mxu0 0.0
    %3554 = vmatprep.subr.mxu0 0.0
    %3555 = vmatpush1.msra.mxu0 0.0
    %3556 = vmatprep.subr.mxu0 0.0
    %3557 = vmatpush1.msra.mxu0 0.0
    %3558 = vmatprep.subr.mxu0 0.0
    %3559 = vmatpush1.msra.mxu0 0.0
    %3560 = vmatprep.subr.mxu0 0.0
    %3561 = vmatpush1.msra.mxu0 0.0
    %3562 = vmatprep.mubr.f32.mxu0 0.0
    %3563 = vmatmul.mubr.f32.gmra.mrb[0].mxu0 %v3493
    %v3564 = vpop.f32.mrb[0].mxu0
    %v3565 = vadd.f32 0.0, %v3564
    %v3566 = vpop.f32.mrb[0].mxu0
    %3567 = vmatprep.mubr.f32.mxu0 0.0
    %3568 = vmatmul.mubr.f32.gmra.mrb[0].mxu0 %v3496
    %v3569 = vpop.f32.mrb[0].mxu0
    %v3570 = vadd.f32 0.0, %v3569
    %v3571 = vpop.f32.mrb[0].mxu0
    %3572 = vdwg.mxu0
    %v3573 = vadd.f32 %v3152, %v3565
    %v3574 = vadd.f32 %v3157, %v3570
    %3575 = vrot.lane.b32.xlu0 %v2323, 104
    %v3576 = vpop.permute.xlu0 %3575
    %3577 = vrot.lane.b32.xlu0 %v2323, 72
    %v3578 = vpop.permute.xlu0 %3577
    %v3579 = vsel %vm289, %v3576, 0
    %v3581 = vsel %vm289, %v3578, 0
    %3583 = vmatprep.subr.mxu0 0.0
    %3584 = vmatpush1.xpose.msra.mxu0 %v3581
    %3585 = vmatprep.subr.mxu0 0.0
    %3586 = vmatpush1.xpose.msra.mxu0 0.0
    %3587 = vmatprep.subr.mxu0 0.0
    %3588 = vmatpush1.xpose.msra.mxu0 0.0
    %3589 = vmatprep.subr.mxu0 0.0
    %3590 = vmatpush1.xpose.msra.mxu0 0.0
    %3591 = vmatprep.subr.mxu0 0.0
    %3592 = vmatpush1.xpose.msra.mxu0 0.0
    %3593 = vmatprep.subr.mxu0 0.0
    %3594 = vmatpush1.xpose.msra.mxu0 0.0
    %3595 = vmatprep.subr.mxu0 0.0
    %3596 = vmatpush1.xpose.msra.mxu0 0.0
    %3597 = vmatprep.subr.mxu0 0.0
    %3598 = vmatpush1.xpose.msra.mxu0 0.0
    %3599 = vmatprep.subr.mxu0 0.0
    %3600 = vmatpush1.xpose.msra.mxu0 0.0
    %3601 = vmatprep.subr.mxu0 0.0
    %3602 = vmatpush1.xpose.msra.mxu0 0.0
    %3603 = vmatprep.subr.mxu0 0.0
    %3604 = vmatpush1.xpose.msra.mxu0 0.0
    %3605 = vmatprep.subr.mxu0 0.0
    %3606 = vmatpush1.xpose.msra.mxu0 0.0
    %3607 = vmatprep.subr.mxu0 0.0
    %3608 = vmatpush1.xpose.msra.mxu0 0.0
    %3609 = vmatprep.subr.mxu0 0.0
    %3610 = vmatpush1.xpose.msra.mxu0 0.0
    %3611 = vmatprep.subr.mxu0 0.0
    %3612 = vmatpush1.xpose.msra.mxu0 0.0
    %3613 = vmatprep.subr.mxu0 0.0
    %3614 = vmatpush1.xpose.msra.mxu0 0.0
    %3615 = vmatprep.subr.mxu0 0.0
    %3616 = vmatpush1.xpose.msra.mxu0 0.0
    %3617 = vmatprep.subr.mxu0 0.0
    %3618 = vmatpush1.xpose.msra.mxu0 0.0
    %3619 = vmatprep.subr.mxu0 0.0
    %3620 = vmatpush1.xpose.msra.mxu0 0.0
    %3621 = vmatprep.subr.mxu0 0.0
    %3622 = vmatpush1.xpose.msra.mxu0 0.0
    %3623 = vmatprep.subr.mxu0 0.0
    %3624 = vmatpush1.xpose.msra.mxu0 0.0
    %3625 = vmatprep.subr.mxu0 0.0
    %3626 = vmatpush1.xpose.msra.mxu0 0.0
    %3627 = vmatprep.subr.mxu0 0.0
    %3628 = vmatpush1.xpose.msra.mxu0 0.0
    %3629 = vmatprep.subr.mxu0 0.0
    %3630 = vmatpush1.xpose.msra.mxu0 0.0
    %3631 = vmatprep.subr.mxu0 0.0
    %3632 = vmatpush1.xpose.msra.mxu0 0.0
    %3633 = vmatprep.subr.mxu0 0.0
    %3634 = vmatpush1.xpose.msra.mxu0 0.0
    %3635 = vmatprep.subr.mxu0 0.0
    %3636 = vmatpush1.xpose.msra.mxu0 0.0
    %3637 = vmatprep.subr.mxu0 0.0
    %3638 = vmatpush1.xpose.msra.mxu0 0.0
    %3639 = vmatprep.subr.mxu0 0.0
    %3640 = vmatpush1.xpose.msra.mxu0 0.0
    %3641 = vmatprep.subr.mxu0 0.0
    %3642 = vmatpush1.xpose.msra.mxu0 0.0
    %3643 = vmatprep.subr.mxu0 0.0
    %3644 = vmatpush1.xpose.msra.mxu0 0.0
    %3645 = vmatprep.subr.mxu0 0.0
    %3646 = vmatpush1.xpose.msra.mxu0 0.0
    %3647 = vmatprep.mubr.f32.mxu0 0.0
    %3648 = vmatmul.mubr.f32.gmra.mrb[0].mxu0 %v3579
    %v3649 = vpop.f32.mrb[0].mxu0
    %v3650 = vadd.f32 0.0, %v3649
    %v3651 = vpop.f32.mrb[0].mxu0
    %3652 = vdwg.mxu0
    %v3653 = vmul.f32 %v3650, 0.35355338
    %v3654 = vsel %vm289, %v3653, -inf
    %3655 = vmax.xlane.f32.xlu0 %v3654
    %v3656 = vpop.xlane.xlu0 %3655
    %v3657 = vsub.f32 %v3653, %v3656
    %v3658 = vmul.f32 %v3657, 1.442695
    %v3659 = vpow.pop %v3658
    %v3660 = vsel %vm289, %v3659, 0.0
    %3661 = vadd.xlane.f32.xlu0 %v3660
    %v3662 = vpop.xlane.xlu0 %3661
    %v3663 = vrcp.pop %v3662
    %v3664 = vmul.f32 %v3659, %v3663
    %3665 = vrot.lane.b32.xlu0 %v2323, 40
    %v3666 = vpop.permute.xlu0 %3665
    %v3669 = vsel %vm289, %v3664, 0
    %3671 = vmatprep.subr.mxu0 0.0
    %3672 = vmatpush1.msra.mxu0 %v3666
    %3673 = vmatprep.subr.mxu0 0.0
    %3674 = vmatpush1.msra.mxu0 0.0
    %3675 = vmatprep.subr.mxu0 0.0
    %3676 = vmatpush1.msra.mxu0 0.0
    %3677 = vmatprep.subr.mxu0 0.0
    %3678 = vmatpush1.msra.mxu0 0.0
    %3679 = vmatprep.subr.mxu0 0.0
    %3680 = vmatpush1.msra.mxu0 0.0
    %3681 = vmatprep.subr.mxu0 0.0
    %3682 = vmatpush1.msra.mxu0 0.0
    %3683 = vmatprep.subr.mxu0 0.0
    %3684 = vmatpush1.msra.mxu0 0.0
    %3685 = vmatprep.subr.mxu0 0.0
    %3686 = vmatpush1.msra.mxu0 0.0
    %3687 = vmatprep.subr.mxu0 0.0
    %3688 = vmatpush1.msra.mxu0 0.0
    %3689 = vmatprep.subr.mxu0 0.0
    %3690 = vmatpush1.msra.mxu0 0.0
    %3691 = vmatprep.subr.mxu0 0.0
    %3692 = vmatpush1.msra.mxu0 0.0
    %3693 = vmatprep.subr.mxu0 0.0
    %3694 = vmatpush1.msra.mxu0 0.0
    %3695 = vmatprep.subr.mxu0 0.0
    %3696 = vmatpush1.msra.mxu0 0.0
    %3697 = vmatprep.subr.mxu0 0.0
    %3698 = vmatpush1.msra.mxu0 0.0
    %3699 = vmatprep.subr.mxu0 0.0
    %3700 = vmatpush1.msra.mxu0 0.0
    %3701 = vmatprep.subr.mxu0 0.0
    %3702 = vmatpush1.msra.mxu0 0.0
    %3703 = vmatprep.subr.mxu0 0.0
    %3704 = vmatpush1.msra.mxu0 0.0
    %3705 = vmatprep.subr.mxu0 0.0
    %3706 = vmatpush1.msra.mxu0 0.0
    %3707 = vmatprep.subr.mxu0 0.0
    %3708 = vmatpush1.msra.mxu0 0.0
    %3709 = vmatprep.subr.mxu0 0.0
    %3710 = vmatpush1.msra.mxu0 0.0
    %3711 = vmatprep.subr.mxu0 0.0
    %3712 = vmatpush1.msra.mxu0 0.0
    %3713 = vmatprep.subr.mxu0 0.0
    %3714 = vmatpush1.msra.mxu0 0.0
    %3715 = vmatprep.subr.mxu0 0.0
    %3716 = vmatpush1.msra.mxu0 0.0
    %3717 = vmatprep.subr.mxu0 0.0
    %3718 = vmatpush1.msra.mxu0 0.0
    %3719 = vmatprep.subr.mxu0 0.0
    %3720 = vmatpush1.msra.mxu0 0.0
    %3721 = vmatprep.subr.mxu0 0.0
    %3722 = vmatpush1.msra.mxu0 0.0
    %3723 = vmatprep.subr.mxu0 0.0
    %3724 = vmatpush1.msra.mxu0 0.0
    %3725 = vmatprep.subr.mxu0 0.0
    %3726 = vmatpush1.msra.mxu0 0.0
    %3727 = vmatprep.subr.mxu0 0.0
    %3728 = vmatpush1.msra.mxu0 0.0
    %3729 = vmatprep.subr.mxu0 0.0
    %3730 = vmatpush1.msra.mxu0 0.0
    %3731 = vmatprep.subr.mxu0 0.0
    %3732 = vmatpush1.msra.mxu0 0.0
    %3733 = vmatprep.subr.mxu0 0.0
    %3734 = vmatpush1.msra.mxu0 0.0
    %3735 = vmatprep.mubr.f32.mxu0 0.0
    %3736 = vmatmul.mubr.f32.gmra.mrb[0].mxu0 %v3669
    %v3737 = vpop.f32.mrb[0].mxu0
    %v3738 = vadd.f32 0.0, %v3737
    %v3739 = vpop.f32.mrb[0].mxu0
    %3740 = vdwg.mxu0
    %3741 = vrot.lane.b32.xlu0 %v2328, 104
    %v3742 = vpop.permute.xlu0 %3741
    %3743 = vrot.lane.b32.xlu0 %v2328, 72
    %v3744 = vpop.permute.xlu0 %3743
    %v3745 = vsel %vm289, %v3742, 0
    %v3747 = vsel %vm289, %v3744, 0
    %3749 = vmatprep.subr.mxu0 0.0
    %3750 = vmatpush1.xpose.msra.mxu0 %v3747
    %3751 = vmatprep.subr.mxu0 0.0
    %3752 = vmatpush1.xpose.msra.mxu0 0.0
    %3753 = vmatprep.subr.mxu0 0.0
    %3754 = vmatpush1.xpose.msra.mxu0 0.0
    %3755 = vmatprep.subr.mxu0 0.0
    %3756 = vmatpush1.xpose.msra.mxu0 0.0
    %3757 = vmatprep.subr.mxu0 0.0
    %3758 = vmatpush1.xpose.msra.mxu0 0.0
    %3759 = vmatprep.subr.mxu0 0.0
    %3760 = vmatpush1.xpose.msra.mxu0 0.0
    %3761 = vmatprep.subr.mxu0 0.0
    %3762 = vmatpush1.xpose.msra.mxu0 0.0
    %3763 = vmatprep.subr.mxu0 0.0
    %3764 = vmatpush1.xpose.msra.mxu0 0.0
    %3765 = vmatprep.subr.mxu0 0.0
    %3766 = vmatpush1.xpose.msra.mxu0 0.0
    %3767 = vmatprep.subr.mxu0 0.0
    %3768 = vmatpush1.xpose.msra.mxu0 0.0
    %3769 = vmatprep.subr.mxu0 0.0
    %3770 = vmatpush1.xpose.msra.mxu0 0.0
    %3771 = vmatprep.subr.mxu0 0.0
    %3772 = vmatpush1.xpose.msra.mxu0 0.0
    %3773 = vmatprep.subr.mxu0 0.0
    %3774 = vmatpush1.xpose.msra.mxu0 0.0
    %3775 = vmatprep.subr.mxu0 0.0
    %3776 = vmatpush1.xpose.msra.mxu0 0.0
    %3777 = vmatprep.subr.mxu0 0.0
    %3778 = vmatpush1.xpose.msra.mxu0 0.0
    %3779 = vmatprep.subr.mxu0 0.0
    %3780 = vmatpush1.xpose.msra.mxu0 0.0
    %3781 = vmatprep.subr.mxu0 0.0
    %3782 = vmatpush1.xpose.msra.mxu0 0.0
    %3783 = vmatprep.subr.mxu0 0.0
    %3784 = vmatpush1.xpose.msra.mxu0 0.0
    %3785 = vmatprep.subr.mxu0 0.0
    %3786 = vmatpush1.xpose.msra.mxu0 0.0
    %3787 = vmatprep.subr.mxu0 0.0
    %3788 = vmatpush1.xpose.msra.mxu0 0.0
    %3789 = vmatprep.subr.mxu0 0.0
    %3790 = vmatpush1.xpose.msra.mxu0 0.0
    %3791 = vmatprep.subr.mxu0 0.0
    %3792 = vmatpush1.xpose.msra.mxu0 0.0
    %3793 = vmatprep.subr.mxu0 0.0
    %3794 = vmatpush1.xpose.msra.mxu0 0.0
    %3795 = vmatprep.subr.mxu0 0.0
    %3796 = vmatpush1.xpose.msra.mxu0 0.0
    %3797 = vmatprep.subr.mxu0 0.0
    %3798 = vmatpush1.xpose.msra.mxu0 0.0
    %3799 = vmatprep.subr.mxu0 0.0
    %3800 = vmatpush1.xpose.msra.mxu0 0.0
    %3801 = vmatprep.subr.mxu0 0.0
    %3802 = vmatpush1.xpose.msra.mxu0 0.0
    %3803 = vmatprep.subr.mxu0 0.0
    %3804 = vmatpush1.xpose.msra.mxu0 0.0
    %3805 = vmatprep.subr.mxu0 0.0
    %3806 = vmatpush1.xpose.msra.mxu0 0.0
    %3807 = vmatprep.subr.mxu0 0.0
    %3808 = vmatpush1.xpose.msra.mxu0 0.0
    %3809 = vmatprep.subr.mxu0 0.0
    %3810 = vmatpush1.xpose.msra.mxu0 0.0
    %3811 = vmatprep.subr.mxu0 0.0
    %3812 = vmatpush1.xpose.msra.mxu0 0.0
    %3813 = vmatprep.mubr.f32.mxu0 0.0
    %3814 = vmatmul.mubr.f32.gmra.mrb[0].mxu0 %v3745
    %v3815 = vpop.f32.mrb[0].mxu0
    %v3816 = vadd.f32 0.0, %v3815
    %v3817 = vpop.f32.mrb[0].mxu0
    %3818 = vdwg.mxu0
    %v3819 = vmul.f32 %v3816, 0.35355338
    %v3820 = vsel %vm289, %v3819, -inf
    %3821 = vmax.xlane.f32.xlu0 %v3820
    %v3822 = vpop.xlane.xlu0 %3821
    %v3823 = vsub.f32 %v3819, %v3822
    %v3824 = vmul.f32 %v3823, 1.442695
    %v3825 = vpow.pop %v3824
    %v3826 = vsel %vm289, %v3825, 0.0
    %3827 = vadd.xlane.f32.xlu0 %v3826
    %v3828 = vpop.xlane.xlu0 %3827
    %v3829 = vrcp.pop %v3828
    %v3830 = vmul.f32 %v3825, %v3829
    %3831 = vrot.lane.b32.xlu0 %v2328, 40
    %v3832 = vpop.permute.xlu0 %3831
    %v3835 = vsel %vm289, %v3830, 0
    %3837 = vmatprep.subr.mxu0 0.0
    %3838 = vmatpush1.msra.mxu0 %v3832
    %3839 = vmatprep.subr.mxu0 0.0
    %3840 = vmatpush1.msra.mxu0 0.0
    %3841 = vmatprep.subr.mxu0 0.0
    %3842 = vmatpush1.msra.mxu0 0.0
    %3843 = vmatprep.subr.mxu0 0.0
    %3844 = vmatpush1.msra.mxu0 0.0
    %3845 = vmatprep.subr.mxu0 0.0
    %3846 = vmatpush1.msra.mxu0 0.0
    %3847 = vmatprep.subr.mxu0 0.0
    %3848 = vmatpush1.msra.mxu0 0.0
    %3849 = vmatprep.subr.mxu0 0.0
    %3850 = vmatpush1.msra.mxu0 0.0
    %3851 = vmatprep.subr.mxu0 0.0
    %3852 = vmatpush1.msra.mxu0 0.0
    %3853 = vmatprep.subr.mxu0 0.0
    %3854 = vmatpush1.msra.mxu0 0.0
    %3855 = vmatprep.subr.mxu0 0.0
    %3856 = vmatpush1.msra.mxu0 0.0
    %3857 = vmatprep.subr.mxu0 0.0
    %3858 = vmatpush1.msra.mxu0 0.0
    %3859 = vmatprep.subr.mxu0 0.0
    %3860 = vmatpush1.msra.mxu0 0.0
    %3861 = vmatprep.subr.mxu0 0.0
    %3862 = vmatpush1.msra.mxu0 0.0
    %3863 = vmatprep.subr.mxu0 0.0
    %3864 = vmatpush1.msra.mxu0 0.0
    %3865 = vmatprep.subr.mxu0 0.0
    %3866 = vmatpush1.msra.mxu0 0.0
    %3867 = vmatprep.subr.mxu0 0.0
    %3868 = vmatpush1.msra.mxu0 0.0
    %3869 = vmatprep.subr.mxu0 0.0
    %3870 = vmatpush1.msra.mxu0 0.0
    %3871 = vmatprep.subr.mxu0 0.0
    %3872 = vmatpush1.msra.mxu0 0.0
    %3873 = vmatprep.subr.mxu0 0.0
    %3874 = vmatpush1.msra.mxu0 0.0
    %3875 = vmatprep.subr.mxu0 0.0
    %3876 = vmatpush1.msra.mxu0 0.0
    %3877 = vmatprep.subr.mxu0 0.0
    %3878 = vmatpush1.msra.mxu0 0.0
    %3879 = vmatprep.subr.mxu0 0.0
    %3880 = vmatpush1.msra.mxu0 0.0
    %3881 = vmatprep.subr.mxu0 0.0
    %3882 = vmatpush1.msra.mxu0 0.0
    %3883 = vmatprep.subr.mxu0 0.0
    %3884 = vmatpush1.msra.mxu0 0.0
    %3885 = vmatprep.subr.mxu0 0.0
    %3886 = vmatpush1.msra.mxu0 0.0
    %3887 = vmatprep.subr.mxu0 0.0
    %3888 = vmatpush1.msra.mxu0 0.0
    %3889 = vmatprep.subr.mxu0 0.0
    %3890 = vmatpush1.msra.mxu0 0.0
    %3891 = vmatprep.subr.mxu0 0.0
    %3892 = vmatpush1.msra.mxu0 0.0
    %3893 = vmatprep.subr.mxu0 0.0
    %3894 = vmatpush1.msra.mxu0 0.0
    %3895 = vmatprep.subr.mxu0 0.0
    %3896 = vmatpush1.msra.mxu0 0.0
    %3897 = vmatprep.subr.mxu0 0.0
    %3898 = vmatpush1.msra.mxu0 0.0
    %3899 = vmatprep.subr.mxu0 0.0
    %3900 = vmatpush1.msra.mxu0 0.0
    %3901 = vmatprep.mubr.f32.mxu0 0.0
    %3902 = vmatmul.mubr.f32.gmra.mrb[0].mxu0 %v3835
    %v3903 = vpop.f32.mrb[0].mxu0
    %v3904 = vadd.f32 0.0, %v3903
    %v3905 = vpop.f32.mrb[0].mxu0
    %3906 = vdwg.mxu0
    %v3908 = vsel %vm289, %v3738, 0
    %v3911 = vsel %vm289, %v3904, 0
    %3913 = vmatprep.subr.mxu0 0.0
    %3914 = vmatpush1.msra.mxu0 %v2335
    %3915 = vmatprep.subr.mxu0 0.0
    %3916 = vmatpush1.msra.mxu0 0.0
    %3917 = vmatprep.subr.mxu0 0.0
    %3918 = vmatpush1.msra.mxu0 0.0
    %3919 = vmatprep.subr.mxu0 0.0
    %3920 = vmatpush1.msra.mxu0 0.0
    %3921 = vmatprep.subr.mxu0 0.0
    %3922 = vmatpush1.msra.mxu0 0.0
    %3923 = vmatprep.subr.mxu0 0.0
    %3924 = vmatpush1.msra.mxu0 0.0
    %3925 = vmatprep.subr.mxu0 0.0
    %3926 = vmatpush1.msra.mxu0 0.0
    %3927 = vmatprep.subr.mxu0 0.0
    %3928 = vmatpush1.msra.mxu0 0.0
    %3929 = vmatprep.subr.mxu0 0.0
    %3930 = vmatpush1.msra.mxu0 0.0
    %3931 = vmatprep.subr.mxu0 0.0
    %3932 = vmatpush1.msra.mxu0 0.0
    %3933 = vmatprep.subr.mxu0 0.0
    %3934 = vmatpush1.msra.mxu0 0.0
    %3935 = vmatprep.subr.mxu0 0.0
    %3936 = vmatpush1.msra.mxu0 0.0
    %3937 = vmatprep.subr.mxu0 0.0
    %3938 = vmatpush1.msra.mxu0 0.0
    %3939 = vmatprep.subr.mxu0 0.0
    %3940 = vmatpush1.msra.mxu0 0.0
    %3941 = vmatprep.subr.mxu0 0.0
    %3942 = vmatpush1.msra.mxu0 0.0
    %3943 = vmatprep.subr.mxu0 0.0
    %3944 = vmatpush1.msra.mxu0 0.0
    %3945 = vmatprep.subr.mxu0 0.0
    %3946 = vmatpush1.msra.mxu0 0.0
    %3947 = vmatprep.subr.mxu0 0.0
    %3948 = vmatpush1.msra.mxu0 0.0
    %3949 = vmatprep.subr.mxu0 0.0
    %3950 = vmatpush1.msra.mxu0 0.0
    %3951 = vmatprep.subr.mxu0 0.0
    %3952 = vmatpush1.msra.mxu0 0.0
    %3953 = vmatprep.subr.mxu0 0.0
    %3954 = vmatpush1.msra.mxu0 0.0
    %3955 = vmatprep.subr.mxu0 0.0
    %3956 = vmatpush1.msra.mxu0 0.0
    %3957 = vmatprep.subr.mxu0 0.0
    %3958 = vmatpush1.msra.mxu0 0.0
    %3959 = vmatprep.subr.mxu0 0.0
    %3960 = vmatpush1.msra.mxu0 0.0
    %3961 = vmatprep.subr.mxu0 0.0
    %3962 = vmatpush1.msra.mxu0 0.0
    %3963 = vmatprep.subr.mxu0 0.0
    %3964 = vmatpush1.msra.mxu0 0.0
    %3965 = vmatprep.subr.mxu0 0.0
    %3966 = vmatpush1.msra.mxu0 0.0
    %3967 = vmatprep.subr.mxu0 0.0
    %3968 = vmatpush1.msra.mxu0 0.0
    %3969 = vmatprep.subr.mxu0 0.0
    %3970 = vmatpush1.msra.mxu0 0.0
    %3971 = vmatprep.subr.mxu0 0.0
    %3972 = vmatpush1.msra.mxu0 0.0
    %3973 = vmatprep.subr.mxu0 0.0
    %3974 = vmatpush1.msra.mxu0 0.0
    %3975 = vmatprep.subr.mxu0 0.0
    %3976 = vmatpush1.msra.mxu0 0.0
    %3977 = vmatprep.mubr.f32.mxu0 0.0
    %3978 = vmatmul.mubr.f32.gmra.mrb[0].mxu0 %v3908
    %v3979 = vpop.f32.mrb[0].mxu0
    %v3980 = vadd.f32 0.0, %v3979
    %v3981 = vpop.f32.mrb[0].mxu0
    %3982 = vmatprep.mubr.f32.mxu0 0.0
    %3983 = vmatmul.mubr.f32.gmra.mrb[0].mxu0 %v3911
    %v3984 = vpop.f32.mrb[0].mxu0
    %v3985 = vadd.f32 0.0, %v3984
    %v3986 = vpop.f32.mrb[0].mxu0
    %3987 = vdwg.mxu0
    %v3988 = vadd.f32 %v3573, %v3980
    %v3989 = vadd.f32 %v3574, %v3985
    %s3990 = scalar_lea.vmem %s6, 1
    %v3991 = vld [vmem:[%s3990] sm:$0x1]
    %v3993 = vlaneseq
    %v3994 = vshrl.u32 %v3993, 7
    %v3995 = vsub.s32 0, %v3994
    %v3996 = vrot.slane %v3991, %v3995
    %v3998 = vadd.f32 %v3988, %v3996
    %v3999 = vadd.f32 %v3989, %v3996
    %s4000 = scalar_lea.vmem %s7, 2
    %v4001 = vld [vmem:[%s4000] sm:$0x3]
    %v4002 = vadd.f32 %v2235, %v3998
    %v4003 = vadd.f32 %v2236, %v3999
    %v4004 = vsel %vm108, %v4002, 0.0
    %4005 = vadd.xlane.f32.xlu0 %v4004
    %v4006 = vpop.xlane.xlu0 %4005
    %v4007 = vsel %vm108, %v4003, 0.0
    %4008 = vadd.xlane.f32.xlu0 %v4007
    %v4009 = vpop.xlane.xlu0 %4008
    %v4010 = vmul.f32 %v4006, %v1959
    %v4011 = vmul.f32 %v4009, %v1959
    %v4012 = vsub.f32 %v4002, %v4010
    %v4013 = vsub.f32 %v4003, %v4011
    %v4014 = vmul.f32 %v4012, %v4012
    %v4015 = vmul.f32 %v4013, %v4013
    %v4016 = vsel %vm108, %v4014, 0.0
    %4017 = vadd.xlane.f32.xlu0 %v4016
    %v4018 = vpop.xlane.xlu0 %4017
    %v4019 = vsel %vm108, %v4015, 0.0
    %4020 = vadd.xlane.f32.xlu0 %v4019
    %v4021 = vpop.xlane.xlu0 %4020
    %v4022 = vmul.f32 %v4018, %v1959
    %v4023 = vmul.f32 %v4021, %v1959
    %v4024 = vadd.f32 %v4022, 1e-05
    %v4025 = vadd.f32 %v4023, 1e-05
    %v4026 = vrsqrt.pop %v4024
    %v4027 = vrsqrt.pop %v4025
    %v4028 = vmul.f32 %v4012, %v4026
    %v4029 = vmul.f32 %v4013, %v4027
    %v4030 = vlaneseq
    %v4031 = vshrl.u32 %v4030, 7
    %v4032 = vsub.s32 0, %v4031
    %v4033 = vrot.slane %v4001, %v4032
    %v4034 = vmul.f32 %v4028, %v4033
    %v4035 = vmul.f32 %v4029, %v4033
    %v4036 = vlaneseq
    %v4037 = vshrl.u32 %v4036, 7
    %v4038 = vsub.s32 1, %v4037
    %v4039 = vrot.slane %v4001, %v4038
    %v4040 = vadd.f32 %v4034, %v4039
    %v4041 = vadd.f32 %v4035, %v4039
    %s4042 = scalar_lea.vmem %s8, 32
    %v4043 = vld [vmem:[%s4042] sm:$0xff]
    %v4044 = vld [vmem:[%s4042 + $0x8] sm:$0xff]
    %v4045 = vld [vmem:[%s4042 + $0x10] sm:$0xff]
    %v4046 = vld [vmem:[%s4042 + $0x18] sm:$0xff]
    %s4047 = scalar_lea.vmem %s9, 1
    %v4048 = vld [vmem:[%s4047] sm:$0x1]
    %v4050 = vlaneseq
    %v4051 = vshrl.u32 %v4050, 7
    %v4052 = vsub.s32 0, %v4051
    %v4053 = vrot.slane %v4048, %v4052
    %v4056 = vsel %vm108, %v4040, 0
    %v4059 = vsel %vm108, %v4041, 0
    %4061 = vmatprep.subr.mxu0 0.0
    %4062 = vmatpush1.msra.mxu0 %v4043
    %4063 = vmatprep.subr.mxu0 0.0
    %4064 = vmatpush1.msra.mxu0 %v4044
    %4065 = vmatprep.subr.mxu0 0.0
    %4066 = vmatpush1.msra.mxu0 %v4045
    %4067 = vmatprep.subr.mxu0 0.0
    %4068 = vmatpush1.msra.mxu0 %v4046
    %4069 = vmatprep.subr.mxu0 0.0
    %4070 = vmatpush1.msra.mxu0 0.0
    %4071 = vmatprep.subr.mxu0 0.0
    %4072 = vmatpush1.msra.mxu0 0.0
    %4073 = vmatprep.subr.mxu0 0.0
    %4074 = vmatpush1.msra.mxu0 0.0
    %4075 = vmatprep.subr.mxu0 0.0
    %4076 = vmatpush1.msra.mxu0 0.0
    %4077 = vmatprep.subr.mxu0 0.0
    %4078 = vmatpush1.msra.mxu0 0.0
    %4079 = vmatprep.subr.mxu0 0.0
    %4080 = vmatpush1.msra.mxu0 0.0
    %4081 = vmatprep.subr.mxu0 0.0
    %4082 = vmatpush1.msra.mxu0 0.0
    %4083 = vmatprep.subr.mxu0 0.0
    %4084 = vmatpush1.msra.mxu0 0.0
    %4085 = vmatprep.subr.mxu0 0.0
    %4086 = vmatpush1.msra.mxu0 0.0
    %4087 = vmatprep.subr.mxu0 0.0
    %4088 = vmatpush1.msra.mxu0 0.0
    %4089 = vmatprep.subr.mxu0 0.0
    %4090 = vmatpush1.msra.mxu0 0.0
    %4091 = vmatprep.subr.mxu0 0.0
    %4092 = vmatpush1.msra.mxu0 0.0
    %4093 = vmatprep.subr.mxu0 0.0
    %4094 = vmatpush1.msra.mxu0 0.0
    %4095 = vmatprep.subr.mxu0 0.0
    %4096 = vmatpush1.msra.mxu0 0.0
    %4097 = vmatprep.subr.mxu0 0.0
    %4098 = vmatpush1.msra.mxu0 0.0
    %4099 = vmatprep.subr.mxu0 0.0
    %4100 = vmatpush1.msra.mxu0 0.0
    %4101 = vmatprep.subr.mxu0 0.0
    %4102 = vmatpush1.msra.mxu0 0.0
    %4103 = vmatprep.subr.mxu0 0.0
    %4104 = vmatpush1.msra.mxu0 0.0
    %4105 = vmatprep.subr.mxu0 0.0
    %4106 = vmatpush1.msra.mxu0 0.0
    %4107 = vmatprep.subr.mxu0 0.0
    %4108 = vmatpush1.msra.mxu0 0.0
    %4109 = vmatprep.subr.mxu0 0.0
    %4110 = vmatpush1.msra.mxu0 0.0
    %4111 = vmatprep.subr.mxu0 0.0
    %4112 = vmatpush1.msra.mxu0 0.0
    %4113 = vmatprep.subr.mxu0 0.0
    %4114 = vmatpush1.msra.mxu0 0.0
    %4115 = vmatprep.subr.mxu0 0.0
    %4116 = vmatpush1.msra.mxu0 0.0
    %4117 = vmatprep.subr.mxu0 0.0
    %4118 = vmatpush1.msra.mxu0 0.0
    %4119 = vmatprep.subr.mxu0 0.0
    %4120 = vmatpush1.msra.mxu0 0.0
    %4121 = vmatprep.subr.mxu0 0.0
    %4122 = vmatpush1.msra.mxu0 0.0
    %4123 = vmatprep.subr.mxu0 0.0
    %4124 = vmatpush1.msra.mxu0 0.0
    %4125 = vmatprep.mubr.f32.mxu0 0.0
    %4126 = vmatmul.mubr.f32.gmra.mrb[0].mxu0 %v4056
    %v4127 = vpop.f32.mrb[0].mxu0
    %v4128 = vadd.f32 %v4053, %v4127
    %v4129 = vpop.f32.mrb[0].mxu0
    %4130 = vmatprep.mubr.f32.mxu0 0.0
    %4131 = vmatmul.mubr.f32.gmra.mrb[0].mxu0 %v4059
    %v4132 = vpop.f32.mrb[0].mxu0
    %v4133 = vadd.f32 %v4053, %v4132
    %v4134 = vpop.f32.mrb[0].mxu0
    %4135 = vdwg.mxu0
    %v4136 = vsel %vm2084, %v4128, -inf
    %4137 = vmax.xlane.f32.xlu0 %v4136
    %v4138 = vpop.xlane.xlu0 %4137
    %v4139 = vsel %vm2084, %v4133, -inf
    %4140 = vmax.xlane.f32.xlu0 %v4139
    %v4141 = vpop.xlane.xlu0 %4140
    %v4142 = vsub.f32 %v4128, %v4138
    %v4143 = vsub.f32 %v4133, %v4141
    %v4144 = vmul.f32 %v4142, 1.442695
    %v4145 = vpow.pop %v4144
    %v4146 = vmul.f32 %v4143, 1.442695
    %v4147 = vpow.pop %v4146
    %v4148 = vsel %vm2084, %v4145, 0.0
    %4149 = vadd.xlane.f32.xlu0 %v4148
    %v4150 = vpop.xlane.xlu0 %4149
    %v4151 = vsel %vm2084, %v4147, 0.0
    %4152 = vadd.xlane.f32.xlu0 %v4151
    %v4153 = vpop.xlane.xlu0 %4152
    %v4154 = vrcp.pop %v4150
    %v4155 = vrcp.pop %v4153
    %v4156 = vmul.f32 %v4145, %v4154
    %v4157 = vmul.f32 %v4147, %v4155
    %s4158 = scalar_lea.vmem %s10, 64
    %v4159 = vld [vmem:[%s4158] sm:$0xff]
    %v4160 = vld [vmem:[%s4158 + $0x8] sm:$0xff]
    %v4161 = vld [vmem:[%s4158 + $0x10] sm:$0xff]
    %v4162 = vld [vmem:[%s4158 + $0x18] sm:$0xff]
    %v4163 = vld [vmem:[%s4158 + $0x20] sm:$0xff]
    %v4164 = vld [vmem:[%s4158 + $0x28] sm:$0xff]
    %v4165 = vld [vmem:[%s4158 + $0x30] sm:$0xff]
    %v4166 = vld [vmem:[%s4158 + $0x38] sm:$0xff]
    %v4168 = vsel %vm2084, %v4156, 0
    %v4171 = vsel %vm2084, %v4157, 0
    %4173 = vmatprep.subr.mxu0 0.0
    %4174 = vmatpush1.msra.mxu0 %v4159
    %4175 = vmatprep.subr.mxu0 0.0
    %4176 = vmatpush1.msra.mxu0 %v4160
    %4177 = vmatprep.subr.mxu0 0.0
    %4178 = vmatpush1.msra.mxu0 %v4161
    %4179 = vmatprep.subr.mxu0 0.0
    %4180 = vmatpush1.msra.mxu0 %v4162
    %4181 = vmatprep.subr.mxu0 0.0
    %4182 = vmatpush1.msra.mxu0 %v4163
    %4183 = vmatprep.subr.mxu0 0.0
    %4184 = vmatpush1.msra.mxu0 %v4164
    %4185 = vmatprep.subr.mxu0 0.0
    %4186 = vmatpush1.msra.mxu0 %v4165
    %4187 = vmatprep.subr.mxu0 0.0
    %4188 = vmatpush1.msra.mxu0 %v4166
    %4189 = vmatprep.subr.mxu0 0.0
    %4190 = vmatpush1.msra.mxu0 0.0
    %4191 = vmatprep.subr.mxu0 0.0
    %4192 = vmatpush1.msra.mxu0 0.0
    %4193 = vmatprep.subr.mxu0 0.0
    %4194 = vmatpush1.msra.mxu0 0.0
    %4195 = vmatprep.subr.mxu0 0.0
    %4196 = vmatpush1.msra.mxu0 0.0
    %4197 = vmatprep.subr.mxu0 0.0
    %4198 = vmatpush1.msra.mxu0 0.0
    %4199 = vmatprep.subr.mxu0 0.0
    %4200 = vmatpush1.msra.mxu0 0.0
    %4201 = vmatprep.subr.mxu0 0.0
    %4202 = vmatpush1.msra.mxu0 0.0
    %4203 = vmatprep.subr.mxu0 0.0
    %4204 = vmatpush1.msra.mxu0 0.0
    %4205 = vmatprep.subr.mxu0 0.0
    %4206 = vmatpush1.msra.mxu0 0.0
    %4207 = vmatprep.subr.mxu0 0.0
    %4208 = vmatpush1.msra.mxu0 0.0
    %4209 = vmatprep.subr.mxu0 0.0
    %4210 = vmatpush1.msra.mxu0 0.0
    %4211 = vmatprep.subr.mxu0 0.0
    %4212 = vmatpush1.msra.mxu0 0.0
    %4213 = vmatprep.subr.mxu0 0.0
    %4214 = vmatpush1.msra.mxu0 0.0
    %4215 = vmatprep.subr.mxu0 0.0
    %4216 = vmatpush1.msra.mxu0 0.0
    %4217 = vmatprep.subr.mxu0 0.0
    %4218 = vmatpush1.msra.mxu0 0.0
    %4219 = vmatprep.subr.mxu0 0.0
    %4220 = vmatpush1.msra.mxu0 0.0
    %4221 = vmatprep.subr.mxu0 0.0
    %4222 = vmatpush1.msra.mxu0 0.0
    %4223 = vmatprep.subr.mxu0 0.0
    %4224 = vmatpush1.msra.mxu0 0.0
    %4225 = vmatprep.subr.mxu0 0.0
    %4226 = vmatpush1.msra.mxu0 0.0
    %4227 = vmatprep.subr.mxu0 0.0
    %4228 = vmatpush1.msra.mxu0 0.0
    %4229 = vmatprep.subr.mxu0 0.0
    %4230 = vmatpush1.msra.mxu0 0.0
    %4231 = vmatprep.subr.mxu0 0.0
    %4232 = vmatpush1.msra.mxu0 0.0
    %4233 = vmatprep.subr.mxu0 0.0
    %4234 = vmatpush1.msra.mxu0 0.0
    %4235 = vmatprep.subr.mxu0 0.0
    %4236 = vmatpush1.msra.mxu0 0.0
    %4237 = vmatprep.mubr.f32.mxu0 0.0
    %4238 = vmatmul.mubr.f32.gmra.mrb[0].mxu0 %v4168
    %v4239 = vpop.f32.mrb[0].mxu0
    %v4240 = vadd.f32 0.0, %v4239
    %v4241 = vpop.f32.mrb[0].mxu0
    %4242 = vmatprep.mubr.f32.mxu0 0.0
    %4243 = vmatmul.mubr.f32.gmra.mrb[0].mxu0 %v4171
    %v4244 = vpop.f32.mrb[0].mxu0
    %v4245 = vadd.f32 0.0, %v4244
    %v4246 = vpop.f32.mrb[0].mxu0
    %4247 = vdwg.mxu0
    %s4248 = scalar_lea.vmem %s11, 2
    %v4249 = vld [vmem:[%s4248] sm:$0x3]
    %v4250 = vadd.f32 %v4040, %v4240
    %v4251 = vadd.f32 %v4041, %v4245
    %v4252 = vsel %vm108, %v4250, 0.0
    %4253 = vadd.xlane.f32.xlu0 %v4252
    %v4254 = vpop.xlane.xlu0 %4253
    %v4255 = vsel %vm108, %v4251, 0.0
    %4256 = vadd.xlane.f32.xlu0 %v4255
    %v4257 = vpop.xlane.xlu0 %4256
    %v4258 = vmul.f32 %v4254, %v1959
    %v4259 = vmul.f32 %v4257, %v1959
    %v4260 = vsub.f32 %v4250, %v4258
    %v4261 = vsub.f32 %v4251, %v4259
    %v4262 = vmul.f32 %v4260, %v4260
    %v4263 = vmul.f32 %v4261, %v4261
    %v4264 = vsel %vm108, %v4262, 0.0
    %4265 = vadd.xlane.f32.xlu0 %v4264
    %v4266 = vpop.xlane.xlu0 %4265
    %v4267 = vsel %vm108, %v4263, 0.0
    %4268 = vadd.xlane.f32.xlu0 %v4267
    %v4269 = vpop.xlane.xlu0 %4268
    %v4270 = vmul.f32 %v4266, %v1959
    %v4271 = vmul.f32 %v4269, %v1959
    %v4272 = vadd.f32 %v4270, 1e-05
    %v4273 = vadd.f32 %v4271, 1e-05
    %v4274 = vrsqrt.pop %v4272
    %v4275 = vrsqrt.pop %v4273
    %v4276 = vmul.f32 %v4260, %v4274
    %v4277 = vmul.f32 %v4261, %v4275
    %v4278 = vlaneseq
    %v4279 = vshrl.u32 %v4278, 7
    %v4280 = vsub.s32 0, %v4279
    %v4281 = vrot.slane %v4249, %v4280
    %v4282 = vmul.f32 %v4276, %v4281
    %v4283 = vmul.f32 %v4277, %v4281
    %v4284 = vlaneseq
    %v4285 = vshrl.u32 %v4284, 7
    %v4286 = vsub.s32 1, %v4285
    %v4287 = vrot.slane %v4249, %v4286
    %v4288 = vadd.f32 %v4282, %v4287
    %v4289 = vadd.f32 %v4283, %v4287
    %v4291 = vrot.slane %v4288, 7
    %v4294 = vrot.slane %v4289, 6
    %vm4296 = vcmask 1040384
    %v4297 = vsel %vm4296, %v4291, %v4294
    %v4298 = vld [vmem:[%s12] sm:$0xff]
    %v4299 = vld [vmem:[%s12 + $0x8] sm:$0xff]
    %v4300 = vld [vmem:[%s12 + $0x10] sm:$0xff]
    %v4301 = vld [vmem:[%s12 + $0x18] sm:$0xff]
    %v4302 = vld [vmem:[%s13] sm:$0x1]
    %v4304 = vlaneseq
    %v4305 = vshrl.u32 %v4304, 7
    %v4306 = vsub.s32 0, %v4305
    %v4307 = vrot.slane %v4302, %v4306
    %v4310 = vsel %vm108, %v4297, 0
    %4312 = vmatprep.subr.mxu0 0.0
    %4313 = vmatpush1.msra.mxu0 %v4298
    %4314 = vmatprep.subr.mxu0 0.0
    %4315 = vmatpush1.msra.mxu0 %v4299
    %4316 = vmatprep.subr.mxu0 0.0
    %4317 = vmatpush1.msra.mxu0 %v4300
    %4318 = vmatprep.subr.mxu0 0.0
    %4319 = vmatpush1.msra.mxu0 %v4301
    %4320 = vmatprep.subr.mxu0 0.0
    %4321 = vmatpush1.msra.mxu0 0.0
    %4322 = vmatprep.subr.mxu0 0.0
    %4323 = vmatpush1.msra.mxu0 0.0
    %4324 = vmatprep.subr.mxu0 0.0
    %4325 = vmatpush1.msra.mxu0 0.0
    %4326 = vmatprep.subr.mxu0 0.0
    %4327 = vmatpush1.msra.mxu0 0.0
    %4328 = vmatprep.subr.mxu0 0.0
    %4329 = vmatpush1.msra.mxu0 0.0
    %4330 = vmatprep.subr.mxu0 0.0
    %4331 = vmatpush1.msra.mxu0 0.0
    %4332 = vmatprep.subr.mxu0 0.0
    %4333 = vmatpush1.msra.mxu0 0.0
    %4334 = vmatprep.subr.mxu0 0.0
    %4335 = vmatpush1.msra.mxu0 0.0
    %4336 = vmatprep.subr.mxu0 0.0
    %4337 = vmatpush1.msra.mxu0 0.0
    %4338 = vmatprep.subr.mxu0 0.0
    %4339 = vmatpush1.msra.mxu0 0.0
    %4340 = vmatprep.subr.mxu0 0.0
    %4341 = vmatpush1.msra.mxu0 0.0
    %4342 = vmatprep.subr.mxu0 0.0
    %4343 = vmatpush1.msra.mxu0 0.0
    %4344 = vmatprep.subr.mxu0 0.0
    %4345 = vmatpush1.msra.mxu0 0.0
    %4346 = vmatprep.subr.mxu0 0.0
    %4347 = vmatpush1.msra.mxu0 0.0
    %4348 = vmatprep.subr.mxu0 0.0
    %4349 = vmatpush1.msra.mxu0 0.0
    %4350 = vmatprep.subr.mxu0 0.0
    %4351 = vmatpush1.msra.mxu0 0.0
    %4352 = vmatprep.subr.mxu0 0.0
    %4353 = vmatpush1.msra.mxu0 0.0
    %4354 = vmatprep.subr.mxu0 0.0
    %4355 = vmatpush1.msra.mxu0 0.0
    %4356 = vmatprep.subr.mxu0 0.0
    %4357 = vmatpush1.msra.mxu0 0.0
    %4358 = vmatprep.subr.mxu0 0.0
    %4359 = vmatpush1.msra.mxu0 0.0
    %4360 = vmatprep.subr.mxu0 0.0
    %4361 = vmatpush1.msra.mxu0 0.0
    %4362 = vmatprep.subr.mxu0 0.0
    %4363 = vmatpush1.msra.mxu0 0.0
    %4364 = vmatprep.subr.mxu0 0.0
    %4365 = vmatpush1.msra.mxu0 0.0
    %4366 = vmatprep.subr.mxu0 0.0
    %4367 = vmatpush1.msra.mxu0 0.0
    %4368 = vmatprep.subr.mxu0 0.0
    %4369 = vmatpush1.msra.mxu0 0.0
    %4370 = vmatprep.subr.mxu0 0.0
    %4371 = vmatpush1.msra.mxu0 0.0
    %4372 = vmatprep.subr.mxu0 0.0
    %4373 = vmatpush1.msra.mxu0 0.0
    %4374 = vmatprep.subr.mxu0 0.0
    %4375 = vmatpush1.msra.mxu0 0.0
    %4376 = vmatprep.mubr.f32.mxu0 0.0
    %4377 = vmatmul.mubr.f32.gmra.mrb[0].mxu0 %v4310
    %v4378 = vpop.f32.mrb[0].mxu0
    %v4379 = vadd.f32 %v4307, %v4378
    %v4380 = vpop.f32.mrb[0].mxu0
    %4381 = vdwg.mxu0
    %vm4382 = vcmask 254976
    %4383 = vst.msk [vmem:[#allocation8] sm:$0x3] %vm4382, %v4379
    // Predicated region
    $region70: #{tpu_custom_call.1} parent=1 // pred_check
      _
    $region71: #{tpu_custom_call.1} parent=1 // pred_check_branch
      %4385 = sbr.rel (0) target = $region73
    $region72: #{tpu_custom_call.1} parent=1 // pred_region
      %s4387 = ssub.s32 32, 32
      %4388 = vsyncadd [#allocation4], %s4387
      %s4390 = sshll.u32 [#allocation8], 4
      %s4391 = int_to_ptr.vmem [resolvable:$true] %s4390
      %4393 = dma.vmem_to_hbm [thread:$0]  %s4391, 32, %s14, [#allocation4]
    $region73: #{tpu_custom_call.1} parent=1 // pred_fallthru
      _
    // Predicated region
    $region74: #{tpu_custom_call.1} parent=1 // pred_check
      _
    $region75: #{tpu_custom_call.1} parent=1 // pred_check_branch
      %4395 = sbr.rel (0) target = $region77
    $region76: #{tpu_custom_call.1} parent=1 // pred_region
      %4396 = dma.done [#allocation4], 32
    $region77: #{tpu_custom_call.1} parent=1 // pred_fallthru
      _
    %4397 = vsyncpa [#allocation3], 1
    %4398 = vsyncpa [#allocation6], 1
    %4399 = vsyncpa [#allocation4], 1

</llo_original>
